<compile_context>
chip_gen: v6e
topology: v6e:2x2x1
jax: 0.10.0
libtpu: 0.0.40
codegen_flags: <defaults>
</compile_context>

<pallas_src>
import functools

import numpy as np
import jax
import jax.numpy as jnp
from jax.experimental import pallas as pl
from jax.experimental.pallas import tpu as pltpu


# ----------------------------- Pallas kernel --------------------------------

def _cell(gates, c_prev, H):
    """One LSTM cell update. gates: (B, 4H) pre-activation, PyTorch order i,f,g,o."""
    # Full-width activations: one sigmoid + one tanh EUP pass over (B, 4H).
    sg = jax.nn.sigmoid(gates)
    th = jnp.tanh(gates)
    i = sg[:, 0 * H:1 * H]
    f = sg[:, 1 * H:2 * H]
    g = th[:, 2 * H:3 * H]
    o = sg[:, 3 * H:4 * H]
    c_new = f * c_prev + i * g
    h_new = o * jnp.tanh(c_new)
    return h_new, c_new


def lstm_kernel(x_ref, w_ih0_ref, w_blk_ref, b_ref, w_lin_ref, b_lin_ref, out_ref,
                *, T, B, L, H, In, O):
    """Fused-wavefront multi-layer LSTM forward.

    x_ref    : (T, B, In)      time-major input
    w_ih0_ref: (In, 4H)        layer-0 input weights (transposed)
    w_blk_ref: (L*H, L*4H)     block matrix: diag blocks = w_hh[l], superdiag
                               blocks = inter-layer w_ih[l] (transposed), else 0
    b_ref    : (L, 1, 4H)      b_ih + b_hh (pre-summed)
    w_lin_ref: (O, H), b_lin_ref: (1, O)
    Gate order follows PyTorch: i, f, g, o.
    """
    fourH = 4 * H

    # ---- Layer-0 input projection, hoisted out of the recurrence. --------------
    if In == 1:
        # K=1 contraction would waste >99% of the MXU; do it on the VPU instead.
        g0 = x_ref[...] * w_ih0_ref[...].reshape(1, 1, fourH) + b_ref[0][None]
    else:
        x2 = x_ref[...].reshape(T * B, In)
        g0 = (jnp.dot(x2, w_ih0_ref[...], preferred_element_type=jnp.float32)
              + b_ref[0]).reshape(T, B, fourH)
    # g0: (T, B, 4H) — per-timestep reads below are tile-aligned leading-dim indexes.

    # ---- Hoist weight load / pre-broadcast biases (traced once, reused). -------
    w_blk = w_blk_ref[...]                                            # (L*H, L*4H)
    b_up = [jnp.broadcast_to(b_ref[l], (B, fourH)) for l in range(1, L)]

    # ---- Wavefront-interleaved recurrence (fully unrolled: T, L are static). ---
    # Super-step s runs layer l at time t = s - l; h[l]/c[l] are the only carries.
    h = [jnp.zeros((B, H), jnp.float32) for _ in range(L)]
    c = [jnp.zeros((B, H), jnp.float32) for _ in range(L)]
    for s in range(T + L - 1):
        # Snapshot of end-of-super-step s-1 hidden states, lane-concatenated.
        h_cat = jnp.concatenate(h, axis=1)                            # (B, L*H)
        # ONE MXU push per super-step covers every in-flight layer's
        # recurrent + inter-layer contribution.
        g_all = jnp.dot(h_cat, w_blk,
                        preferred_element_type=jnp.float32)           # (B, L*4H)
        for l in range(L):
            t = s - l
            if 0 <= t < T:
                gates = g_all[:, l * fourH:(l + 1) * fourH]           # 128-lane aligned
                gates = gates + (g0[t] if l == 0 else b_up[l - 1])
                h[l], c[l] = _cell(gates, c[l], H)

    # ---- Linear head on lstm_out[:, -1] == top layer's last hidden state. ------
    # TODO(synk): nn.LSTM inter-layer dropout is a training-mode stochastic op;
    #             eval-mode forward semantics are implemented here.
    h_last = h[L - 1]                                                 # (B, H)
    if O == 1:
        # VPU multiply + lane reduce: avoids a tail MXU push + drain for 64 FLOPs.
        out_ref[...] = (jnp.sum(h_last * w_lin_ref[...], axis=-1, keepdims=True)
                        + b_lin_ref[...])
    else:
        out_ref[...] = (jax.lax.dot_general(
            h_last, w_lin_ref[...], (((1,), (1,)), ((), ())),
            preferred_element_type=jnp.float32) + b_lin_ref[...])


# ------------------------------- Wrapper -------------------------------------

def lstm_forward(x, params):
    B, T, In = x.shape
    w_ih0_t = params["w_ih0_t"]        # (In, 4H)
    w_ihr_t = params["w_ihr_t"]        # (L-1, H, 4H)
    w_hh_t = params["w_hh_t"]          # (L, H, 4H)
    b = params["b"]                    # (L, 1, 4H)
    w_lin = params["w_lin"]            # (O, H)
    b_lin = params["b_lin"]            # (1, O)
    L, H, _ = w_hh_t.shape
    O = w_lin.shape[0]
    fourH = 4 * H

    # Time-major input for the kernel.
    x_tm = jnp.transpose(x, (1, 0, 2)).astype(jnp.float32)            # (T, B, In)

    # Block weight matrix (L*H, L*4H): row block l -> column block l holds w_hh[l];
    # row block l -> column block l+1 holds the inter-layer w_ih of layer l+1.
    zeros_blk = jnp.zeros((H, fourH), jnp.float32)
    rows = []
    for l in range(L):
        row = []
        for m in range(L):
            if m == l:
                row.append(w_hh_t[l])
            elif m == l + 1:
                row.append(w_ihr_t[l])
            else:
                row.append(zeros_blk)
        rows.append(jnp.concatenate(row, axis=1))
    w_blk = jnp.concatenate(rows, axis=0)                             # (L*H, L*4H)

    kernel = functools.partial(lstm_kernel, T=T, B=B, L=L, H=H, In=In, O=O)

    # Advisory cost estimate for the XLA scheduler.
    flops = int(2 * (T + L - 1) * B * (L * H) * (L * fourH)   # fused block matmuls
                + 2 * T * B * In * fourH                      # layer-0 input projection
                + 2 * B * H * O                               # head
                + 10 * T * L * B * H)                         # elementwise gate math
    transcendentals = int(T * L * B * 9 * H)                  # 2 full-width EUP passes + tanh(c)
    bytes_accessed = int(4 * (x_tm.size + w_ih0_t.size + w_blk.size + b.size
                              + w_lin.size + b_lin.size + B * O))

    out = pl.pallas_call(
        kernel,
        out_shape=jax.ShapeDtypeStruct((B, O), jnp.float32),
        grid=(1,),
        in_specs=[
            pl.BlockSpec((T, B, In), lambda i: (0, 0, 0)),
            pl.BlockSpec((In, fourH), lambda i: (0, 0)),
            pl.BlockSpec((L * H, L * fourH), lambda i: (0, 0)),
            pl.BlockSpec((L, 1, fourH), lambda i: (0, 0, 0)),
            pl.BlockSpec((O, H), lambda i: (0, 0)),
            pl.BlockSpec((1, O), lambda i: (0, 0)),
        ],
        out_specs=pl.BlockSpec((B, O), lambda i: (0, 0)),
        compiler_params=pltpu.CompilerParams(
            dimension_semantics=("arbitrary",),
            vmem_limit_bytes=32 * 1024 * 1024),
        cost_estimate=pl.CostEstimate(flops=flops,
                                      transcendentals=transcendentals,
                                      bytes_accessed=bytes_accessed),
    )(x_tm, w_ih0_t, w_blk, b, w_lin, b_lin)
    return out


# ---------------------- Deterministic parameter init -------------------------

def init_params(key, input_size=1, hidden=32, output=1, num_layers=4):
    """PyTorch-style init: U(-1/sqrt(H), 1/sqrt(H)) for all LSTM/Linear params."""
    H, In, O, L = hidden, input_size, output, num_layers
    k = 1.0 / float(np.sqrt(H))
    keys = jax.random.split(key, 4 * L + 2)

    def u(kk, shape):
        return jax.random.uniform(kk, shape, jnp.float32, -k, k)

    w_ih = [u(keys[4 * l + 0], (4 * H, In if l == 0 else H)) for l in range(L)]
    w_hh = [u(keys[4 * l + 1], (4 * H, H)) for l in range(L)]
    b_ih = [u(keys[4 * l + 2], (4 * H,)) for l in range(L)]
    b_hh = [u(keys[4 * l + 3], (4 * H,)) for l in range(L)]
    w_lin = u(keys[-2], (O, H))
    b_lin = u(keys[-1], (O,))

    return {
        "w_ih0_t": w_ih[0].T,                                          # (In, 4H)
        "w_ihr_t": jnp.stack([w.T for w in w_ih[1:]]),                 # (L-1, H, 4H)
        "w_hh_t": jnp.stack([w.T for w in w_hh]),                      # (L, H, 4H)
        "b": jnp.stack([(bi + bh)[None, :] for bi, bh in zip(b_ih, b_hh)]),  # (L,1,4H)
        "w_lin": w_lin,                                                # (O, H)
        "b_lin": b_lin[None, :],                                       # (1, O)
    }


# ---------------------- Pure-JAX reference (for checking) --------------------

def lstm_reference(x, params):
    B, T, In = x.shape
    w_hh_t = params["w_hh_t"]
    L, H, _ = w_hh_t.shape
    seq = jnp.transpose(x, (1, 0, 2)).astype(jnp.float32)   # (T, B, In)
    for l in range(L):
        w_ih_t = params["w_ih0_t"] if l == 0 else params["w_ihr_t"][l - 1]
        w_hh = w_hh_t[l]
        b = params["b"][l]
        h = jnp.zeros((B, H), jnp.float32)
        c = jnp.zeros((B, H), jnp.float32)
        outs = []
        for t in range(T):
            gates = seq[t] @ w_ih_t + h @ w_hh + b
            i = jax.nn.sigmoid(gates[:, :H])
            f = jax.nn.sigmoid(gates[:, H:2 * H])
            g = jnp.tanh(gates[:, 2 * H:3 * H])
            o = jax.nn.sigmoid(gates[:, 3 * H:4 * H])
            c = f * c + i * g
            h = o * jnp.tanh(c)
            outs.append(h)
        seq = jnp.stack(outs)
    return seq[-1] @ params["w_lin"].T + params["b_lin"]


# --------------------------------- Main ---------------------------------------

if __name__ == "__main__":
    B, T, In, H, O, L = 2, 8, 1, 32, 1, 4
    key = jax.random.PRNGKey(0)
    kx, kp = jax.random.split(key)

    # Equivalent of `torch.from_numpy(x).float().unsqueeze(-1)` at small shapes.
    x = jax.random.normal(kx, (B, T, In), jnp.float32)
    params = init_params(kp, input_size=In, hidden=H, output=O, num_layers=L)

    out = jax.block_until_ready(lstm_forward(x, params))
    ref = lstm_reference(x, params)

    assert out.shape == (B, O)
    np.testing.assert_allclose(np.asarray(out), np.asarray(ref), rtol=1e-4, atol=1e-4)
    print("KERNEL_OK")
</pallas_src>

<mosaic_0001>
module attributes {stable_mosaic.version = 11 : i64} {
  func.func @lstm_kernel(%arg0: i32, %arg1: memref<8x2x1xf32, #tpu.memory_space<vmem>>, %arg2: memref<1x128xf32, #tpu.memory_space<vmem>>, %arg3: memref<128x512xf32, #tpu.memory_space<vmem>>, %arg4: memref<4x1x128xf32, #tpu.memory_space<vmem>>, %arg5: memref<1x32xf32, #tpu.memory_space<vmem>>, %arg6: memref<1x1xf32, #tpu.memory_space<vmem>>, %arg7: memref<2x1xf32, #tpu.memory_space<vmem>>) attributes {dimension_semantics = [#tpu.dimension_semantics<arbitrary>], iteration_bounds = array<i64: 1>, scalar_prefetch = 0 : i64, scratch_operands = 0 : i64, tpu.core_type = #tpu.core_type<tc>, window_params = [{pipeline_mode = #tpu.pipeline_mode<synchronous>, transform_indices = @transform_0, window_bounds = array<i64: 8, 2, 1>}, {pipeline_mode = #tpu.pipeline_mode<synchronous>, transform_indices = @transform_1, window_bounds = array<i64: 1, 128>}, {pipeline_mode = #tpu.pipeline_mode<synchronous>, transform_indices = @transform_2, window_bounds = array<i64: 128, 512>}, {pipeline_mode = #tpu.pipeline_mode<synchronous>, transform_indices = @transform_3, window_bounds = array<i64: 4, 1, 128>}, {pipeline_mode = #tpu.pipeline_mode<synchronous>, transform_indices = @transform_4, window_bounds = array<i64: 1, 32>}, {pipeline_mode = #tpu.pipeline_mode<synchronous>, transform_indices = @transform_5, window_bounds = array<i64: 1, 1>}, {pipeline_mode = #tpu.pipeline_mode<synchronous>, transform_indices = @transform_6, window_bounds = array<i64: 2, 1>}]} {
    %c0 = arith.constant 0 : index
    %c0_0 = arith.constant 0 : index
    %c0_1 = arith.constant 0 : index
    %0 = vector.load %arg1[%c0, %c0_0, %c0_1] : memref<8x2x1xf32, #tpu.memory_space<vmem>>, vector<8x2x1xf32>
    %c0_2 = arith.constant 0 : index
    %c0_3 = arith.constant 0 : index
    %1 = vector.load %arg2[%c0_2, %c0_3] : memref<1x128xf32, #tpu.memory_space<vmem>>, vector<1x128xf32>
    %2 = vector.shape_cast %1 : vector<1x128xf32> to vector<1x1x128xf32>
    %3 = vector.broadcast %0 : vector<8x2x1xf32> to vector<8x2x128xf32>
    %4 = vector.broadcast %2 : vector<1x1x128xf32> to vector<8x2x128xf32>
    %5 = arith.mulf %3, %4 : vector<8x2x128xf32>
    %c0_4 = arith.constant 0 : index
    %c0_5 = arith.constant 0 : index
    %c0_6 = arith.constant 0 : index
    %6 = vector.load %arg4[%c0_4, %c0_5, %c0_6] : memref<4x1x128xf32, #tpu.memory_space<vmem>>, vector<1x1x128xf32>
    %7 = vector.shape_cast %6 : vector<1x1x128xf32> to vector<1x128xf32>
    %8 = vector.shape_cast %7 : vector<1x128xf32> to vector<1x1x128xf32>
    %9 = vector.broadcast %8 : vector<1x1x128xf32> to vector<8x2x128xf32>
    %10 = arith.addf %5, %9 : vector<8x2x128xf32>
    %c0_7 = arith.constant 0 : index
    %c0_8 = arith.constant 0 : index
    %11 = vector.load %arg3[%c0_7, %c0_8] : memref<128x512xf32, #tpu.memory_space<vmem>>, vector<128x512xf32>
    %c1 = arith.constant 1 : index
    %c0_9 = arith.constant 0 : index
    %c0_10 = arith.constant 0 : index
    %12 = vector.load %arg4[%c1, %c0_9, %c0_10] : memref<4x1x128xf32, #tpu.memory_space<vmem>>, vector<1x1x128xf32>
    %13 = vector.shape_cast %12 : vector<1x1x128xf32> to vector<1x128xf32>
    %14 = vector.shape_cast %13 : vector<1x128xf32> to vector<1x128xf32>
    %15 = vector.broadcast %14 : vector<1x128xf32> to vector<2x128xf32>
    %c2 = arith.constant 2 : index
    %c0_11 = arith.constant 0 : index
    %c0_12 = arith.constant 0 : index
    %16 = vector.load %arg4[%c2, %c0_11, %c0_12] : memref<4x1x128xf32, #tpu.memory_space<vmem>>, vector<1x1x128xf32>
    %17 = vector.shape_cast %16 : vector<1x1x128xf32> to vector<1x128xf32>
    %18 = vector.shape_cast %17 : vector<1x128xf32> to vector<1x128xf32>
    %19 = vector.broadcast %18 : vector<1x128xf32> to vector<2x128xf32>
    %c3 = arith.constant 3 : index
    %c0_13 = arith.constant 0 : index
    %c0_14 = arith.constant 0 : index
    %20 = vector.load %arg4[%c3, %c0_13, %c0_14] : memref<4x1x128xf32, #tpu.memory_space<vmem>>, vector<1x1x128xf32>
    %21 = vector.shape_cast %20 : vector<1x1x128xf32> to vector<1x128xf32>
    %22 = vector.shape_cast %21 : vector<1x128xf32> to vector<1x128xf32>
    %23 = vector.broadcast %22 : vector<1x128xf32> to vector<2x128xf32>
    %cst = arith.constant 0.000000e+00 : f32
    %24 = vector.broadcast %cst : f32 to vector<2x32xf32>
    %cst_15 = arith.constant 0.000000e+00 : f32
    %25 = vector.broadcast %cst_15 : f32 to vector<2x32xf32>
    %cst_16 = arith.constant 0.000000e+00 : f32
    %26 = vector.broadcast %cst_16 : f32 to vector<2x32xf32>
    %cst_17 = arith.constant 0.000000e+00 : f32
    %27 = vector.broadcast %cst_17 : f32 to vector<2x32xf32>
    %cst_18 = arith.constant 0.000000e+00 : f32
    %28 = vector.broadcast %cst_18 : f32 to vector<2x32xf32>
    %cst_19 = arith.constant 0.000000e+00 : f32
    %29 = vector.broadcast %cst_19 : f32 to vector<2x32xf32>
    %cst_20 = arith.constant 0.000000e+00 : f32
    %30 = vector.broadcast %cst_20 : f32 to vector<2x32xf32>
    %cst_21 = arith.constant 0.000000e+00 : f32
    %31 = vector.broadcast %cst_21 : f32 to vector<2x32xf32>
    %32 = tpu.concatenate %24, %25, %26, %27 in 1 : vector<2x32xf32>, vector<2x32xf32>, vector<2x32xf32>, vector<2x32xf32> -> vector<2x128xf32>
    %cst_22 = arith.constant dense<0.000000e+00> : vector<2x512xf32>
    %33 = tpu.matmul %32, %11, %cst_22 {dimension_numbers = #tpu.dot_dimension_numbers<[1], [0], [0], [1], [0, 0, 1, 1], [], []>} : vector<2x128xf32>, vector<128x512xf32>, vector<2x512xf32> -> vector<2x512xf32>
    %34 = vector.extract_strided_slice %33 {offsets = [0, 0], sizes = [2, 128], strides = [1, 1]} : vector<2x512xf32> to vector<2x128xf32>
    %35 = vector.extract_strided_slice %10 {offsets = [0, 0, 0], sizes = [1, 2, 128], strides = [1, 1, 1]} : vector<8x2x128xf32> to vector<1x2x128xf32>
    %36 = vector.shape_cast %35 : vector<1x2x128xf32> to vector<2x128xf32>
    %37 = arith.addf %34, %36 : vector<2x128xf32>
    %38 = arith.negf %37 : vector<2x128xf32>
    %39 = math.exp %38 : vector<2x128xf32>
    %cst_23 = arith.constant 1.000000e+00 : f32
    %40 = vector.broadcast %cst_23 : f32 to vector<2x128xf32>
    %41 = arith.addf %40, %39 : vector<2x128xf32>
    %42 = arith.divf %40, %41 : vector<2x128xf32>
    %43 = math.tanh %37 : vector<2x128xf32>
    %44 = vector.extract_strided_slice %42 {offsets = [0, 0], sizes = [2, 32], strides = [1, 1]} : vector<2x128xf32> to vector<2x32xf32>
    %45 = vector.extract_strided_slice %42 {offsets = [0, 32], sizes = [2, 32], strides = [1, 1]} : vector<2x128xf32> to vector<2x32xf32>
    %46 = vector.extract_strided_slice %43 {offsets = [0, 64], sizes = [2, 32], strides = [1, 1]} : vector<2x128xf32> to vector<2x32xf32>
    %47 = vector.extract_strided_slice %42 {offsets = [0, 96], sizes = [2, 32], strides = [1, 1]} : vector<2x128xf32> to vector<2x32xf32>
    %48 = arith.mulf %45, %28 : vector<2x32xf32>
    %49 = arith.mulf %44, %46 : vector<2x32xf32>
    %50 = arith.addf %48, %49 : vector<2x32xf32>
    %51 = math.tanh %50 : vector<2x32xf32>
    %52 = arith.mulf %47, %51 : vector<2x32xf32>
    %53 = tpu.concatenate %52, %25, %26, %27 in 1 : vector<2x32xf32>, vector<2x32xf32>, vector<2x32xf32>, vector<2x32xf32> -> vector<2x128xf32>
    %cst_24 = arith.constant dense<0.000000e+00> : vector<2x512xf32>
    %54 = tpu.matmul %53, %11, %cst_24 {dimension_numbers = #tpu.dot_dimension_numbers<[1], [0], [0], [1], [0, 0, 1, 1], [], []>} : vector<2x128xf32>, vector<128x512xf32>, vector<2x512xf32> -> vector<2x512xf32>
    %55 = vector.extract_strided_slice %54 {offsets = [0, 0], sizes = [2, 128], strides = [1, 1]} : vector<2x512xf32> to vector<2x128xf32>
    %56 = vector.extract_strided_slice %10 {offsets = [1, 0, 0], sizes = [1, 2, 128], strides = [1, 1, 1]} : vector<8x2x128xf32> to vector<1x2x128xf32>
    %57 = vector.shape_cast %56 : vector<1x2x128xf32> to vector<2x128xf32>
    %58 = arith.addf %55, %57 : vector<2x128xf32>
    %59 = arith.negf %58 : vector<2x128xf32>
    %60 = math.exp %59 : vector<2x128xf32>
    %cst_25 = arith.constant 1.000000e+00 : f32
    %61 = vector.broadcast %cst_25 : f32 to vector<2x128xf32>
    %62 = arith.addf %61, %60 : vector<2x128xf32>
    %63 = arith.divf %61, %62 : vector<2x128xf32>
    %64 = math.tanh %58 : vector<2x128xf32>
    %65 = vector.extract_strided_slice %63 {offsets = [0, 0], sizes = [2, 32], strides = [1, 1]} : vector<2x128xf32> to vector<2x32xf32>
    %66 = vector.extract_strided_slice %63 {offsets = [0, 32], sizes = [2, 32], strides = [1, 1]} : vector<2x128xf32> to vector<2x32xf32>
    %67 = vector.extract_strided_slice %64 {offsets = [0, 64], sizes = [2, 32], strides = [1, 1]} : vector<2x128xf32> to vector<2x32xf32>
    %68 = vector.extract_strided_slice %63 {offsets = [0, 96], sizes = [2, 32], strides = [1, 1]} : vector<2x128xf32> to vector<2x32xf32>
    %69 = arith.mulf %66, %50 : vector<2x32xf32>
    %70 = arith.mulf %65, %67 : vector<2x32xf32>
    %71 = arith.addf %69, %70 : vector<2x32xf32>
    %72 = math.tanh %71 : vector<2x32xf32>
    %73 = arith.mulf %68, %72 : vector<2x32xf32>
    %74 = vector.extract_strided_slice %54 {offsets = [0, 128], sizes = [2, 128], strides = [1, 1]} : vector<2x512xf32> to vector<2x128xf32>
    %75 = arith.addf %74, %15 : vector<2x128xf32>
    %76 = arith.negf %75 : vector<2x128xf32>
    %77 = math.exp %76 : vector<2x128xf32>
    %cst_26 = arith.constant 1.000000e+00 : f32
    %78 = vector.broadcast %cst_26 : f32 to vector<2x128xf32>
    %79 = arith.addf %78, %77 : vector<2x128xf32>
    %80 = arith.divf %78, %79 : vector<2x128xf32>
    %81 = math.tanh %75 : vector<2x128xf32>
    %82 = vector.extract_strided_slice %80 {offsets = [0, 0], sizes = [2, 32], strides = [1, 1]} : vector<2x128xf32> to vector<2x32xf32>
    %83 = vector.extract_strided_slice %80 {offsets = [0, 32], sizes = [2, 32], strides = [1, 1]} : vector<2x128xf32> to vector<2x32xf32>
    %84 = vector.extract_strided_slice %81 {offsets = [0, 64], sizes = [2, 32], strides = [1, 1]} : vector<2x128xf32> to vector<2x32xf32>
    %85 = vector.extract_strided_slice %80 {offsets = [0, 96], sizes = [2, 32], strides = [1, 1]} : vector<2x128xf32> to vector<2x32xf32>
    %86 = arith.mulf %83, %29 : vector<2x32xf32>
    %87 = arith.mulf %82, %84 : vector<2x32xf32>
    %88 = arith.addf %86, %87 : vector<2x32xf32>
    %89 = math.tanh %88 : vector<2x32xf32>
    %90 = arith.mulf %85, %89 : vector<2x32xf32>
    %91 = tpu.concatenate %73, %90, %26, %27 in 1 : vector<2x32xf32>, vector<2x32xf32>, vector<2x32xf32>, vector<2x32xf32> -> vector<2x128xf32>
    %cst_27 = arith.constant dense<0.000000e+00> : vector<2x512xf32>
    %92 = tpu.matmul %91, %11, %cst_27 {dimension_numbers = #tpu.dot_dimension_numbers<[1], [0], [0], [1], [0, 0, 1, 1], [], []>} : vector<2x128xf32>, vector<128x512xf32>, vector<2x512xf32> -> vector<2x512xf32>
    %93 = vector.extract_strided_slice %92 {offsets = [0, 0], sizes = [2, 128], strides = [1, 1]} : vector<2x512xf32> to vector<2x128xf32>
    %94 = vector.extract_strided_slice %10 {offsets = [2, 0, 0], sizes = [1, 2, 128], strides = [1, 1, 1]} : vector<8x2x128xf32> to vector<1x2x128xf32>
    %95 = vector.shape_cast %94 : vector<1x2x128xf32> to vector<2x128xf32>
    %96 = arith.addf %93, %95 : vector<2x128xf32>
    %97 = arith.negf %96 : vector<2x128xf32>
    %98 = math.exp %97 : vector<2x128xf32>
    %cst_28 = arith.constant 1.000000e+00 : f32
    %99 = vector.broadcast %cst_28 : f32 to vector<2x128xf32>
    %100 = arith.addf %99, %98 : vector<2x128xf32>
    %101 = arith.divf %99, %100 : vector<2x128xf32>
    %102 = math.tanh %96 : vector<2x128xf32>
    %103 = vector.extract_strided_slice %101 {offsets = [0, 0], sizes = [2, 32], strides = [1, 1]} : vector<2x128xf32> to vector<2x32xf32>
    %104 = vector.extract_strided_slice %101 {offsets = [0, 32], sizes = [2, 32], strides = [1, 1]} : vector<2x128xf32> to vector<2x32xf32>
    %105 = vector.extract_strided_slice %102 {offsets = [0, 64], sizes = [2, 32], strides = [1, 1]} : vector<2x128xf32> to vector<2x32xf32>
    %106 = vector.extract_strided_slice %101 {offsets = [0, 96], sizes = [2, 32], strides = [1, 1]} : vector<2x128xf32> to vector<2x32xf32>
    %107 = arith.mulf %104, %71 : vector<2x32xf32>
    %108 = arith.mulf %103, %105 : vector<2x32xf32>
    %109 = arith.addf %107, %108 : vector<2x32xf32>
    %110 = math.tanh %109 : vector<2x32xf32>
    %111 = arith.mulf %106, %110 : vector<2x32xf32>
    %112 = vector.extract_strided_slice %92 {offsets = [0, 128], sizes = [2, 128], strides = [1, 1]} : vector<2x512xf32> to vector<2x128xf32>
    %113 = arith.addf %112, %15 : vector<2x128xf32>
    %114 = arith.negf %113 : vector<2x128xf32>
    %115 = math.exp %114 : vector<2x128xf32>
    %cst_29 = arith.constant 1.000000e+00 : f32
    %116 = vector.broadcast %cst_29 : f32 to vector<2x128xf32>
    %117 = arith.addf %116, %115 : vector<2x128xf32>
    %118 = arith.divf %116, %117 : vector<2x128xf32>
    %119 = math.tanh %113 : vector<2x128xf32>
    %120 = vector.extract_strided_slice %118 {offsets = [0, 0], sizes = [2, 32], strides = [1, 1]} : vector<2x128xf32> to vector<2x32xf32>
    %121 = vector.extract_strided_slice %118 {offsets = [0, 32], sizes = [2, 32], strides = [1, 1]} : vector<2x128xf32> to vector<2x32xf32>
    %122 = vector.extract_strided_slice %119 {offsets = [0, 64], sizes = [2, 32], strides = [1, 1]} : vector<2x128xf32> to vector<2x32xf32>
    %123 = vector.extract_strided_slice %118 {offsets = [0, 96], sizes = [2, 32], strides = [1, 1]} : vector<2x128xf32> to vector<2x32xf32>
    %124 = arith.mulf %121, %88 : vector<2x32xf32>
    %125 = arith.mulf %120, %122 : vector<2x32xf32>
    %126 = arith.addf %124, %125 : vector<2x32xf32>
    %127 = math.tanh %126 : vector<2x32xf32>
    %128 = arith.mulf %123, %127 : vector<2x32xf32>
    %129 = vector.extract_strided_slice %92 {offsets = [0, 256], sizes = [2, 128], strides = [1, 1]} : vector<2x512xf32> to vector<2x128xf32>
    %130 = arith.addf %129, %19 : vector<2x128xf32>
    %131 = arith.negf %130 : vector<2x128xf32>
    %132 = math.exp %131 : vector<2x128xf32>
    %cst_30 = arith.constant 1.000000e+00 : f32
    %133 = vector.broadcast %cst_30 : f32 to vector<2x128xf32>
    %134 = arith.addf %133, %132 : vector<2x128xf32>
    %135 = arith.divf %133, %134 : vector<2x128xf32>
    %136 = math.tanh %130 : vector<2x128xf32>
    %137 = vector.extract_strided_slice %135 {offsets = [0, 0], sizes = [2, 32], strides = [1, 1]} : vector<2x128xf32> to vector<2x32xf32>
    %138 = vector.extract_strided_slice %135 {offsets = [0, 32], sizes = [2, 32], strides = [1, 1]} : vector<2x128xf32> to vector<2x32xf32>
    %139 = vector.extract_strided_slice %136 {offsets = [0, 64], sizes = [2, 32], strides = [1, 1]} : vector<2x128xf32> to vector<2x32xf32>
    %140 = vector.extract_strided_slice %135 {offsets = [0, 96], sizes = [2, 32], strides = [1, 1]} : vector<2x128xf32> to vector<2x32xf32>
    %141 = arith.mulf %138, %30 : vector<2x32xf32>
    %142 = arith.mulf %137, %139 : vector<2x32xf32>
    %143 = arith.addf %141, %142 : vector<2x32xf32>
    %144 = math.tanh %143 : vector<2x32xf32>
    %145 = arith.mulf %140, %144 : vector<2x32xf32>
    %146 = tpu.concatenate %111, %128, %145, %27 in 1 : vector<2x32xf32>, vector<2x32xf32>, vector<2x32xf32>, vector<2x32xf32> -> vector<2x128xf32>
    %cst_31 = arith.constant dense<0.000000e+00> : vector<2x512xf32>
    %147 = tpu.matmul %146, %11, %cst_31 {dimension_numbers = #tpu.dot_dimension_numbers<[1], [0], [0], [1], [0, 0, 1, 1], [], []>} : vector<2x128xf32>, vector<128x512xf32>, vector<2x512xf32> -> vector<2x512xf32>
    %148 = vector.extract_strided_slice %147 {offsets = [0, 0], sizes = [2, 128], strides = [1, 1]} : vector<2x512xf32> to vector<2x128xf32>
    %149 = vector.extract_strided_slice %10 {offsets = [3, 0, 0], sizes = [1, 2, 128], strides = [1, 1, 1]} : vector<8x2x128xf32> to vector<1x2x128xf32>
    %150 = vector.shape_cast %149 : vector<1x2x128xf32> to vector<2x128xf32>
    %151 = arith.addf %148, %150 : vector<2x128xf32>
    %152 = arith.negf %151 : vector<2x128xf32>
    %153 = math.exp %152 : vector<2x128xf32>
    %cst_32 = arith.constant 1.000000e+00 : f32
    %154 = vector.broadcast %cst_32 : f32 to vector<2x128xf32>
    %155 = arith.addf %154, %153 : vector<2x128xf32>
    %156 = arith.divf %154, %155 : vector<2x128xf32>
    %157 = math.tanh %151 : vector<2x128xf32>
    %158 = vector.extract_strided_slice %156 {offsets = [0, 0], sizes = [2, 32], strides = [1, 1]} : vector<2x128xf32> to vector<2x32xf32>
    %159 = vector.extract_strided_slice %156 {offsets = [0, 32], sizes = [2, 32], strides = [1, 1]} : vector<2x128xf32> to vector<2x32xf32>
    %160 = vector.extract_strided_slice %157 {offsets = [0, 64], sizes = [2, 32], strides = [1, 1]} : vector<2x128xf32> to vector<2x32xf32>
    %161 = vector.extract_strided_slice %156 {offsets = [0, 96], sizes = [2, 32], strides = [1, 1]} : vector<2x128xf32> to vector<2x32xf32>
    %162 = arith.mulf %159, %109 : vector<2x32xf32>
    %163 = arith.mulf %158, %160 : vector<2x32xf32>
    %164 = arith.addf %162, %163 : vector<2x32xf32>
    %165 = math.tanh %164 : vector<2x32xf32>
    %166 = arith.mulf %161, %165 : vector<2x32xf32>
    %167 = vector.extract_strided_slice %147 {offsets = [0, 128], sizes = [2, 128], strides = [1, 1]} : vector<2x512xf32> to vector<2x128xf32>
    %168 = arith.addf %167, %15 : vector<2x128xf32>
    %169 = arith.negf %168 : vector<2x128xf32>
    %170 = math.exp %169 : vector<2x128xf32>
    %cst_33 = arith.constant 1.000000e+00 : f32
    %171 = vector.broadcast %cst_33 : f32 to vector<2x128xf32>
    %172 = arith.addf %171, %170 : vector<2x128xf32>
    %173 = arith.divf %171, %172 : vector<2x128xf32>
    %174 = math.tanh %168 : vector<2x128xf32>
    %175 = vector.extract_strided_slice %173 {offsets = [0, 0], sizes = [2, 32], strides = [1, 1]} : vector<2x128xf32> to vector<2x32xf32>
    %176 = vector.extract_strided_slice %173 {offsets = [0, 32], sizes = [2, 32], strides = [1, 1]} : vector<2x128xf32> to vector<2x32xf32>
    %177 = vector.extract_strided_slice %174 {offsets = [0, 64], sizes = [2, 32], strides = [1, 1]} : vector<2x128xf32> to vector<2x32xf32>
    %178 = vector.extract_strided_slice %173 {offsets = [0, 96], sizes = [2, 32], strides = [1, 1]} : vector<2x128xf32> to vector<2x32xf32>
    %179 = arith.mulf %176, %126 : vector<2x32xf32>
    %180 = arith.mulf %175, %177 : vector<2x32xf32>
    %181 = arith.addf %179, %180 : vector<2x32xf32>
    %182 = math.tanh %181 : vector<2x32xf32>
    %183 = arith.mulf %178, %182 : vector<2x32xf32>
    %184 = vector.extract_strided_slice %147 {offsets = [0, 256], sizes = [2, 128], strides = [1, 1]} : vector<2x512xf32> to vector<2x128xf32>
    %185 = arith.addf %184, %19 : vector<2x128xf32>
    %186 = arith.negf %185 : vector<2x128xf32>
    %187 = math.exp %186 : vector<2x128xf32>
    %cst_34 = arith.constant 1.000000e+00 : f32
    %188 = vector.broadcast %cst_34 : f32 to vector<2x128xf32>
    %189 = arith.addf %188, %187 : vector<2x128xf32>
    %190 = arith.divf %188, %189 : vector<2x128xf32>
    %191 = math.tanh %185 : vector<2x128xf32>
    %192 = vector.extract_strided_slice %190 {offsets = [0, 0], sizes = [2, 32], strides = [1, 1]} : vector<2x128xf32> to vector<2x32xf32>
    %193 = vector.extract_strided_slice %190 {offsets = [0, 32], sizes = [2, 32], strides = [1, 1]} : vector<2x128xf32> to vector<2x32xf32>
    %194 = vector.extract_strided_slice %191 {offsets = [0, 64], sizes = [2, 32], strides = [1, 1]} : vector<2x128xf32> to vector<2x32xf32>
    %195 = vector.extract_strided_slice %190 {offsets = [0, 96], sizes = [2, 32], strides = [1, 1]} : vector<2x128xf32> to vector<2x32xf32>
    %196 = arith.mulf %193, %143 : vector<2x32xf32>
    %197 = arith.mulf %192, %194 : vector<2x32xf32>
    %198 = arith.addf %196, %197 : vector<2x32xf32>
    %199 = math.tanh %198 : vector<2x32xf32>
    %200 = arith.mulf %195, %199 : vector<2x32xf32>
    %201 = vector.extract_strided_slice %147 {offsets = [0, 384], sizes = [2, 128], strides = [1, 1]} : vector<2x512xf32> to vector<2x128xf32>
    %202 = arith.addf %201, %23 : vector<2x128xf32>
    %203 = arith.negf %202 : vector<2x128xf32>
    %204 = math.exp %203 : vector<2x128xf32>
    %cst_35 = arith.constant 1.000000e+00 : f32
    %205 = vector.broadcast %cst_35 : f32 to vector<2x128xf32>
    %206 = arith.addf %205, %204 : vector<2x128xf32>
    %207 = arith.divf %205, %206 : vector<2x128xf32>
    %208 = math.tanh %202 : vector<2x128xf32>
    %209 = vector.extract_strided_slice %207 {offsets = [0, 0], sizes = [2, 32], strides = [1, 1]} : vector<2x128xf32> to vector<2x32xf32>
    %210 = vector.extract_strided_slice %207 {offsets = [0, 32], sizes = [2, 32], strides = [1, 1]} : vector<2x128xf32> to vector<2x32xf32>
    %211 = vector.extract_strided_slice %208 {offsets = [0, 64], sizes = [2, 32], strides = [1, 1]} : vector<2x128xf32> to vector<2x32xf32>
    %212 = vector.extract_strided_slice %207 {offsets = [0, 96], sizes = [2, 32], strides = [1, 1]} : vector<2x128xf32> to vector<2x32xf32>
    %213 = arith.mulf %210, %31 : vector<2x32xf32>
    %214 = arith.mulf %209, %211 : vector<2x32xf32>
    %215 = arith.addf %213, %214 : vector<2x32xf32>
    %216 = math.tanh %215 : vector<2x32xf32>
    %217 = arith.mulf %212, %216 : vector<2x32xf32>
    %218 = tpu.concatenate %166, %183, %200, %217 in 1 : vector<2x32xf32>, vector<2x32xf32>, vector<2x32xf32>, vector<2x32xf32> -> vector<2x128xf32>
    %cst_36 = arith.constant dense<0.000000e+00> : vector<2x512xf32>
    %219 = tpu.matmul %218, %11, %cst_36 {dimension_numbers = #tpu.dot_dimension_numbers<[1], [0], [0], [1], [0, 0, 1, 1], [], []>} : vector<2x128xf32>, vector<128x512xf32>, vector<2x512xf32> -> vector<2x512xf32>
    %220 = vector.extract_strided_slice %219 {offsets = [0, 0], sizes = [2, 128], strides = [1, 1]} : vector<2x512xf32> to vector<2x128xf32>
    %221 = vector.extract_strided_slice %10 {offsets = [4, 0, 0], sizes = [1, 2, 128], strides = [1, 1, 1]} : vector<8x2x128xf32> to vector<1x2x128xf32>
    %222 = vector.shape_cast %221 : vector<1x2x128xf32> to vector<2x128xf32>
    %223 = arith.addf %220, %222 : vector<2x128xf32>
    %224 = arith.negf %223 : vector<2x128xf32>
    %225 = math.exp %224 : vector<2x128xf32>
    %cst_37 = arith.constant 1.000000e+00 : f32
    %226 = vector.broadcast %cst_37 : f32 to vector<2x128xf32>
    %227 = arith.addf %226, %225 : vector<2x128xf32>
    %228 = arith.divf %226, %227 : vector<2x128xf32>
    %229 = math.tanh %223 : vector<2x128xf32>
    %230 = vector.extract_strided_slice %228 {offsets = [0, 0], sizes = [2, 32], strides = [1, 1]} : vector<2x128xf32> to vector<2x32xf32>
    %231 = vector.extract_strided_slice %228 {offsets = [0, 32], sizes = [2, 32], strides = [1, 1]} : vector<2x128xf32> to vector<2x32xf32>
    %232 = vector.extract_strided_slice %229 {offsets = [0, 64], sizes = [2, 32], strides = [1, 1]} : vector<2x128xf32> to vector<2x32xf32>
    %233 = vector.extract_strided_slice %228 {offsets = [0, 96], sizes = [2, 32], strides = [1, 1]} : vector<2x128xf32> to vector<2x32xf32>
    %234 = arith.mulf %231, %164 : vector<2x32xf32>
    %235 = arith.mulf %230, %232 : vector<2x32xf32>
    %236 = arith.addf %234, %235 : vector<2x32xf32>
    %237 = math.tanh %236 : vector<2x32xf32>
    %238 = arith.mulf %233, %237 : vector<2x32xf32>
    %239 = vector.extract_strided_slice %219 {offsets = [0, 128], sizes = [2, 128], strides = [1, 1]} : vector<2x512xf32> to vector<2x128xf32>
    %240 = arith.addf %239, %15 : vector<2x128xf32>
    %241 = arith.negf %240 : vector<2x128xf32>
    %242 = math.exp %241 : vector<2x128xf32>
    %cst_38 = arith.constant 1.000000e+00 : f32
    %243 = vector.broadcast %cst_38 : f32 to vector<2x128xf32>
    %244 = arith.addf %243, %242 : vector<2x128xf32>
    %245 = arith.divf %243, %244 : vector<2x128xf32>
    %246 = math.tanh %240 : vector<2x128xf32>
    %247 = vector.extract_strided_slice %245 {offsets = [0, 0], sizes = [2, 32], strides = [1, 1]} : vector<2x128xf32> to vector<2x32xf32>
    %248 = vector.extract_strided_slice %245 {offsets = [0, 32], sizes = [2, 32], strides = [1, 1]} : vector<2x128xf32> to vector<2x32xf32>
    %249 = vector.extract_strided_slice %246 {offsets = [0, 64], sizes = [2, 32], strides = [1, 1]} : vector<2x128xf32> to vector<2x32xf32>
    %250 = vector.extract_strided_slice %245 {offsets = [0, 96], sizes = [2, 32], strides = [1, 1]} : vector<2x128xf32> to vector<2x32xf32>
    %251 = arith.mulf %248, %181 : vector<2x32xf32>
    %252 = arith.mulf %247, %249 : vector<2x32xf32>
    %253 = arith.addf %251, %252 : vector<2x32xf32>
    %254 = math.tanh %253 : vector<2x32xf32>
    %255 = arith.mulf %250, %254 : vector<2x32xf32>
    %256 = vector.extract_strided_slice %219 {offsets = [0, 256], sizes = [2, 128], strides = [1, 1]} : vector<2x512xf32> to vector<2x128xf32>
    %257 = arith.addf %256, %19 : vector<2x128xf32>
    %258 = arith.negf %257 : vector<2x128xf32>
    %259 = math.exp %258 : vector<2x128xf32>
    %cst_39 = arith.constant 1.000000e+00 : f32
    %260 = vector.broadcast %cst_39 : f32 to vector<2x128xf32>
    %261 = arith.addf %260, %259 : vector<2x128xf32>
    %262 = arith.divf %260, %261 : vector<2x128xf32>
    %263 = math.tanh %257 : vector<2x128xf32>
    %264 = vector.extract_strided_slice %262 {offsets = [0, 0], sizes = [2, 32], strides = [1, 1]} : vector<2x128xf32> to vector<2x32xf32>
    %265 = vector.extract_strided_slice %262 {offsets = [0, 32], sizes = [2, 32], strides = [1, 1]} : vector<2x128xf32> to vector<2x32xf32>
    %266 = vector.extract_strided_slice %263 {offsets = [0, 64], sizes = [2, 32], strides = [1, 1]} : vector<2x128xf32> to vector<2x32xf32>
    %267 = vector.extract_strided_slice %262 {offsets = [0, 96], sizes = [2, 32], strides = [1, 1]} : vector<2x128xf32> to vector<2x32xf32>
    %268 = arith.mulf %265, %198 : vector<2x32xf32>
    %269 = arith.mulf %264, %266 : vector<2x32xf32>
    %270 = arith.addf %268, %269 : vector<2x32xf32>
    %271 = math.tanh %270 : vector<2x32xf32>
    %272 = arith.mulf %267, %271 : vector<2x32xf32>
    %273 = vector.extract_strided_slice %219 {offsets = [0, 384], sizes = [2, 128], strides = [1, 1]} : vector<2x512xf32> to vector<2x128xf32>
    %274 = arith.addf %273, %23 : vector<2x128xf32>
    %275 = arith.negf %274 : vector<2x128xf32>
    %276 = math.exp %275 : vector<2x128xf32>
    %cst_40 = arith.constant 1.000000e+00 : f32
    %277 = vector.broadcast %cst_40 : f32 to vector<2x128xf32>
    %278 = arith.addf %277, %276 : vector<2x128xf32>
    %279 = arith.divf %277, %278 : vector<2x128xf32>
    %280 = math.tanh %274 : vector<2x128xf32>
    %281 = vector.extract_strided_slice %279 {offsets = [0, 0], sizes = [2, 32], strides = [1, 1]} : vector<2x128xf32> to vector<2x32xf32>
    %282 = vector.extract_strided_slice %279 {offsets = [0, 32], sizes = [2, 32], strides = [1, 1]} : vector<2x128xf32> to vector<2x32xf32>
    %283 = vector.extract_strided_slice %280 {offsets = [0, 64], sizes = [2, 32], strides = [1, 1]} : vector<2x128xf32> to vector<2x32xf32>
    %284 = vector.extract_strided_slice %279 {offsets = [0, 96], sizes = [2, 32], strides = [1, 1]} : vector<2x128xf32> to vector<2x32xf32>
    %285 = arith.mulf %282, %215 : vector<2x32xf32>
    %286 = arith.mulf %281, %283 : vector<2x32xf32>
    %287 = arith.addf %285, %286 : vector<2x32xf32>
    %288 = math.tanh %287 : vector<2x32xf32>
    %289 = arith.mulf %284, %288 : vector<2x32xf32>
    %290 = tpu.concatenate %238, %255, %272, %289 in 1 : vector<2x32xf32>, vector<2x32xf32>, vector<2x32xf32>, vector<2x32xf32> -> vector<2x128xf32>
    %cst_41 = arith.constant dense<0.000000e+00> : vector<2x512xf32>
    %291 = tpu.matmul %290, %11, %cst_41 {dimension_numbers = #tpu.dot_dimension_numbers<[1], [0], [0], [1], [0, 0, 1, 1], [], []>} : vector<2x128xf32>, vector<128x512xf32>, vector<2x512xf32> -> vector<2x512xf32>
    %292 = vector.extract_strided_slice %291 {offsets = [0, 0], sizes = [2, 128], strides = [1, 1]} : vector<2x512xf32> to vector<2x128xf32>
    %293 = vector.extract_strided_slice %10 {offsets = [5, 0, 0], sizes = [1, 2, 128], strides = [1, 1, 1]} : vector<8x2x128xf32> to vector<1x2x128xf32>
    %294 = vector.shape_cast %293 : vector<1x2x128xf32> to vector<2x128xf32>
    %295 = arith.addf %292, %294 : vector<2x128xf32>
    %296 = arith.negf %295 : vector<2x128xf32>
    %297 = math.exp %296 : vector<2x128xf32>
    %cst_42 = arith.constant 1.000000e+00 : f32
    %298 = vector.broadcast %cst_42 : f32 to vector<2x128xf32>
    %299 = arith.addf %298, %297 : vector<2x128xf32>
    %300 = arith.divf %298, %299 : vector<2x128xf32>
    %301 = math.tanh %295 : vector<2x128xf32>
    %302 = vector.extract_strided_slice %300 {offsets = [0, 0], sizes = [2, 32], strides = [1, 1]} : vector<2x128xf32> to vector<2x32xf32>
    %303 = vector.extract_strided_slice %300 {offsets = [0, 32], sizes = [2, 32], strides = [1, 1]} : vector<2x128xf32> to vector<2x32xf32>
    %304 = vector.extract_strided_slice %301 {offsets = [0, 64], sizes = [2, 32], strides = [1, 1]} : vector<2x128xf32> to vector<2x32xf32>
    %305 = vector.extract_strided_slice %300 {offsets = [0, 96], sizes = [2, 32], strides = [1, 1]} : vector<2x128xf32> to vector<2x32xf32>
    %306 = arith.mulf %303, %236 : vector<2x32xf32>
    %307 = arith.mulf %302, %304 : vector<2x32xf32>
    %308 = arith.addf %306, %307 : vector<2x32xf32>
    %309 = math.tanh %308 : vector<2x32xf32>
    %310 = arith.mulf %305, %309 : vector<2x32xf32>
    %311 = vector.extract_strided_slice %291 {offsets = [0, 128], sizes = [2, 128], strides = [1, 1]} : vector<2x512xf32> to vector<2x128xf32>
    %312 = arith.addf %311, %15 : vector<2x128xf32>
    %313 = arith.negf %312 : vector<2x128xf32>
    %314 = math.exp %313 : vector<2x128xf32>
    %cst_43 = arith.constant 1.000000e+00 : f32
    %315 = vector.broadcast %cst_43 : f32 to vector<2x128xf32>
    %316 = arith.addf %315, %314 : vector<2x128xf32>
    %317 = arith.divf %315, %316 : vector<2x128xf32>
    %318 = math.tanh %312 : vector<2x128xf32>
    %319 = vector.extract_strided_slice %317 {offsets = [0, 0], sizes = [2, 32], strides = [1, 1]} : vector<2x128xf32> to vector<2x32xf32>
    %320 = vector.extract_strided_slice %317 {offsets = [0, 32], sizes = [2, 32], strides = [1, 1]} : vector<2x128xf32> to vector<2x32xf32>
    %321 = vector.extract_strided_slice %318 {offsets = [0, 64], sizes = [2, 32], strides = [1, 1]} : vector<2x128xf32> to vector<2x32xf32>
    %322 = vector.extract_strided_slice %317 {offsets = [0, 96], sizes = [2, 32], strides = [1, 1]} : vector<2x128xf32> to vector<2x32xf32>
    %323 = arith.mulf %320, %253 : vector<2x32xf32>
    %324 = arith.mulf %319, %321 : vector<2x32xf32>
    %325 = arith.addf %323, %324 : vector<2x32xf32>
    %326 = math.tanh %325 : vector<2x32xf32>
    %327 = arith.mulf %322, %326 : vector<2x32xf32>
    %328 = vector.extract_strided_slice %291 {offsets = [0, 256], sizes = [2, 128], strides = [1, 1]} : vector<2x512xf32> to vector<2x128xf32>
    %329 = arith.addf %328, %19 : vector<2x128xf32>
    %330 = arith.negf %329 : vector<2x128xf32>
    %331 = math.exp %330 : vector<2x128xf32>
    %cst_44 = arith.constant 1.000000e+00 : f32
    %332 = vector.broadcast %cst_44 : f32 to vector<2x128xf32>
    %333 = arith.addf %332, %331 : vector<2x128xf32>
    %334 = arith.divf %332, %333 : vector<2x128xf32>
    %335 = math.tanh %329 : vector<2x128xf32>
    %336 = vector.extract_strided_slice %334 {offsets = [0, 0], sizes = [2, 32], strides = [1, 1]} : vector<2x128xf32> to vector<2x32xf32>
    %337 = vector.extract_strided_slice %334 {offsets = [0, 32], sizes = [2, 32], strides = [1, 1]} : vector<2x128xf32> to vector<2x32xf32>
    %338 = vector.extract_strided_slice %335 {offsets = [0, 64], sizes = [2, 32], strides = [1, 1]} : vector<2x128xf32> to vector<2x32xf32>
    %339 = vector.extract_strided_slice %334 {offsets = [0, 96], sizes = [2, 32], strides = [1, 1]} : vector<2x128xf32> to vector<2x32xf32>
    %340 = arith.mulf %337, %270 : vector<2x32xf32>
    %341 = arith.mulf %336, %338 : vector<2x32xf32>
    %342 = arith.addf %340, %341 : vector<2x32xf32>
    %343 = math.tanh %342 : vector<2x32xf32>
    %344 = arith.mulf %339, %343 : vector<2x32xf32>
    %345 = vector.extract_strided_slice %291 {offsets = [0, 384], sizes = [2, 128], strides = [1, 1]} : vector<2x512xf32> to vector<2x128xf32>
    %346 = arith.addf %345, %23 : vector<2x128xf32>
    %347 = arith.negf %346 : vector<2x128xf32>
    %348 = math.exp %347 : vector<2x128xf32>
    %cst_45 = arith.constant 1.000000e+00 : f32
    %349 = vector.broadcast %cst_45 : f32 to vector<2x128xf32>
    %350 = arith.addf %349, %348 : vector<2x128xf32>
    %351 = arith.divf %349, %350 : vector<2x128xf32>
    %352 = math.tanh %346 : vector<2x128xf32>
    %353 = vector.extract_strided_slice %351 {offsets = [0, 0], sizes = [2, 32], strides = [1, 1]} : vector<2x128xf32> to vector<2x32xf32>
    %354 = vector.extract_strided_slice %351 {offsets = [0, 32], sizes = [2, 32], strides = [1, 1]} : vector<2x128xf32> to vector<2x32xf32>
    %355 = vector.extract_strided_slice %352 {offsets = [0, 64], sizes = [2, 32], strides = [1, 1]} : vector<2x128xf32> to vector<2x32xf32>
    %356 = vector.extract_strided_slice %351 {offsets = [0, 96], sizes = [2, 32], strides = [1, 1]} : vector<2x128xf32> to vector<2x32xf32>
    %357 = arith.mulf %354, %287 : vector<2x32xf32>
    %358 = arith.mulf %353, %355 : vector<2x32xf32>
    %359 = arith.addf %357, %358 : vector<2x32xf32>
    %360 = math.tanh %359 : vector<2x32xf32>
    %361 = arith.mulf %356, %360 : vector<2x32xf32>
    %362 = tpu.concatenate %310, %327, %344, %361 in 1 : vector<2x32xf32>, vector<2x32xf32>, vector<2x32xf32>, vector<2x32xf32> -> vector<2x128xf32>
    %cst_46 = arith.constant dense<0.000000e+00> : vector<2x512xf32>
    %363 = tpu.matmul %362, %11, %cst_46 {dimension_numbers = #tpu.dot_dimension_numbers<[1], [0], [0], [1], [0, 0, 1, 1], [], []>} : vector<2x128xf32>, vector<128x512xf32>, vector<2x512xf32> -> vector<2x512xf32>
    %364 = vector.extract_strided_slice %363 {offsets = [0, 0], sizes = [2, 128], strides = [1, 1]} : vector<2x512xf32> to vector<2x128xf32>
    %365 = vector.extract_strided_slice %10 {offsets = [6, 0, 0], sizes = [1, 2, 128], strides = [1, 1, 1]} : vector<8x2x128xf32> to vector<1x2x128xf32>
    %366 = vector.shape_cast %365 : vector<1x2x128xf32> to vector<2x128xf32>
    %367 = arith.addf %364, %366 : vector<2x128xf32>
    %368 = arith.negf %367 : vector<2x128xf32>
    %369 = math.exp %368 : vector<2x128xf32>
    %cst_47 = arith.constant 1.000000e+00 : f32
    %370 = vector.broadcast %cst_47 : f32 to vector<2x128xf32>
    %371 = arith.addf %370, %369 : vector<2x128xf32>
    %372 = arith.divf %370, %371 : vector<2x128xf32>
    %373 = math.tanh %367 : vector<2x128xf32>
    %374 = vector.extract_strided_slice %372 {offsets = [0, 0], sizes = [2, 32], strides = [1, 1]} : vector<2x128xf32> to vector<2x32xf32>
    %375 = vector.extract_strided_slice %372 {offsets = [0, 32], sizes = [2, 32], strides = [1, 1]} : vector<2x128xf32> to vector<2x32xf32>
    %376 = vector.extract_strided_slice %373 {offsets = [0, 64], sizes = [2, 32], strides = [1, 1]} : vector<2x128xf32> to vector<2x32xf32>
    %377 = vector.extract_strided_slice %372 {offsets = [0, 96], sizes = [2, 32], strides = [1, 1]} : vector<2x128xf32> to vector<2x32xf32>
    %378 = arith.mulf %375, %308 : vector<2x32xf32>
    %379 = arith.mulf %374, %376 : vector<2x32xf32>
    %380 = arith.addf %378, %379 : vector<2x32xf32>
    %381 = math.tanh %380 : vector<2x32xf32>
    %382 = arith.mulf %377, %381 : vector<2x32xf32>
    %383 = vector.extract_strided_slice %363 {offsets = [0, 128], sizes = [2, 128], strides = [1, 1]} : vector<2x512xf32> to vector<2x128xf32>
    %384 = arith.addf %383, %15 : vector<2x128xf32>
    %385 = arith.negf %384 : vector<2x128xf32>
    %386 = math.exp %385 : vector<2x128xf32>
    %cst_48 = arith.constant 1.000000e+00 : f32
    %387 = vector.broadcast %cst_48 : f32 to vector<2x128xf32>
    %388 = arith.addf %387, %386 : vector<2x128xf32>
    %389 = arith.divf %387, %388 : vector<2x128xf32>
    %390 = math.tanh %384 : vector<2x128xf32>
    %391 = vector.extract_strided_slice %389 {offsets = [0, 0], sizes = [2, 32], strides = [1, 1]} : vector<2x128xf32> to vector<2x32xf32>
    %392 = vector.extract_strided_slice %389 {offsets = [0, 32], sizes = [2, 32], strides = [1, 1]} : vector<2x128xf32> to vector<2x32xf32>
    %393 = vector.extract_strided_slice %390 {offsets = [0, 64], sizes = [2, 32], strides = [1, 1]} : vector<2x128xf32> to vector<2x32xf32>
    %394 = vector.extract_strided_slice %389 {offsets = [0, 96], sizes = [2, 32], strides = [1, 1]} : vector<2x128xf32> to vector<2x32xf32>
    %395 = arith.mulf %392, %325 : vector<2x32xf32>
    %396 = arith.mulf %391, %393 : vector<2x32xf32>
    %397 = arith.addf %395, %396 : vector<2x32xf32>
    %398 = math.tanh %397 : vector<2x32xf32>
    %399 = arith.mulf %394, %398 : vector<2x32xf32>
    %400 = vector.extract_strided_slice %363 {offsets = [0, 256], sizes = [2, 128], strides = [1, 1]} : vector<2x512xf32> to vector<2x128xf32>
    %401 = arith.addf %400, %19 : vector<2x128xf32>
    %402 = arith.negf %401 : vector<2x128xf32>
    %403 = math.exp %402 : vector<2x128xf32>
    %cst_49 = arith.constant 1.000000e+00 : f32
    %404 = vector.broadcast %cst_49 : f32 to vector<2x128xf32>
    %405 = arith.addf %404, %403 : vector<2x128xf32>
    %406 = arith.divf %404, %405 : vector<2x128xf32>
    %407 = math.tanh %401 : vector<2x128xf32>
    %408 = vector.extract_strided_slice %406 {offsets = [0, 0], sizes = [2, 32], strides = [1, 1]} : vector<2x128xf32> to vector<2x32xf32>
    %409 = vector.extract_strided_slice %406 {offsets = [0, 32], sizes = [2, 32], strides = [1, 1]} : vector<2x128xf32> to vector<2x32xf32>
    %410 = vector.extract_strided_slice %407 {offsets = [0, 64], sizes = [2, 32], strides = [1, 1]} : vector<2x128xf32> to vector<2x32xf32>
    %411 = vector.extract_strided_slice %406 {offsets = [0, 96], sizes = [2, 32], strides = [1, 1]} : vector<2x128xf32> to vector<2x32xf32>
    %412 = arith.mulf %409, %342 : vector<2x32xf32>
    %413 = arith.mulf %408, %410 : vector<2x32xf32>
    %414 = arith.addf %412, %413 : vector<2x32xf32>
    %415 = math.tanh %414 : vector<2x32xf32>
    %416 = arith.mulf %411, %415 : vector<2x32xf32>
    %417 = vector.extract_strided_slice %363 {offsets = [0, 384], sizes = [2, 128], strides = [1, 1]} : vector<2x512xf32> to vector<2x128xf32>
    %418 = arith.addf %417, %23 : vector<2x128xf32>
    %419 = arith.negf %418 : vector<2x128xf32>
    %420 = math.exp %419 : vector<2x128xf32>
    %cst_50 = arith.constant 1.000000e+00 : f32
    %421 = vector.broadcast %cst_50 : f32 to vector<2x128xf32>
    %422 = arith.addf %421, %420 : vector<2x128xf32>
    %423 = arith.divf %421, %422 : vector<2x128xf32>
    %424 = math.tanh %418 : vector<2x128xf32>
    %425 = vector.extract_strided_slice %423 {offsets = [0, 0], sizes = [2, 32], strides = [1, 1]} : vector<2x128xf32> to vector<2x32xf32>
    %426 = vector.extract_strided_slice %423 {offsets = [0, 32], sizes = [2, 32], strides = [1, 1]} : vector<2x128xf32> to vector<2x32xf32>
    %427 = vector.extract_strided_slice %424 {offsets = [0, 64], sizes = [2, 32], strides = [1, 1]} : vector<2x128xf32> to vector<2x32xf32>
    %428 = vector.extract_strided_slice %423 {offsets = [0, 96], sizes = [2, 32], strides = [1, 1]} : vector<2x128xf32> to vector<2x32xf32>
    %429 = arith.mulf %426, %359 : vector<2x32xf32>
    %430 = arith.mulf %425, %427 : vector<2x32xf32>
    %431 = arith.addf %429, %430 : vector<2x32xf32>
    %432 = math.tanh %431 : vector<2x32xf32>
    %433 = arith.mulf %428, %432 : vector<2x32xf32>
    %434 = tpu.concatenate %382, %399, %416, %433 in 1 : vector<2x32xf32>, vector<2x32xf32>, vector<2x32xf32>, vector<2x32xf32> -> vector<2x128xf32>
    %cst_51 = arith.constant dense<0.000000e+00> : vector<2x512xf32>
    %435 = tpu.matmul %434, %11, %cst_51 {dimension_numbers = #tpu.dot_dimension_numbers<[1], [0], [0], [1], [0, 0, 1, 1], [], []>} : vector<2x128xf32>, vector<128x512xf32>, vector<2x512xf32> -> vector<2x512xf32>
    %436 = vector.extract_strided_slice %435 {offsets = [0, 0], sizes = [2, 128], strides = [1, 1]} : vector<2x512xf32> to vector<2x128xf32>
    %437 = vector.extract_strided_slice %10 {offsets = [7, 0, 0], sizes = [1, 2, 128], strides = [1, 1, 1]} : vector<8x2x128xf32> to vector<1x2x128xf32>
    %438 = vector.shape_cast %437 : vector<1x2x128xf32> to vector<2x128xf32>
    %439 = arith.addf %436, %438 : vector<2x128xf32>
    %440 = arith.negf %439 : vector<2x128xf32>
    %441 = math.exp %440 : vector<2x128xf32>
    %cst_52 = arith.constant 1.000000e+00 : f32
    %442 = vector.broadcast %cst_52 : f32 to vector<2x128xf32>
    %443 = arith.addf %442, %441 : vector<2x128xf32>
    %444 = arith.divf %442, %443 : vector<2x128xf32>
    %445 = math.tanh %439 : vector<2x128xf32>
    %446 = vector.extract_strided_slice %444 {offsets = [0, 0], sizes = [2, 32], strides = [1, 1]} : vector<2x128xf32> to vector<2x32xf32>
    %447 = vector.extract_strided_slice %444 {offsets = [0, 32], sizes = [2, 32], strides = [1, 1]} : vector<2x128xf32> to vector<2x32xf32>
    %448 = vector.extract_strided_slice %445 {offsets = [0, 64], sizes = [2, 32], strides = [1, 1]} : vector<2x128xf32> to vector<2x32xf32>
    %449 = vector.extract_strided_slice %444 {offsets = [0, 96], sizes = [2, 32], strides = [1, 1]} : vector<2x128xf32> to vector<2x32xf32>
    %450 = arith.mulf %447, %380 : vector<2x32xf32>
    %451 = arith.mulf %446, %448 : vector<2x32xf32>
    %452 = arith.addf %450, %451 : vector<2x32xf32>
    %453 = math.tanh %452 : vector<2x32xf32>
    %454 = arith.mulf %449, %453 : vector<2x32xf32>
    %455 = vector.extract_strided_slice %435 {offsets = [0, 128], sizes = [2, 128], strides = [1, 1]} : vector<2x512xf32> to vector<2x128xf32>
    %456 = arith.addf %455, %15 : vector<2x128xf32>
    %457 = arith.negf %456 : vector<2x128xf32>
    %458 = math.exp %457 : vector<2x128xf32>
    %cst_53 = arith.constant 1.000000e+00 : f32
    %459 = vector.broadcast %cst_53 : f32 to vector<2x128xf32>
    %460 = arith.addf %459, %458 : vector<2x128xf32>
    %461 = arith.divf %459, %460 : vector<2x128xf32>
    %462 = math.tanh %456 : vector<2x128xf32>
    %463 = vector.extract_strided_slice %461 {offsets = [0, 0], sizes = [2, 32], strides = [1, 1]} : vector<2x128xf32> to vector<2x32xf32>
    %464 = vector.extract_strided_slice %461 {offsets = [0, 32], sizes = [2, 32], strides = [1, 1]} : vector<2x128xf32> to vector<2x32xf32>
    %465 = vector.extract_strided_slice %462 {offsets = [0, 64], sizes = [2, 32], strides = [1, 1]} : vector<2x128xf32> to vector<2x32xf32>
    %466 = vector.extract_strided_slice %461 {offsets = [0, 96], sizes = [2, 32], strides = [1, 1]} : vector<2x128xf32> to vector<2x32xf32>
    %467 = arith.mulf %464, %397 : vector<2x32xf32>
    %468 = arith.mulf %463, %465 : vector<2x32xf32>
    %469 = arith.addf %467, %468 : vector<2x32xf32>
    %470 = math.tanh %469 : vector<2x32xf32>
    %471 = arith.mulf %466, %470 : vector<2x32xf32>
    %472 = vector.extract_strided_slice %435 {offsets = [0, 256], sizes = [2, 128], strides = [1, 1]} : vector<2x512xf32> to vector<2x128xf32>
    %473 = arith.addf %472, %19 : vector<2x128xf32>
    %474 = arith.negf %473 : vector<2x128xf32>
    %475 = math.exp %474 : vector<2x128xf32>
    %cst_54 = arith.constant 1.000000e+00 : f32
    %476 = vector.broadcast %cst_54 : f32 to vector<2x128xf32>
    %477 = arith.addf %476, %475 : vector<2x128xf32>
    %478 = arith.divf %476, %477 : vector<2x128xf32>
    %479 = math.tanh %473 : vector<2x128xf32>
    %480 = vector.extract_strided_slice %478 {offsets = [0, 0], sizes = [2, 32], strides = [1, 1]} : vector<2x128xf32> to vector<2x32xf32>
    %481 = vector.extract_strided_slice %478 {offsets = [0, 32], sizes = [2, 32], strides = [1, 1]} : vector<2x128xf32> to vector<2x32xf32>
    %482 = vector.extract_strided_slice %479 {offsets = [0, 64], sizes = [2, 32], strides = [1, 1]} : vector<2x128xf32> to vector<2x32xf32>
    %483 = vector.extract_strided_slice %478 {offsets = [0, 96], sizes = [2, 32], strides = [1, 1]} : vector<2x128xf32> to vector<2x32xf32>
    %484 = arith.mulf %481, %414 : vector<2x32xf32>
    %485 = arith.mulf %480, %482 : vector<2x32xf32>
    %486 = arith.addf %484, %485 : vector<2x32xf32>
    %487 = math.tanh %486 : vector<2x32xf32>
    %488 = arith.mulf %483, %487 : vector<2x32xf32>
    %489 = vector.extract_strided_slice %435 {offsets = [0, 384], sizes = [2, 128], strides = [1, 1]} : vector<2x512xf32> to vector<2x128xf32>
    %490 = arith.addf %489, %23 : vector<2x128xf32>
    %491 = arith.negf %490 : vector<2x128xf32>
    %492 = math.exp %491 : vector<2x128xf32>
    %cst_55 = arith.constant 1.000000e+00 : f32
    %493 = vector.broadcast %cst_55 : f32 to vector<2x128xf32>
    %494 = arith.addf %493, %492 : vector<2x128xf32>
    %495 = arith.divf %493, %494 : vector<2x128xf32>
    %496 = math.tanh %490 : vector<2x128xf32>
    %497 = vector.extract_strided_slice %495 {offsets = [0, 0], sizes = [2, 32], strides = [1, 1]} : vector<2x128xf32> to vector<2x32xf32>
    %498 = vector.extract_strided_slice %495 {offsets = [0, 32], sizes = [2, 32], strides = [1, 1]} : vector<2x128xf32> to vector<2x32xf32>
    %499 = vector.extract_strided_slice %496 {offsets = [0, 64], sizes = [2, 32], strides = [1, 1]} : vector<2x128xf32> to vector<2x32xf32>
    %500 = vector.extract_strided_slice %495 {offsets = [0, 96], sizes = [2, 32], strides = [1, 1]} : vector<2x128xf32> to vector<2x32xf32>
    %501 = arith.mulf %498, %431 : vector<2x32xf32>
    %502 = arith.mulf %497, %499 : vector<2x32xf32>
    %503 = arith.addf %501, %502 : vector<2x32xf32>
    %504 = math.tanh %503 : vector<2x32xf32>
    %505 = arith.mulf %500, %504 : vector<2x32xf32>
    %506 = tpu.concatenate %454, %471, %488, %505 in 1 : vector<2x32xf32>, vector<2x32xf32>, vector<2x32xf32>, vector<2x32xf32> -> vector<2x128xf32>
    %cst_56 = arith.constant dense<0.000000e+00> : vector<2x512xf32>
    %507 = tpu.matmul %506, %11, %cst_56 {dimension_numbers = #tpu.dot_dimension_numbers<[1], [0], [0], [1], [0, 0, 1, 1], [], []>} : vector<2x128xf32>, vector<128x512xf32>, vector<2x512xf32> -> vector<2x512xf32>
    %508 = vector.extract_strided_slice %507 {offsets = [0, 128], sizes = [2, 128], strides = [1, 1]} : vector<2x512xf32> to vector<2x128xf32>
    %509 = arith.addf %508, %15 : vector<2x128xf32>
    %510 = arith.negf %509 : vector<2x128xf32>
    %511 = math.exp %510 : vector<2x128xf32>
    %cst_57 = arith.constant 1.000000e+00 : f32
    %512 = vector.broadcast %cst_57 : f32 to vector<2x128xf32>
    %513 = arith.addf %512, %511 : vector<2x128xf32>
    %514 = arith.divf %512, %513 : vector<2x128xf32>
    %515 = math.tanh %509 : vector<2x128xf32>
    %516 = vector.extract_strided_slice %514 {offsets = [0, 0], sizes = [2, 32], strides = [1, 1]} : vector<2x128xf32> to vector<2x32xf32>
    %517 = vector.extract_strided_slice %514 {offsets = [0, 32], sizes = [2, 32], strides = [1, 1]} : vector<2x128xf32> to vector<2x32xf32>
    %518 = vector.extract_strided_slice %515 {offsets = [0, 64], sizes = [2, 32], strides = [1, 1]} : vector<2x128xf32> to vector<2x32xf32>
    %519 = vector.extract_strided_slice %514 {offsets = [0, 96], sizes = [2, 32], strides = [1, 1]} : vector<2x128xf32> to vector<2x32xf32>
    %520 = arith.mulf %517, %469 : vector<2x32xf32>
    %521 = arith.mulf %516, %518 : vector<2x32xf32>
    %522 = arith.addf %520, %521 : vector<2x32xf32>
    %523 = math.tanh %522 : vector<2x32xf32>
    %524 = arith.mulf %519, %523 : vector<2x32xf32>
    %525 = vector.extract_strided_slice %507 {offsets = [0, 256], sizes = [2, 128], strides = [1, 1]} : vector<2x512xf32> to vector<2x128xf32>
    %526 = arith.addf %525, %19 : vector<2x128xf32>
    %527 = arith.negf %526 : vector<2x128xf32>
    %528 = math.exp %527 : vector<2x128xf32>
    %cst_58 = arith.constant 1.000000e+00 : f32
    %529 = vector.broadcast %cst_58 : f32 to vector<2x128xf32>
    %530 = arith.addf %529, %528 : vector<2x128xf32>
    %531 = arith.divf %529, %530 : vector<2x128xf32>
    %532 = math.tanh %526 : vector<2x128xf32>
    %533 = vector.extract_strided_slice %531 {offsets = [0, 0], sizes = [2, 32], strides = [1, 1]} : vector<2x128xf32> to vector<2x32xf32>
    %534 = vector.extract_strided_slice %531 {offsets = [0, 32], sizes = [2, 32], strides = [1, 1]} : vector<2x128xf32> to vector<2x32xf32>
    %535 = vector.extract_strided_slice %532 {offsets = [0, 64], sizes = [2, 32], strides = [1, 1]} : vector<2x128xf32> to vector<2x32xf32>
    %536 = vector.extract_strided_slice %531 {offsets = [0, 96], sizes = [2, 32], strides = [1, 1]} : vector<2x128xf32> to vector<2x32xf32>
    %537 = arith.mulf %534, %486 : vector<2x32xf32>
    %538 = arith.mulf %533, %535 : vector<2x32xf32>
    %539 = arith.addf %537, %538 : vector<2x32xf32>
    %540 = math.tanh %539 : vector<2x32xf32>
    %541 = arith.mulf %536, %540 : vector<2x32xf32>
    %542 = vector.extract_strided_slice %507 {offsets = [0, 384], sizes = [2, 128], strides = [1, 1]} : vector<2x512xf32> to vector<2x128xf32>
    %543 = arith.addf %542, %23 : vector<2x128xf32>
    %544 = arith.negf %543 : vector<2x128xf32>
    %545 = math.exp %544 : vector<2x128xf32>
    %cst_59 = arith.constant 1.000000e+00 : f32
    %546 = vector.broadcast %cst_59 : f32 to vector<2x128xf32>
    %547 = arith.addf %546, %545 : vector<2x128xf32>
    %548 = arith.divf %546, %547 : vector<2x128xf32>
    %549 = math.tanh %543 : vector<2x128xf32>
    %550 = vector.extract_strided_slice %548 {offsets = [0, 0], sizes = [2, 32], strides = [1, 1]} : vector<2x128xf32> to vector<2x32xf32>
    %551 = vector.extract_strided_slice %548 {offsets = [0, 32], sizes = [2, 32], strides = [1, 1]} : vector<2x128xf32> to vector<2x32xf32>
    %552 = vector.extract_strided_slice %549 {offsets = [0, 64], sizes = [2, 32], strides = [1, 1]} : vector<2x128xf32> to vector<2x32xf32>
    %553 = vector.extract_strided_slice %548 {offsets = [0, 96], sizes = [2, 32], strides = [1, 1]} : vector<2x128xf32> to vector<2x32xf32>
    %554 = arith.mulf %551, %503 : vector<2x32xf32>
    %555 = arith.mulf %550, %552 : vector<2x32xf32>
    %556 = arith.addf %554, %555 : vector<2x32xf32>
    %557 = math.tanh %556 : vector<2x32xf32>
    %558 = arith.mulf %553, %557 : vector<2x32xf32>
    %559 = tpu.concatenate %454, %524, %541, %558 in 1 : vector<2x32xf32>, vector<2x32xf32>, vector<2x32xf32>, vector<2x32xf32> -> vector<2x128xf32>
    %cst_60 = arith.constant dense<0.000000e+00> : vector<2x512xf32>
    %560 = tpu.matmul %559, %11, %cst_60 {dimension_numbers = #tpu.dot_dimension_numbers<[1], [0], [0], [1], [0, 0, 1, 1], [], []>} : vector<2x128xf32>, vector<128x512xf32>, vector<2x512xf32> -> vector<2x512xf32>
    %561 = vector.extract_strided_slice %560 {offsets = [0, 256], sizes = [2, 128], strides = [1, 1]} : vector<2x512xf32> to vector<2x128xf32>
    %562 = arith.addf %561, %19 : vector<2x128xf32>
    %563 = arith.negf %562 : vector<2x128xf32>
    %564 = math.exp %563 : vector<2x128xf32>
    %cst_61 = arith.constant 1.000000e+00 : f32
    %565 = vector.broadcast %cst_61 : f32 to vector<2x128xf32>
    %566 = arith.addf %565, %564 : vector<2x128xf32>
    %567 = arith.divf %565, %566 : vector<2x128xf32>
    %568 = math.tanh %562 : vector<2x128xf32>
    %569 = vector.extract_strided_slice %567 {offsets = [0, 0], sizes = [2, 32], strides = [1, 1]} : vector<2x128xf32> to vector<2x32xf32>
    %570 = vector.extract_strided_slice %567 {offsets = [0, 32], sizes = [2, 32], strides = [1, 1]} : vector<2x128xf32> to vector<2x32xf32>
    %571 = vector.extract_strided_slice %568 {offsets = [0, 64], sizes = [2, 32], strides = [1, 1]} : vector<2x128xf32> to vector<2x32xf32>
    %572 = vector.extract_strided_slice %567 {offsets = [0, 96], sizes = [2, 32], strides = [1, 1]} : vector<2x128xf32> to vector<2x32xf32>
    %573 = arith.mulf %570, %539 : vector<2x32xf32>
    %574 = arith.mulf %569, %571 : vector<2x32xf32>
    %575 = arith.addf %573, %574 : vector<2x32xf32>
    %576 = math.tanh %575 : vector<2x32xf32>
    %577 = arith.mulf %572, %576 : vector<2x32xf32>
    %578 = vector.extract_strided_slice %560 {offsets = [0, 384], sizes = [2, 128], strides = [1, 1]} : vector<2x512xf32> to vector<2x128xf32>
    %579 = arith.addf %578, %23 : vector<2x128xf32>
    %580 = arith.negf %579 : vector<2x128xf32>
    %581 = math.exp %580 : vector<2x128xf32>
    %cst_62 = arith.constant 1.000000e+00 : f32
    %582 = vector.broadcast %cst_62 : f32 to vector<2x128xf32>
    %583 = arith.addf %582, %581 : vector<2x128xf32>
    %584 = arith.divf %582, %583 : vector<2x128xf32>
    %585 = math.tanh %579 : vector<2x128xf32>
    %586 = vector.extract_strided_slice %584 {offsets = [0, 0], sizes = [2, 32], strides = [1, 1]} : vector<2x128xf32> to vector<2x32xf32>
    %587 = vector.extract_strided_slice %584 {offsets = [0, 32], sizes = [2, 32], strides = [1, 1]} : vector<2x128xf32> to vector<2x32xf32>
    %588 = vector.extract_strided_slice %585 {offsets = [0, 64], sizes = [2, 32], strides = [1, 1]} : vector<2x128xf32> to vector<2x32xf32>
    %589 = vector.extract_strided_slice %584 {offsets = [0, 96], sizes = [2, 32], strides = [1, 1]} : vector<2x128xf32> to vector<2x32xf32>
    %590 = arith.mulf %587, %556 : vector<2x32xf32>
    %591 = arith.mulf %586, %588 : vector<2x32xf32>
    %592 = arith.addf %590, %591 : vector<2x32xf32>
    %593 = math.tanh %592 : vector<2x32xf32>
    %594 = arith.mulf %589, %593 : vector<2x32xf32>
    %595 = tpu.concatenate %454, %524, %577, %594 in 1 : vector<2x32xf32>, vector<2x32xf32>, vector<2x32xf32>, vector<2x32xf32> -> vector<2x128xf32>
    %cst_63 = arith.constant dense<0.000000e+00> : vector<2x512xf32>
    %596 = tpu.matmul %595, %11, %cst_63 {dimension_numbers = #tpu.dot_dimension_numbers<[1], [0], [0], [1], [0, 0, 1, 1], [], []>} : vector<2x128xf32>, vector<128x512xf32>, vector<2x512xf32> -> vector<2x512xf32>
    %597 = vector.extract_strided_slice %596 {offsets = [0, 384], sizes = [2, 128], strides = [1, 1]} : vector<2x512xf32> to vector<2x128xf32>
    %598 = arith.addf %597, %23 : vector<2x128xf32>
    %599 = arith.negf %598 : vector<2x128xf32>
    %600 = math.exp %599 : vector<2x128xf32>
    %cst_64 = arith.constant 1.000000e+00 : f32
    %601 = vector.broadcast %cst_64 : f32 to vector<2x128xf32>
    %602 = arith.addf %601, %600 : vector<2x128xf32>
    %603 = arith.divf %601, %602 : vector<2x128xf32>
    %604 = math.tanh %598 : vector<2x128xf32>
    %605 = vector.extract_strided_slice %603 {offsets = [0, 0], sizes = [2, 32], strides = [1, 1]} : vector<2x128xf32> to vector<2x32xf32>
    %606 = vector.extract_strided_slice %603 {offsets = [0, 32], sizes = [2, 32], strides = [1, 1]} : vector<2x128xf32> to vector<2x32xf32>
    %607 = vector.extract_strided_slice %604 {offsets = [0, 64], sizes = [2, 32], strides = [1, 1]} : vector<2x128xf32> to vector<2x32xf32>
    %608 = vector.extract_strided_slice %603 {offsets = [0, 96], sizes = [2, 32], strides = [1, 1]} : vector<2x128xf32> to vector<2x32xf32>
    %609 = arith.mulf %606, %592 : vector<2x32xf32>
    %610 = arith.mulf %605, %607 : vector<2x32xf32>
    %611 = arith.addf %609, %610 : vector<2x32xf32>
    %612 = math.tanh %611 : vector<2x32xf32>
    %613 = arith.mulf %608, %612 : vector<2x32xf32>
    %c0_65 = arith.constant 0 : index
    %c0_66 = arith.constant 0 : index
    %614 = vector.load %arg5[%c0_65, %c0_66] : memref<1x32xf32, #tpu.memory_space<vmem>>, vector<1x32xf32>
    %615 = vector.broadcast %614 : vector<1x32xf32> to vector<2x32xf32>
    %616 = arith.mulf %613, %615 : vector<2x32xf32>
    %cst_67 = arith.constant dense<0.000000e+00> : vector<2xf32>
    %617 = vector.multi_reduction <add>, %616, %cst_67 [1] : vector<2x32xf32> to vector<2xf32>
    %618 = vector.shape_cast %617 : vector<2xf32> to vector<2x1xf32>
    %c0_68 = arith.constant 0 : index
    %c0_69 = arith.constant 0 : index
    %619 = vector.load %arg6[%c0_68, %c0_69] : memref<1x1xf32, #tpu.memory_space<vmem>>, vector<1x1xf32>
    %620 = vector.broadcast %619 : vector<1x1xf32> to vector<2x1xf32>
    %621 = arith.addf %618, %620 : vector<2x1xf32>
    %c0_70 = arith.constant 0 : index
    %c0_71 = arith.constant 0 : index
    %622 = vector.load %arg7[%c0_70, %c0_71] : memref<2x1xf32, #tpu.memory_space<vmem>>, vector<2x1xf32>
    tpu.vector_store %arg7[%c0_70, %c0_71], %621 {strides = array<i32>} : memref<2x1xf32, #tpu.memory_space<vmem>>, vector<2x1xf32>,
    return
  }
  func.func @transform_0(%arg0: i32) -> (i32, i32, i32) {
    %c0_i32 = arith.constant 0 : i32
    %c0_i32_0 = arith.constant 0 : i32
    %c0_i32_1 = arith.constant 0 : i32
    %c0_i32_2 = arith.constant 0 : i32
    return %c0_i32, %c0_i32_0, %c0_i32_1 : i32, i32, i32
  }
  func.func @transform_1(%arg0: i32) -> (i32, i32) {
    %c0_i32 = arith.constant 0 : i32
    %c0_i32_0 = arith.constant 0 : i32
    %c0_i32_1 = arith.constant 0 : i32
    return %c0_i32, %c0_i32_0 : i32, i32
  }
  func.func @transform_2(%arg0: i32) -> (i32, i32) {
    %c0_i32 = arith.constant 0 : i32
    %c0_i32_0 = arith.constant 0 : i32
    %c0_i32_1 = arith.constant 0 : i32
    return %c0_i32, %c0_i32_0 : i32, i32
  }
  func.func @transform_3(%arg0: i32) -> (i32, i32, i32) {
    %c0_i32 = arith.constant 0 : i32
    %c0_i32_0 = arith.constant 0 : i32
    %c0_i32_1 = arith.constant 0 : i32
    %c0_i32_2 = arith.constant 0 : i32
    return %c0_i32, %c0_i32_0, %c0_i32_1 : i32, i32, i32
  }
  func.func @transform_4(%arg0: i32) -> (i32, i32) {
    %c0_i32 = arith.constant 0 : i32
    %c0_i32_0 = arith.constant 0 : i32
    %c0_i32_1 = arith.constant 0 : i32
    return %c0_i32, %c0_i32_0 : i32, i32
  }
  func.func @transform_5(%arg0: i32) -> (i32, i32) {
    %c0_i32 = arith.constant 0 : i32
    %c0_i32_0 = arith.constant 0 : i32
    %c0_i32_1 = arith.constant 0 : i32
    return %c0_i32, %c0_i32_0 : i32, i32
  }
  func.func @transform_6(%arg0: i32) -> (i32, i32) {
    %c0_i32 = arith.constant 0 : i32
    %c0_i32_0 = arith.constant 0 : i32
    %c0_i32_1 = arith.constant 0 : i32
    return %c0_i32, %c0_i32_0 : i32, i32
  }
}

</mosaic_0001>

<llo_original>
// kernel: tpu_custom_call.1
$region0: #{tpu_custom_call.1}
  #allocation0 [shape = 'u32[]', space=smem, size = 0x4, offset = 0x4, fixed_abs, tag = 'smem constant byte address 0x4 - core index']
  #allocation1 [shape = 'u32[144,128]{1,0:T(1,128)}', space=vmem, size = 0x12000, scoped, tag = 'internal scratch']
  #allocation2 [shape = 'f32[1,1]{1,0:T(1,128)S(1)}', space=vmem, size = 0x200, scoped, tag = 'scoped memory for tpu_custom_call.1']
  %s0 = inlined_call_operand.vmem [shape: f32[8,2,1], index: 0, kind: input, shape index: {}]
  %s1 = inlined_call_operand.vmem [shape: f32[1,128], index: 1, kind: input, shape index: {}]
  %s2 = inlined_call_operand.hbm [shape: f32[128,512], index: 2, kind: input, shape index: {}]
  %s3 = inlined_call_operand.vmem [shape: f32[4,1,128], index: 3, kind: input, shape index: {}]
  %s4 = inlined_call_operand.vmem [shape: f32[1,32], index: 4, kind: input, shape index: {}]
  %s5 = inlined_call_operand.<no memory space> [shape: f32[1,1], index: 5, kind: input, shape index: {}]
  %s6 = inlined_call_operand.vmem [shape: f32[2,1], index: 6, kind: output, shape index: {}]
  %s7 = sld [smem:[#allocation0]]
  $region38: #{tpu_custom_call.1} parent=0
    _
  %s9 = ssub.s32 1, %s7
  %s10 = scalar_select 0, %s9, %s7
  %v11 = vstv %s5
  %12 = vst [vmem:[#allocation2] sm:$0x1] %v11
  $region1: #{tpu_custom_call.1} parent=0
    #allocation3 [shape = 'u8[262144]{0}', space=vmem, size = 0x40000, scoped, tag = 'input window, operand 2, single buffered']
    #allocation4 [shape = 's32[1]{0}', space=sflag, size = 0x4, scoped, tag = 'scoped memory for tpu_custom_call.1']
    %13 = vsyncpa [#allocation4], 0
    // Predicated region
    $region2: #{tpu_custom_call.1} parent=1 // pred_check
      _
    $region3: #{tpu_custom_call.1} parent=1 // pred_check_branch
      %15 = sbr.rel (0) target = $region5
    $region4: #{tpu_custom_call.1} parent=1 // pred_region
      _
    $region5: #{tpu_custom_call.1} parent=1 // pred_fallthru
      _
    // Predicated region
    $region6: #{tpu_custom_call.1} parent=1 // pred_check
      _
    $region7: #{tpu_custom_call.1} parent=1 // pred_check_branch
      %17 = sbr.rel (0) target = $region9
    $region8: #{tpu_custom_call.1} parent=1 // pred_region
      _
    $region9: #{tpu_custom_call.1} parent=1 // pred_fallthru
      _
    // Predicated region
    $region10: #{tpu_custom_call.1} parent=1 // pred_check
      _
    $region11: #{tpu_custom_call.1} parent=1 // pred_check_branch
      %19 = sbr.rel (0) target = $region13
    $region12: #{tpu_custom_call.1} parent=1 // pred_region
      %s21 = ssub.s32 8192, 8192
      %22 = vsyncadd [#allocation4], %s21
      %s23 = sshll.u32 [#allocation3], 4
      %s24 = int_to_ptr.vmem [resolvable:$true] %s23
      %29 = dma.hbm_to_vmem [thread:$0]  %s2, 8192, %s24, [#allocation4], 512, 512, 32
    $region13: #{tpu_custom_call.1} parent=1 // pred_fallthru
      _
    // Predicated region
    $region14: #{tpu_custom_call.1} parent=1 // pred_check
      _
    $region15: #{tpu_custom_call.1} parent=1 // pred_check_branch
      %31 = sbr.rel (0) target = $region17
    $region16: #{tpu_custom_call.1} parent=1 // pred_region
      _
    $region17: #{tpu_custom_call.1} parent=1 // pred_fallthru
      _
    // Predicated region
    $region18: #{tpu_custom_call.1} parent=1 // pred_check
      _
    $region19: #{tpu_custom_call.1} parent=1 // pred_check_branch
      %33 = sbr.rel (0) target = $region21
    $region20: #{tpu_custom_call.1} parent=1 // pred_region
      _
    $region21: #{tpu_custom_call.1} parent=1 // pred_fallthru
      _
    // Predicated region
    $region22: #{tpu_custom_call.1} parent=1 // pred_check
      _
    $region23: #{tpu_custom_call.1} parent=1 // pred_check_branch
      %35 = sbr.rel (0) target = $region25
    $region24: #{tpu_custom_call.1} parent=1 // pred_region
      _
    $region25: #{tpu_custom_call.1} parent=1 // pred_fallthru
      _
    // Predicated region
    $region26: #{tpu_custom_call.1} parent=1 // pred_check
      _
    $region27: #{tpu_custom_call.1} parent=1 // pred_check_branch
      %37 = sbr.rel (0) target = $region29
    $region28: #{tpu_custom_call.1} parent=1 // pred_region
      %38 = dma.done [#allocation4], 8192
    $region29: #{tpu_custom_call.1} parent=1 // pred_fallthru
      _
    %v39 = vld [vmem:[%s0] sm:$0x3]
    %v40 = vld [vmem:[%s0 + $0x2] sm:$0x3]
    %v41 = vld [vmem:[%s0 + $0x4] sm:$0x3]
    %v42 = vld [vmem:[%s0 + $0x6] sm:$0x3]
    %v43 = vld [vmem:[%s0 + $0x8] sm:$0x3]
    %v44 = vld [vmem:[%s0 + $0xa] sm:$0x3]
    %v45 = vld [vmem:[%s0 + $0xc] sm:$0x3]
    %v46 = vld [vmem:[%s0 + $0xe] sm:$0x3]
    %v47 = vld [vmem:[%s1] sm:$0x1]
    %49 = vset.pattern.permute.xlu0 0
    %50 = vperm.xlu0 %49, %v39
    %v51 = vpop.permute.xlu0 %50
    %54 = vset.pattern.permute.xlu0 0
    %55 = vperm.xlu0 %54, %v40
    %v56 = vpop.permute.xlu0 %55
    %59 = vset.pattern.permute.xlu0 0
    %60 = vperm.xlu0 %59, %v41
    %v61 = vpop.permute.xlu0 %60
    %64 = vset.pattern.permute.xlu0 0
    %65 = vperm.xlu0 %64, %v42
    %v66 = vpop.permute.xlu0 %65
    %69 = vset.pattern.permute.xlu0 0
    %70 = vperm.xlu0 %69, %v43
    %v71 = vpop.permute.xlu0 %70
    %74 = vset.pattern.permute.xlu0 0
    %75 = vperm.xlu0 %74, %v44
    %v76 = vpop.permute.xlu0 %75
    %79 = vset.pattern.permute.xlu0 0
    %80 = vperm.xlu0 %79, %v45
    %v81 = vpop.permute.xlu0 %80
    %84 = vset.pattern.permute.xlu0 0
    %85 = vperm.xlu0 %84, %v46
    %v86 = vpop.permute.xlu0 %85
    %v89 = vlaneseq
    %v90 = vshrl.u32 %v89, 7
    %v91 = vsub.s32 0, %v90
    %v92 = vrot.slane %v47, %v91
    %v94 = vmul.f32 %v51, %v92
    %v95 = vmul.f32 %v56, %v92
    %v96 = vmul.f32 %v61, %v92
    %v97 = vmul.f32 %v66, %v92
    %v98 = vmul.f32 %v71, %v92
    %v99 = vmul.f32 %v76, %v92
    %v100 = vmul.f32 %v81, %v92
    %v101 = vmul.f32 %v86, %v92
    %v102 = vld [vmem:[%s3] sm:$0x1]
    %v104 = vlaneseq
    %v105 = vshrl.u32 %v104, 7
    %v106 = vsub.s32 0, %v105
    %v107 = vrot.slane %v102, %v106
    %v109 = vadd.f32 %v94, %v107
    %v110 = vadd.f32 %v95, %v107
    %v111 = vadd.f32 %v96, %v107
    %v112 = vadd.f32 %v97, %v107
    %v113 = vadd.f32 %v98, %v107
    %v114 = vadd.f32 %v99, %v107
    %v115 = vadd.f32 %v100, %v107
    %v116 = vadd.f32 %v101, %v107
    %v117 = vld [vmem:[#allocation3] sm:$0xff]
    %v118 = vld [vmem:[#allocation3 + $0x8] sm:$0xff]
    %v119 = vld [vmem:[#allocation3 + $0x10] sm:$0xff]
    %v120 = vld [vmem:[#allocation3 + $0x18] sm:$0xff]
    %v121 = vld [vmem:[#allocation3 + $0x20] sm:$0xff]
    %v122 = vld [vmem:[#allocation3 + $0x28] sm:$0xff]
    %v123 = vld [vmem:[#allocation3 + $0x30] sm:$0xff]
    %v124 = vld [vmem:[#allocation3 + $0x38] sm:$0xff]
    %v125 = vld [vmem:[#allocation3 + $0x40] sm:$0xff]
    %v126 = vld [vmem:[#allocation3 + $0x48] sm:$0xff]
    %v127 = vld [vmem:[#allocation3 + $0x50] sm:$0xff]
    %v128 = vld [vmem:[#allocation3 + $0x58] sm:$0xff]
    %v129 = vld [vmem:[#allocation3 + $0x60] sm:$0xff]
    %v130 = vld [vmem:[#allocation3 + $0x68] sm:$0xff]
    %v131 = vld [vmem:[#allocation3 + $0x70] sm:$0xff]
    %v132 = vld [vmem:[#allocation3 + $0x78] sm:$0xff]
    %v133 = vld [vmem:[#allocation3 + $0x80] sm:$0xff]
    %v134 = vld [vmem:[#allocation3 + $0x88] sm:$0xff]
    %v135 = vld [vmem:[#allocation3 + $0x90] sm:$0xff]
    %v136 = vld [vmem:[#allocation3 + $0x98] sm:$0xff]
    %v137 = vld [vmem:[#allocation3 + $0xa0] sm:$0xff]
    %v138 = vld [vmem:[#allocation3 + $0xa8] sm:$0xff]
    %v139 = vld [vmem:[#allocation3 + $0xb0] sm:$0xff]
    %v140 = vld [vmem:[#allocation3 + $0xb8] sm:$0xff]
    %v141 = vld [vmem:[#allocation3 + $0xc0] sm:$0xff]
    %v142 = vld [vmem:[#allocation3 + $0xc8] sm:$0xff]
    %v143 = vld [vmem:[#allocation3 + $0xd0] sm:$0xff]
    %v144 = vld [vmem:[#allocation3 + $0xd8] sm:$0xff]
    %v145 = vld [vmem:[#allocation3 + $0xe0] sm:$0xff]
    %v146 = vld [vmem:[#allocation3 + $0xe8] sm:$0xff]
    %v147 = vld [vmem:[#allocation3 + $0xf0] sm:$0xff]
    %v148 = vld [vmem:[#allocation3 + $0xf8] sm:$0xff]
    %v149 = vld [vmem:[#allocation3 + $0x100] sm:$0xff]
    %v150 = vld [vmem:[#allocation3 + $0x108] sm:$0xff]
    %v151 = vld [vmem:[#allocation3 + $0x110] sm:$0xff]
    %v152 = vld [vmem:[#allocation3 + $0x118] sm:$0xff]
    %v153 = vld [vmem:[#allocation3 + $0x120] sm:$0xff]
    %v154 = vld [vmem:[#allocation3 + $0x128] sm:$0xff]
    %v155 = vld [vmem:[#allocation3 + $0x130] sm:$0xff]
    %v156 = vld [vmem:[#allocation3 + $0x138] sm:$0xff]
    %v157 = vld [vmem:[#allocation3 + $0x140] sm:$0xff]
    %v158 = vld [vmem:[#allocation3 + $0x148] sm:$0xff]
    %v159 = vld [vmem:[#allocation3 + $0x150] sm:$0xff]
    %v160 = vld [vmem:[#allocation3 + $0x158] sm:$0xff]
    %v161 = vld [vmem:[#allocation3 + $0x160] sm:$0xff]
    %v162 = vld [vmem:[#allocation3 + $0x168] sm:$0xff]
    %v163 = vld [vmem:[#allocation3 + $0x170] sm:$0xff]
    %v164 = vld [vmem:[#allocation3 + $0x178] sm:$0xff]
    %v165 = vld [vmem:[#allocation3 + $0x180] sm:$0xff]
    %v166 = vld [vmem:[#allocation3 + $0x188] sm:$0xff]
    %v167 = vld [vmem:[#allocation3 + $0x190] sm:$0xff]
    %v168 = vld [vmem:[#allocation3 + $0x198] sm:$0xff]
    %v169 = vld [vmem:[#allocation3 + $0x1a0] sm:$0xff]
    %v170 = vld [vmem:[#allocation3 + $0x1a8] sm:$0xff]
    %v171 = vld [vmem:[#allocation3 + $0x1b0] sm:$0xff]
    %v172 = vld [vmem:[#allocation3 + $0x1b8] sm:$0xff]
    %v173 = vld [vmem:[#allocation3 + $0x1c0] sm:$0xff]
    %v174 = vld [vmem:[#allocation3 + $0x1c8] sm:$0xff]
    %v175 = vld [vmem:[#allocation3 + $0x1d0] sm:$0xff]
    %v176 = vld [vmem:[#allocation3 + $0x1d8] sm:$0xff]
    %v177 = vld [vmem:[#allocation3 + $0x1e0] sm:$0xff]
    %v178 = vld [vmem:[#allocation3 + $0x1e8] sm:$0xff]
    %v179 = vld [vmem:[#allocation3 + $0x1f0] sm:$0xff]
    %v180 = vld [vmem:[#allocation3 + $0x1f8] sm:$0xff]
    %s181 = scalar_lea.vmem %s3, 1
    %v182 = vld [vmem:[%s181] sm:$0x1]
    %v184 = vlaneseq
    %v185 = vshrl.u32 %v184, 7
    %v186 = vsub.s32 0, %v185
    %v187 = vrot.slane %v182, %v186
    %s189 = scalar_lea.vmem %s3, 2
    %v190 = vld [vmem:[%s189] sm:$0x1]
    %v192 = vlaneseq
    %v193 = vshrl.u32 %v192, 7
    %v194 = vsub.s32 0, %v193
    %v195 = vrot.slane %v190, %v194
    %s197 = scalar_lea.vmem %s3, 3
    %v198 = vld [vmem:[%s197] sm:$0x1]
    %v200 = vlaneseq
    %v201 = vshrl.u32 %v200, 7
    %v202 = vsub.s32 0, %v201
    %v203 = vrot.slane %v198, %v202
    %205 = vmatprep.subr.mxu0 %v178
    %206 = vmatpush1.msra.mxu0 %v177
    %207 = vmatprep.subr.mxu0 %v174
    %208 = vmatpush1.msra.mxu0 %v173
    %209 = vmatprep.subr.mxu0 %v170
    %210 = vmatpush1.msra.mxu0 %v169
    %211 = vmatprep.subr.mxu0 %v166
    %212 = vmatpush1.msra.mxu0 %v165
    %213 = vmatprep.subr.mxu0 %v162
    %214 = vmatpush1.msra.mxu0 %v161
    %215 = vmatprep.subr.mxu0 %v158
    %216 = vmatpush1.msra.mxu0 %v157
    %217 = vmatprep.subr.mxu0 %v154
    %218 = vmatpush1.msra.mxu0 %v153
    %219 = vmatprep.subr.mxu0 %v150
    %220 = vmatpush1.msra.mxu0 %v149
    %221 = vmatprep.subr.mxu0 %v146
    %222 = vmatpush1.msra.mxu0 %v145
    %223 = vmatprep.subr.mxu0 %v142
    %224 = vmatpush1.msra.mxu0 %v141
    %225 = vmatprep.subr.mxu0 %v138
    %226 = vmatpush1.msra.mxu0 %v137
    %227 = vmatprep.subr.mxu0 %v134
    %228 = vmatpush1.msra.mxu0 %v133
    %229 = vmatprep.subr.mxu0 %v130
    %230 = vmatpush1.msra.mxu0 %v129
    %231 = vmatprep.subr.mxu0 %v126
    %232 = vmatpush1.msra.mxu0 %v125
    %233 = vmatprep.subr.mxu0 %v122
    %234 = vmatpush1.msra.mxu0 %v121
    %235 = vmatprep.subr.mxu0 %v118
    %236 = vmatpush1.msra.mxu0 %v117
    %237 = vmatprep.subr.mxu0 0.0
    %238 = vmatpush2.msra.mxu0 0.0
    %239 = vmatprep.subr.mxu0 0.0
    %240 = vmatpush2.msra.mxu0 0.0
    %241 = vmatprep.subr.mxu0 0.0
    %242 = vmatpush2.msra.mxu0 0.0
    %243 = vmatprep.subr.mxu0 0.0
    %244 = vmatpush2.msra.mxu0 0.0
    %245 = vmatprep.subr.mxu0 0.0
    %246 = vmatpush2.msra.mxu0 0.0
    %247 = vmatprep.subr.mxu0 0.0
    %248 = vmatpush2.msra.mxu0 0.0
    %249 = vmatprep.subr.mxu0 0.0
    %250 = vmatpush2.msra.mxu0 0.0
    %251 = vmatprep.subr.mxu0 0.0
    %252 = vmatpush2.msra.mxu0 0.0
    %253 = vmatprep.subr.mxu0 0.0
    %254 = vmatpush2.msra.mxu0 0.0
    %255 = vmatprep.subr.mxu0 0.0
    %256 = vmatpush2.msra.mxu0 0.0
    %257 = vmatprep.subr.mxu0 0.0
    %258 = vmatpush2.msra.mxu0 0.0
    %259 = vmatprep.subr.mxu0 0.0
    %260 = vmatpush2.msra.mxu0 0.0
    %261 = vmatprep.subr.mxu0 0.0
    %262 = vmatpush2.msra.mxu0 0.0
    %263 = vmatprep.subr.mxu0 0.0
    %264 = vmatpush2.msra.mxu0 0.0
    %265 = vmatprep.subr.mxu0 0.0
    %266 = vmatpush2.msra.mxu0 0.0
    %267 = vmatprep.subr.mxu0 0.0
    %268 = vmatpush2.msra.mxu0 0.0
    %269 = vmatprep.mubr.f32.mxu0 0.0
    %270 = vmatmul.mubr.f32.gmra.mxu0 0.0
    %v271 = vpop.f32.mrf.mxu0
    %v272 = vadd.f32 0.0, %v271
    %v273 = vpop.f32.mrf.mxu0
    %274 = vdwg.mxu0
    %v275 = vadd.f32 %v272, %v109
    %v276 = vxor.u32 %v275, 2147483648
    %v277 = vmul.f32 %v276, 1.442695
    %v278 = vpow.pop %v277
    %v279 = vadd.f32 %v278, 1.0
    %v280 = vrcp.pop %v279
    %v281 = vmul.f32 1.0, %v280
    %v282 = vtanh.pop %v275
    %v283 = vmul.f32 %v281, 0.0
    %285 = vrot.lane.b32.xlu0 %v282, 64
    %v286 = vpop.permute.xlu0 %285
    %v288 = vmul.f32 %v281, %v286
    %290 = vrot.lane.b32.xlu0 %v288, 32
    %v291 = vpop.permute.xlu0 %290
    %v293 = vadd.f32 %v283, %v291
    %v294 = vtanh.pop %v293
    %296 = vrot.lane.b32.xlu0 %v294, 64
    %v297 = vpop.permute.xlu0 %296
    %v299 = vmul.f32 %v281, %v297
    %301 = vrot.lane.b32.xlu0 %v299, 32
    %v302 = vpop.permute.xlu0 %301
    %vm304 = vcmask 261120
    %v305 = vsel %vm304, %v302, 0.0
    %vm306 = vcmask 523264
    %v307 = vsel %vm306, %v305, 0.0
    %vm308 = vcmask 785408
    %v309 = vsel %vm308, %v307, 0.0
    %310 = vmatprep.subr.mxu0 %v178
    %311 = vmatpush1.msra.mxu0 %v177
    %312 = vmatprep.subr.mxu0 %v174
    %313 = vmatpush1.msra.mxu0 %v173
    %314 = vmatprep.subr.mxu0 %v170
    %315 = vmatpush1.msra.mxu0 %v169
    %316 = vmatprep.subr.mxu0 %v166
    %317 = vmatpush1.msra.mxu0 %v165
    %318 = vmatprep.subr.mxu0 %v162
    %319 = vmatpush1.msra.mxu0 %v161
    %320 = vmatprep.subr.mxu0 %v158
    %321 = vmatpush1.msra.mxu0 %v157
    %322 = vmatprep.subr.mxu0 %v154
    %323 = vmatpush1.msra.mxu0 %v153
    %324 = vmatprep.subr.mxu0 %v150
    %325 = vmatpush1.msra.mxu0 %v149
    %326 = vmatprep.subr.mxu0 %v146
    %327 = vmatpush1.msra.mxu0 %v145
    %328 = vmatprep.subr.mxu0 %v142
    %329 = vmatpush1.msra.mxu0 %v141
    %330 = vmatprep.subr.mxu0 %v138
    %331 = vmatpush1.msra.mxu0 %v137
    %332 = vmatprep.subr.mxu0 %v134
    %333 = vmatpush1.msra.mxu0 %v133
    %334 = vmatprep.subr.mxu0 %v130
    %335 = vmatpush1.msra.mxu0 %v129
    %336 = vmatprep.subr.mxu0 %v126
    %337 = vmatpush1.msra.mxu0 %v125
    %338 = vmatprep.subr.mxu0 %v122
    %339 = vmatpush1.msra.mxu0 %v121
    %340 = vmatprep.subr.mxu0 %v118
    %341 = vmatpush1.msra.mxu0 %v117
    %342 = vmatprep.subr.mxu0 0.0
    %343 = vmatpush2.msra.mxu0 0.0
    %344 = vmatprep.subr.mxu0 0.0
    %345 = vmatpush2.msra.mxu0 0.0
    %346 = vmatprep.subr.mxu0 0.0
    %347 = vmatpush2.msra.mxu0 0.0
    %348 = vmatprep.subr.mxu0 0.0
    %349 = vmatpush2.msra.mxu0 0.0
    %350 = vmatprep.subr.mxu0 0.0
    %351 = vmatpush2.msra.mxu0 0.0
    %352 = vmatprep.subr.mxu0 0.0
    %353 = vmatpush2.msra.mxu0 0.0
    %354 = vmatprep.subr.mxu0 0.0
    %355 = vmatpush2.msra.mxu0 0.0
    %356 = vmatprep.subr.mxu0 0.0
    %357 = vmatpush2.msra.mxu0 0.0
    %358 = vmatprep.subr.mxu0 0.0
    %359 = vmatpush2.msra.mxu0 0.0
    %360 = vmatprep.subr.mxu0 0.0
    %361 = vmatpush2.msra.mxu0 0.0
    %362 = vmatprep.subr.mxu0 0.0
    %363 = vmatpush2.msra.mxu0 0.0
    %364 = vmatprep.subr.mxu0 0.0
    %365 = vmatpush2.msra.mxu0 0.0
    %366 = vmatprep.subr.mxu0 0.0
    %367 = vmatpush2.msra.mxu0 0.0
    %368 = vmatprep.subr.mxu0 0.0
    %369 = vmatpush2.msra.mxu0 0.0
    %370 = vmatprep.subr.mxu0 0.0
    %371 = vmatpush2.msra.mxu0 0.0
    %372 = vmatprep.subr.mxu0 0.0
    %373 = vmatpush2.msra.mxu0 0.0
    %374 = vmatprep.mubr.f32.mxu0 0.0
    %375 = vmatmul.mubr.f32.gmra.mxu0 %v309
    %v376 = vpop.f32.mrf.mxu0
    %v377 = vadd.f32 0.0, %v376
    %v378 = vpop.f32.mrf.mxu0
    %v379 = vadd.f32 0.0, %v378
    %380 = vdwg.mxu0
    %v381 = vadd.f32 %v377, %v110
    %v382 = vxor.u32 %v381, 2147483648
    %v383 = vmul.f32 %v382, 1.442695
    %v384 = vpow.pop %v383
    %v385 = vadd.f32 %v384, 1.0
    %v386 = vrcp.pop %v385
    %v387 = vmul.f32 1.0, %v386
    %v388 = vtanh.pop %v381
    %v389 = vmul.f32 %v387, %v293
    %391 = vrot.lane.b32.xlu0 %v388, 64
    %v392 = vpop.permute.xlu0 %391
    %v394 = vmul.f32 %v387, %v392
    %396 = vrot.lane.b32.xlu0 %v394, 32
    %v397 = vpop.permute.xlu0 %396
    %v399 = vadd.f32 %v389, %v397
    %v400 = vtanh.pop %v399
    %402 = vrot.lane.b32.xlu0 %v400, 64
    %v403 = vpop.permute.xlu0 %402
    %v405 = vmul.f32 %v387, %v403
    %v406 = vadd.f32 %v379, %v187
    %v407 = vxor.u32 %v406, 2147483648
    %v408 = vmul.f32 %v407, 1.442695
    %v409 = vpow.pop %v408
    %v410 = vadd.f32 %v409, 1.0
    %v411 = vrcp.pop %v410
    %v412 = vmul.f32 1.0, %v411
    %v413 = vtanh.pop %v406
    %v414 = vmul.f32 %v412, 0.0
    %416 = vrot.lane.b32.xlu0 %v413, 64
    %v417 = vpop.permute.xlu0 %416
    %v419 = vmul.f32 %v412, %v417
    %421 = vrot.lane.b32.xlu0 %v419, 32
    %v422 = vpop.permute.xlu0 %421
    %v424 = vadd.f32 %v414, %v422
    %v425 = vtanh.pop %v424
    %427 = vrot.lane.b32.xlu0 %v425, 64
    %v428 = vpop.permute.xlu0 %427
    %v430 = vmul.f32 %v412, %v428
    %432 = vrot.lane.b32.xlu0 %v405, 32
    %v433 = vpop.permute.xlu0 %432
    %436 = vrot.lane.b32.xlu0 %v430, 64
    %v437 = vpop.permute.xlu0 %436
    %v439 = vsel %vm304, %v433, %v437
    %v440 = vsel %vm306, %v439, 0.0
    %v441 = vsel %vm308, %v440, 0.0
    %442 = vmatprep.subr.mxu0 %v178
    %443 = vmatpush1.msra.mxu0 %v177
    %444 = vmatprep.subr.mxu0 %v174
    %445 = vmatpush1.msra.mxu0 %v173
    %446 = vmatprep.subr.mxu0 %v170
    %447 = vmatpush1.msra.mxu0 %v169
    %448 = vmatprep.subr.mxu0 %v166
    %449 = vmatpush1.msra.mxu0 %v165
    %450 = vmatprep.subr.mxu0 %v162
    %451 = vmatpush1.msra.mxu0 %v161
    %452 = vmatprep.subr.mxu0 %v158
    %453 = vmatpush1.msra.mxu0 %v157
    %454 = vmatprep.subr.mxu0 %v154
    %455 = vmatpush1.msra.mxu0 %v153
    %456 = vmatprep.subr.mxu0 %v150
    %457 = vmatpush1.msra.mxu0 %v149
    %458 = vmatprep.subr.mxu0 %v146
    %459 = vmatpush1.msra.mxu0 %v145
    %460 = vmatprep.subr.mxu0 %v142
    %461 = vmatpush1.msra.mxu0 %v141
    %462 = vmatprep.subr.mxu0 %v138
    %463 = vmatpush1.msra.mxu0 %v137
    %464 = vmatprep.subr.mxu0 %v134
    %465 = vmatpush1.msra.mxu0 %v133
    %466 = vmatprep.subr.mxu0 %v130
    %467 = vmatpush1.msra.mxu0 %v129
    %468 = vmatprep.subr.mxu0 %v126
    %469 = vmatpush1.msra.mxu0 %v125
    %470 = vmatprep.subr.mxu0 %v122
    %471 = vmatpush1.msra.mxu0 %v121
    %472 = vmatprep.subr.mxu0 %v118
    %473 = vmatpush1.msra.mxu0 %v117
    %474 = vmatprep.subr.mxu0 0.0
    %475 = vmatpush2.msra.mxu0 0.0
    %476 = vmatprep.subr.mxu0 0.0
    %477 = vmatpush2.msra.mxu0 0.0
    %478 = vmatprep.subr.mxu0 0.0
    %479 = vmatpush2.msra.mxu0 0.0
    %480 = vmatprep.subr.mxu0 0.0
    %481 = vmatpush2.msra.mxu0 0.0
    %482 = vmatprep.subr.mxu0 0.0
    %483 = vmatpush2.msra.mxu0 0.0
    %484 = vmatprep.subr.mxu0 0.0
    %485 = vmatpush2.msra.mxu0 0.0
    %486 = vmatprep.subr.mxu0 0.0
    %487 = vmatpush2.msra.mxu0 0.0
    %488 = vmatprep.subr.mxu0 0.0
    %489 = vmatpush2.msra.mxu0 0.0
    %490 = vmatprep.subr.mxu0 0.0
    %491 = vmatpush2.msra.mxu0 0.0
    %492 = vmatprep.subr.mxu0 0.0
    %493 = vmatpush2.msra.mxu0 0.0
    %494 = vmatprep.subr.mxu0 0.0
    %495 = vmatpush2.msra.mxu0 0.0
    %496 = vmatprep.subr.mxu0 0.0
    %497 = vmatpush2.msra.mxu0 0.0
    %498 = vmatprep.subr.mxu0 0.0
    %499 = vmatpush2.msra.mxu0 0.0
    %500 = vmatprep.subr.mxu0 0.0
    %501 = vmatpush2.msra.mxu0 0.0
    %502 = vmatprep.subr.mxu0 0.0
    %503 = vmatpush2.msra.mxu0 0.0
    %504 = vmatprep.subr.mxu0 0.0
    %505 = vmatpush2.msra.mxu0 0.0
    %506 = vmatprep.mubr.f32.mxu0 0.0
    %507 = vmatmul.mubr.f32.gmra.mxu0 %v441
    %v508 = vpop.f32.mrf.mxu0
    %v509 = vadd.f32 0.0, %v508
    %v510 = vpop.f32.mrf.mxu0
    %v511 = vadd.f32 0.0, %v510
    %512 = vdwg.mxu0
    %513 = vmatprep.subr.mxu0 %v180
    %514 = vmatpush1.msra.mxu0 %v179
    %515 = vmatprep.subr.mxu0 %v176
    %516 = vmatpush1.msra.mxu0 %v175
    %517 = vmatprep.subr.mxu0 %v172
    %518 = vmatpush1.msra.mxu0 %v171
    %519 = vmatprep.subr.mxu0 %v168
    %520 = vmatpush1.msra.mxu0 %v167
    %521 = vmatprep.subr.mxu0 %v164
    %522 = vmatpush1.msra.mxu0 %v163
    %523 = vmatprep.subr.mxu0 %v160
    %524 = vmatpush1.msra.mxu0 %v159
    %525 = vmatprep.subr.mxu0 %v156
    %526 = vmatpush1.msra.mxu0 %v155
    %527 = vmatprep.subr.mxu0 %v152
    %528 = vmatpush1.msra.mxu0 %v151
    %529 = vmatprep.subr.mxu0 %v148
    %530 = vmatpush1.msra.mxu0 %v147
    %531 = vmatprep.subr.mxu0 %v144
    %532 = vmatpush1.msra.mxu0 %v143
    %533 = vmatprep.subr.mxu0 %v140
    %534 = vmatpush1.msra.mxu0 %v139
    %535 = vmatprep.subr.mxu0 %v136
    %536 = vmatpush1.msra.mxu0 %v135
    %537 = vmatprep.subr.mxu0 %v132
    %538 = vmatpush1.msra.mxu0 %v131
    %539 = vmatprep.subr.mxu0 %v128
    %540 = vmatpush1.msra.mxu0 %v127
    %541 = vmatprep.subr.mxu0 %v124
    %542 = vmatpush1.msra.mxu0 %v123
    %543 = vmatprep.subr.mxu0 %v120
    %544 = vmatpush1.msra.mxu0 %v119
    %545 = vmatprep.subr.mxu0 0.0
    %546 = vmatpush2.msra.mxu0 0.0
    %547 = vmatprep.subr.mxu0 0.0
    %548 = vmatpush2.msra.mxu0 0.0
    %549 = vmatprep.subr.mxu0 0.0
    %550 = vmatpush2.msra.mxu0 0.0
    %551 = vmatprep.subr.mxu0 0.0
    %552 = vmatpush2.msra.mxu0 0.0
    %553 = vmatprep.subr.mxu0 0.0
    %554 = vmatpush2.msra.mxu0 0.0
    %555 = vmatprep.subr.mxu0 0.0
    %556 = vmatpush2.msra.mxu0 0.0
    %557 = vmatprep.subr.mxu0 0.0
    %558 = vmatpush2.msra.mxu0 0.0
    %559 = vmatprep.subr.mxu0 0.0
    %560 = vmatpush2.msra.mxu0 0.0
    %561 = vmatprep.subr.mxu0 0.0
    %562 = vmatpush2.msra.mxu0 0.0
    %563 = vmatprep.subr.mxu0 0.0
    %564 = vmatpush2.msra.mxu0 0.0
    %565 = vmatprep.subr.mxu0 0.0
    %566 = vmatpush2.msra.mxu0 0.0
    %567 = vmatprep.subr.mxu0 0.0
    %568 = vmatpush2.msra.mxu0 0.0
    %569 = vmatprep.subr.mxu0 0.0
    %570 = vmatpush2.msra.mxu0 0.0
    %571 = vmatprep.subr.mxu0 0.0
    %572 = vmatpush2.msra.mxu0 0.0
    %573 = vmatprep.subr.mxu0 0.0
    %574 = vmatpush2.msra.mxu0 0.0
    %575 = vmatprep.subr.mxu0 0.0
    %576 = vmatpush2.msra.mxu0 0.0
    %577 = vmatprep.mubr.f32.mxu0 0.0
    %578 = vmatmul.mubr.f32.gmra.mxu0 %v441
    %v579 = vpop.f32.mrf.mxu0
    %v580 = vadd.f32 0.0, %v579
    %v581 = vpop.f32.mrf.mxu0
    %582 = vdwg.mxu0
    %v583 = vadd.f32 %v509, %v111
    %v584 = vxor.u32 %v583, 2147483648
    %v585 = vmul.f32 %v584, 1.442695
    %v586 = vpow.pop %v585
    %v587 = vadd.f32 %v586, 1.0
    %v588 = vrcp.pop %v587
    %v589 = vmul.f32 1.0, %v588
    %v590 = vtanh.pop %v583
    %v591 = vmul.f32 %v589, %v399
    %593 = vrot.lane.b32.xlu0 %v590, 64
    %v594 = vpop.permute.xlu0 %593
    %v596 = vmul.f32 %v589, %v594
    %598 = vrot.lane.b32.xlu0 %v596, 32
    %v599 = vpop.permute.xlu0 %598
    %v601 = vadd.f32 %v591, %v599
    %v602 = vtanh.pop %v601
    %604 = vrot.lane.b32.xlu0 %v602, 64
    %v605 = vpop.permute.xlu0 %604
    %v607 = vmul.f32 %v589, %v605
    %v608 = vadd.f32 %v511, %v187
    %v609 = vxor.u32 %v608, 2147483648
    %v610 = vmul.f32 %v609, 1.442695
    %v611 = vpow.pop %v610
    %v612 = vadd.f32 %v611, 1.0
    %v613 = vrcp.pop %v612
    %v614 = vmul.f32 1.0, %v613
    %v615 = vtanh.pop %v608
    %v616 = vmul.f32 %v614, %v424
    %618 = vrot.lane.b32.xlu0 %v615, 64
    %v619 = vpop.permute.xlu0 %618
    %v621 = vmul.f32 %v614, %v619
    %623 = vrot.lane.b32.xlu0 %v621, 32
    %v624 = vpop.permute.xlu0 %623
    %v626 = vadd.f32 %v616, %v624
    %v627 = vtanh.pop %v626
    %629 = vrot.lane.b32.xlu0 %v627, 64
    %v630 = vpop.permute.xlu0 %629
    %v632 = vmul.f32 %v614, %v630
    %v633 = vadd.f32 %v580, %v195
    %v634 = vxor.u32 %v633, 2147483648
    %v635 = vmul.f32 %v634, 1.442695
    %v636 = vpow.pop %v635
    %v637 = vadd.f32 %v636, 1.0
    %v638 = vrcp.pop %v637
    %v639 = vmul.f32 1.0, %v638
    %v640 = vtanh.pop %v633
    %v641 = vmul.f32 %v639, 0.0
    %643 = vrot.lane.b32.xlu0 %v640, 64
    %v644 = vpop.permute.xlu0 %643
    %v646 = vmul.f32 %v639, %v644
    %648 = vrot.lane.b32.xlu0 %v646, 32
    %v649 = vpop.permute.xlu0 %648
    %v651 = vadd.f32 %v641, %v649
    %v652 = vtanh.pop %v651
    %654 = vrot.lane.b32.xlu0 %v652, 64
    %v655 = vpop.permute.xlu0 %654
    %v657 = vmul.f32 %v639, %v655
    %659 = vrot.lane.b32.xlu0 %v607, 32
    %v660 = vpop.permute.xlu0 %659
    %663 = vrot.lane.b32.xlu0 %v632, 64
    %v664 = vpop.permute.xlu0 %663
    %667 = vrot.lane.b32.xlu0 %v657, 96
    %v668 = vpop.permute.xlu0 %667
    %v670 = vsel %vm304, %v660, %v664
    %v671 = vsel %vm306, %v670, %v668
    %v672 = vsel %vm308, %v671, 0.0
    %673 = vmatprep.subr.mxu0 %v178
    %674 = vmatpush1.msra.mxu0 %v177
    %675 = vmatprep.subr.mxu0 %v174
    %676 = vmatpush1.msra.mxu0 %v173
    %677 = vmatprep.subr.mxu0 %v170
    %678 = vmatpush1.msra.mxu0 %v169
    %679 = vmatprep.subr.mxu0 %v166
    %680 = vmatpush1.msra.mxu0 %v165
    %681 = vmatprep.subr.mxu0 %v162
    %682 = vmatpush1.msra.mxu0 %v161
    %683 = vmatprep.subr.mxu0 %v158
    %684 = vmatpush1.msra.mxu0 %v157
    %685 = vmatprep.subr.mxu0 %v154
    %686 = vmatpush1.msra.mxu0 %v153
    %687 = vmatprep.subr.mxu0 %v150
    %688 = vmatpush1.msra.mxu0 %v149
    %689 = vmatprep.subr.mxu0 %v146
    %690 = vmatpush1.msra.mxu0 %v145
    %691 = vmatprep.subr.mxu0 %v142
    %692 = vmatpush1.msra.mxu0 %v141
    %693 = vmatprep.subr.mxu0 %v138
    %694 = vmatpush1.msra.mxu0 %v137
    %695 = vmatprep.subr.mxu0 %v134
    %696 = vmatpush1.msra.mxu0 %v133
    %697 = vmatprep.subr.mxu0 %v130
    %698 = vmatpush1.msra.mxu0 %v129
    %699 = vmatprep.subr.mxu0 %v126
    %700 = vmatpush1.msra.mxu0 %v125
    %701 = vmatprep.subr.mxu0 %v122
    %702 = vmatpush1.msra.mxu0 %v121
    %703 = vmatprep.subr.mxu0 %v118
    %704 = vmatpush1.msra.mxu0 %v117
    %705 = vmatprep.subr.mxu0 0.0
    %706 = vmatpush2.msra.mxu0 0.0
    %707 = vmatprep.subr.mxu0 0.0
    %708 = vmatpush2.msra.mxu0 0.0
    %709 = vmatprep.subr.mxu0 0.0
    %710 = vmatpush2.msra.mxu0 0.0
    %711 = vmatprep.subr.mxu0 0.0
    %712 = vmatpush2.msra.mxu0 0.0
    %713 = vmatprep.subr.mxu0 0.0
    %714 = vmatpush2.msra.mxu0 0.0
    %715 = vmatprep.subr.mxu0 0.0
    %716 = vmatpush2.msra.mxu0 0.0
    %717 = vmatprep.subr.mxu0 0.0
    %718 = vmatpush2.msra.mxu0 0.0
    %719 = vmatprep.subr.mxu0 0.0
    %720 = vmatpush2.msra.mxu0 0.0
    %721 = vmatprep.subr.mxu0 0.0
    %722 = vmatpush2.msra.mxu0 0.0
    %723 = vmatprep.subr.mxu0 0.0
    %724 = vmatpush2.msra.mxu0 0.0
    %725 = vmatprep.subr.mxu0 0.0
    %726 = vmatpush2.msra.mxu0 0.0
    %727 = vmatprep.subr.mxu0 0.0
    %728 = vmatpush2.msra.mxu0 0.0
    %729 = vmatprep.subr.mxu0 0.0
    %730 = vmatpush2.msra.mxu0 0.0
    %731 = vmatprep.subr.mxu0 0.0
    %732 = vmatpush2.msra.mxu0 0.0
    %733 = vmatprep.subr.mxu0 0.0
    %734 = vmatpush2.msra.mxu0 0.0
    %735 = vmatprep.subr.mxu0 0.0
    %736 = vmatpush2.msra.mxu0 0.0
    %737 = vmatprep.mubr.f32.mxu0 0.0
    %738 = vmatmul.mubr.f32.gmra.mxu0 %v672
    %v739 = vpop.f32.mrf.mxu0
    %v740 = vadd.f32 0.0, %v739
    %v741 = vpop.f32.mrf.mxu0
    %v742 = vadd.f32 0.0, %v741
    %743 = vdwg.mxu0
    %744 = vmatprep.subr.mxu0 %v180
    %745 = vmatpush1.msra.mxu0 %v179
    %746 = vmatprep.subr.mxu0 %v176
    %747 = vmatpush1.msra.mxu0 %v175
    %748 = vmatprep.subr.mxu0 %v172
    %749 = vmatpush1.msra.mxu0 %v171
    %750 = vmatprep.subr.mxu0 %v168
    %751 = vmatpush1.msra.mxu0 %v167
    %752 = vmatprep.subr.mxu0 %v164
    %753 = vmatpush1.msra.mxu0 %v163
    %754 = vmatprep.subr.mxu0 %v160
    %755 = vmatpush1.msra.mxu0 %v159
    %756 = vmatprep.subr.mxu0 %v156
    %757 = vmatpush1.msra.mxu0 %v155
    %758 = vmatprep.subr.mxu0 %v152
    %759 = vmatpush1.msra.mxu0 %v151
    %760 = vmatprep.subr.mxu0 %v148
    %761 = vmatpush1.msra.mxu0 %v147
    %762 = vmatprep.subr.mxu0 %v144
    %763 = vmatpush1.msra.mxu0 %v143
    %764 = vmatprep.subr.mxu0 %v140
    %765 = vmatpush1.msra.mxu0 %v139
    %766 = vmatprep.subr.mxu0 %v136
    %767 = vmatpush1.msra.mxu0 %v135
    %768 = vmatprep.subr.mxu0 %v132
    %769 = vmatpush1.msra.mxu0 %v131
    %770 = vmatprep.subr.mxu0 %v128
    %771 = vmatpush1.msra.mxu0 %v127
    %772 = vmatprep.subr.mxu0 %v124
    %773 = vmatpush1.msra.mxu0 %v123
    %774 = vmatprep.subr.mxu0 %v120
    %775 = vmatpush1.msra.mxu0 %v119
    %776 = vmatprep.subr.mxu0 0.0
    %777 = vmatpush2.msra.mxu0 0.0
    %778 = vmatprep.subr.mxu0 0.0
    %779 = vmatpush2.msra.mxu0 0.0
    %780 = vmatprep.subr.mxu0 0.0
    %781 = vmatpush2.msra.mxu0 0.0
    %782 = vmatprep.subr.mxu0 0.0
    %783 = vmatpush2.msra.mxu0 0.0
    %784 = vmatprep.subr.mxu0 0.0
    %785 = vmatpush2.msra.mxu0 0.0
    %786 = vmatprep.subr.mxu0 0.0
    %787 = vmatpush2.msra.mxu0 0.0
    %788 = vmatprep.subr.mxu0 0.0
    %789 = vmatpush2.msra.mxu0 0.0
    %790 = vmatprep.subr.mxu0 0.0
    %791 = vmatpush2.msra.mxu0 0.0
    %792 = vmatprep.subr.mxu0 0.0
    %793 = vmatpush2.msra.mxu0 0.0
    %794 = vmatprep.subr.mxu0 0.0
    %795 = vmatpush2.msra.mxu0 0.0
    %796 = vmatprep.subr.mxu0 0.0
    %797 = vmatpush2.msra.mxu0 0.0
    %798 = vmatprep.subr.mxu0 0.0
    %799 = vmatpush2.msra.mxu0 0.0
    %800 = vmatprep.subr.mxu0 0.0
    %801 = vmatpush2.msra.mxu0 0.0
    %802 = vmatprep.subr.mxu0 0.0
    %803 = vmatpush2.msra.mxu0 0.0
    %804 = vmatprep.subr.mxu0 0.0
    %805 = vmatpush2.msra.mxu0 0.0
    %806 = vmatprep.subr.mxu0 0.0
    %807 = vmatpush2.msra.mxu0 0.0
    %808 = vmatprep.mubr.f32.mxu0 0.0
    %809 = vmatmul.mubr.f32.gmra.mxu0 %v672
    %v810 = vpop.f32.mrf.mxu0
    %v811 = vadd.f32 0.0, %v810
    %v812 = vpop.f32.mrf.mxu0
    %v813 = vadd.f32 0.0, %v812
    %814 = vdwg.mxu0
    %v815 = vadd.f32 %v740, %v112
    %v816 = vxor.u32 %v815, 2147483648
    %v817 = vmul.f32 %v816, 1.442695
    %v818 = vpow.pop %v817
    %v819 = vadd.f32 %v818, 1.0
    %v820 = vrcp.pop %v819
    %v821 = vmul.f32 1.0, %v820
    %v822 = vtanh.pop %v815
    %v823 = vmul.f32 %v821, %v601
    %825 = vrot.lane.b32.xlu0 %v822, 64
    %v826 = vpop.permute.xlu0 %825
    %v828 = vmul.f32 %v821, %v826
    %830 = vrot.lane.b32.xlu0 %v828, 32
    %v831 = vpop.permute.xlu0 %830
    %v833 = vadd.f32 %v823, %v831
    %v834 = vtanh.pop %v833
    %836 = vrot.lane.b32.xlu0 %v834, 64
    %v837 = vpop.permute.xlu0 %836
    %v839 = vmul.f32 %v821, %v837
    %v840 = vadd.f32 %v742, %v187
    %v841 = vxor.u32 %v840, 2147483648
    %v842 = vmul.f32 %v841, 1.442695
    %v843 = vpow.pop %v842
    %v844 = vadd.f32 %v843, 1.0
    %v845 = vrcp.pop %v844
    %v846 = vmul.f32 1.0, %v845
    %v847 = vtanh.pop %v840
    %v848 = vmul.f32 %v846, %v626
    %850 = vrot.lane.b32.xlu0 %v847, 64
    %v851 = vpop.permute.xlu0 %850
    %v853 = vmul.f32 %v846, %v851
    %855 = vrot.lane.b32.xlu0 %v853, 32
    %v856 = vpop.permute.xlu0 %855
    %v858 = vadd.f32 %v848, %v856
    %v859 = vtanh.pop %v858
    %861 = vrot.lane.b32.xlu0 %v859, 64
    %v862 = vpop.permute.xlu0 %861
    %v864 = vmul.f32 %v846, %v862
    %v865 = vadd.f32 %v811, %v195
    %v866 = vxor.u32 %v865, 2147483648
    %v867 = vmul.f32 %v866, 1.442695
    %v868 = vpow.pop %v867
    %v869 = vadd.f32 %v868, 1.0
    %v870 = vrcp.pop %v869
    %v871 = vmul.f32 1.0, %v870
    %v872 = vtanh.pop %v865
    %v873 = vmul.f32 %v871, %v651
    %875 = vrot.lane.b32.xlu0 %v872, 64
    %v876 = vpop.permute.xlu0 %875
    %v878 = vmul.f32 %v871, %v876
    %880 = vrot.lane.b32.xlu0 %v878, 32
    %v881 = vpop.permute.xlu0 %880
    %v883 = vadd.f32 %v873, %v881
    %v884 = vtanh.pop %v883
    %886 = vrot.lane.b32.xlu0 %v884, 64
    %v887 = vpop.permute.xlu0 %886
    %v889 = vmul.f32 %v871, %v887
    %v890 = vadd.f32 %v813, %v203
    %v891 = vxor.u32 %v890, 2147483648
    %v892 = vmul.f32 %v891, 1.442695
    %v893 = vpow.pop %v892
    %v894 = vadd.f32 %v893, 1.0
    %v895 = vrcp.pop %v894
    %v896 = vmul.f32 1.0, %v895
    %v897 = vtanh.pop %v890
    %v898 = vmul.f32 %v896, 0.0
    %900 = vrot.lane.b32.xlu0 %v897, 64
    %v901 = vpop.permute.xlu0 %900
    %v903 = vmul.f32 %v896, %v901
    %905 = vrot.lane.b32.xlu0 %v903, 32
    %v906 = vpop.permute.xlu0 %905
    %v908 = vadd.f32 %v898, %v906
    %v909 = vtanh.pop %v908
    %911 = vrot.lane.b32.xlu0 %v909, 64
    %v912 = vpop.permute.xlu0 %911
    %v914 = vmul.f32 %v896, %v912
    %916 = vrot.lane.b32.xlu0 %v839, 32
    %v917 = vpop.permute.xlu0 %916
    %920 = vrot.lane.b32.xlu0 %v864, 64
    %v921 = vpop.permute.xlu0 %920
    %924 = vrot.lane.b32.xlu0 %v889, 96
    %v925 = vpop.permute.xlu0 %924
    %v927 = vsel %vm304, %v917, %v921
    %v928 = vsel %vm306, %v927, %v925
    %v929 = vsel %vm308, %v928, %v914
    %930 = vmatprep.subr.mxu0 %v178
    %931 = vmatpush1.msra.mxu0 %v177
    %932 = vmatprep.subr.mxu0 %v174
    %933 = vmatpush1.msra.mxu0 %v173
    %934 = vmatprep.subr.mxu0 %v170
    %935 = vmatpush1.msra.mxu0 %v169
    %936 = vmatprep.subr.mxu0 %v166
    %937 = vmatpush1.msra.mxu0 %v165
    %938 = vmatprep.subr.mxu0 %v162
    %939 = vmatpush1.msra.mxu0 %v161
    %940 = vmatprep.subr.mxu0 %v158
    %941 = vmatpush1.msra.mxu0 %v157
    %942 = vmatprep.subr.mxu0 %v154
    %943 = vmatpush1.msra.mxu0 %v153
    %944 = vmatprep.subr.mxu0 %v150
    %945 = vmatpush1.msra.mxu0 %v149
    %946 = vmatprep.subr.mxu0 %v146
    %947 = vmatpush1.msra.mxu0 %v145
    %948 = vmatprep.subr.mxu0 %v142
    %949 = vmatpush1.msra.mxu0 %v141
    %950 = vmatprep.subr.mxu0 %v138
    %951 = vmatpush1.msra.mxu0 %v137
    %952 = vmatprep.subr.mxu0 %v134
    %953 = vmatpush1.msra.mxu0 %v133
    %954 = vmatprep.subr.mxu0 %v130
    %955 = vmatpush1.msra.mxu0 %v129
    %956 = vmatprep.subr.mxu0 %v126
    %957 = vmatpush1.msra.mxu0 %v125
    %958 = vmatprep.subr.mxu0 %v122
    %959 = vmatpush1.msra.mxu0 %v121
    %960 = vmatprep.subr.mxu0 %v118
    %961 = vmatpush1.msra.mxu0 %v117
    %962 = vmatprep.subr.mxu0 0.0
    %963 = vmatpush2.msra.mxu0 0.0
    %964 = vmatprep.subr.mxu0 0.0
    %965 = vmatpush2.msra.mxu0 0.0
    %966 = vmatprep.subr.mxu0 0.0
    %967 = vmatpush2.msra.mxu0 0.0
    %968 = vmatprep.subr.mxu0 0.0
    %969 = vmatpush2.msra.mxu0 0.0
    %970 = vmatprep.subr.mxu0 0.0
    %971 = vmatpush2.msra.mxu0 0.0
    %972 = vmatprep.subr.mxu0 0.0
    %973 = vmatpush2.msra.mxu0 0.0
    %974 = vmatprep.subr.mxu0 0.0
    %975 = vmatpush2.msra.mxu0 0.0
    %976 = vmatprep.subr.mxu0 0.0
    %977 = vmatpush2.msra.mxu0 0.0
    %978 = vmatprep.subr.mxu0 0.0
    %979 = vmatpush2.msra.mxu0 0.0
    %980 = vmatprep.subr.mxu0 0.0
    %981 = vmatpush2.msra.mxu0 0.0
    %982 = vmatprep.subr.mxu0 0.0
    %983 = vmatpush2.msra.mxu0 0.0
    %984 = vmatprep.subr.mxu0 0.0
    %985 = vmatpush2.msra.mxu0 0.0
    %986 = vmatprep.subr.mxu0 0.0
    %987 = vmatpush2.msra.mxu0 0.0
    %988 = vmatprep.subr.mxu0 0.0
    %989 = vmatpush2.msra.mxu0 0.0
    %990 = vmatprep.subr.mxu0 0.0
    %991 = vmatpush2.msra.mxu0 0.0
    %992 = vmatprep.subr.mxu0 0.0
    %993 = vmatpush2.msra.mxu0 0.0
    %994 = vmatprep.mubr.f32.mxu0 0.0
    %995 = vmatmul.mubr.f32.gmra.mxu0 %v929
    %v996 = vpop.f32.mrf.mxu0
    %v997 = vadd.f32 0.0, %v996
    %v998 = vpop.f32.mrf.mxu0
    %v999 = vadd.f32 0.0, %v998
    %1000 = vdwg.mxu0
    %1001 = vmatprep.subr.mxu0 %v180
    %1002 = vmatpush1.msra.mxu0 %v179
    %1003 = vmatprep.subr.mxu0 %v176
    %1004 = vmatpush1.msra.mxu0 %v175
    %1005 = vmatprep.subr.mxu0 %v172
    %1006 = vmatpush1.msra.mxu0 %v171
    %1007 = vmatprep.subr.mxu0 %v168
    %1008 = vmatpush1.msra.mxu0 %v167
    %1009 = vmatprep.subr.mxu0 %v164
    %1010 = vmatpush1.msra.mxu0 %v163
    %1011 = vmatprep.subr.mxu0 %v160
    %1012 = vmatpush1.msra.mxu0 %v159
    %1013 = vmatprep.subr.mxu0 %v156
    %1014 = vmatpush1.msra.mxu0 %v155
    %1015 = vmatprep.subr.mxu0 %v152
    %1016 = vmatpush1.msra.mxu0 %v151
    %1017 = vmatprep.subr.mxu0 %v148
    %1018 = vmatpush1.msra.mxu0 %v147
    %1019 = vmatprep.subr.mxu0 %v144
    %1020 = vmatpush1.msra.mxu0 %v143
    %1021 = vmatprep.subr.mxu0 %v140
    %1022 = vmatpush1.msra.mxu0 %v139
    %1023 = vmatprep.subr.mxu0 %v136
    %1024 = vmatpush1.msra.mxu0 %v135
    %1025 = vmatprep.subr.mxu0 %v132
    %1026 = vmatpush1.msra.mxu0 %v131
    %1027 = vmatprep.subr.mxu0 %v128
    %1028 = vmatpush1.msra.mxu0 %v127
    %1029 = vmatprep.subr.mxu0 %v124
    %1030 = vmatpush1.msra.mxu0 %v123
    %1031 = vmatprep.subr.mxu0 %v120
    %1032 = vmatpush1.msra.mxu0 %v119
    %1033 = vmatprep.subr.mxu0 0.0
    %1034 = vmatpush2.msra.mxu0 0.0
    %1035 = vmatprep.subr.mxu0 0.0
    %1036 = vmatpush2.msra.mxu0 0.0
    %1037 = vmatprep.subr.mxu0 0.0
    %1038 = vmatpush2.msra.mxu0 0.0
    %1039 = vmatprep.subr.mxu0 0.0
    %1040 = vmatpush2.msra.mxu0 0.0
    %1041 = vmatprep.subr.mxu0 0.0
    %1042 = vmatpush2.msra.mxu0 0.0
    %1043 = vmatprep.subr.mxu0 0.0
    %1044 = vmatpush2.msra.mxu0 0.0
    %1045 = vmatprep.subr.mxu0 0.0
    %1046 = vmatpush2.msra.mxu0 0.0
    %1047 = vmatprep.subr.mxu0 0.0
    %1048 = vmatpush2.msra.mxu0 0.0
    %1049 = vmatprep.subr.mxu0 0.0
    %1050 = vmatpush2.msra.mxu0 0.0
    %1051 = vmatprep.subr.mxu0 0.0
    %1052 = vmatpush2.msra.mxu0 0.0
    %1053 = vmatprep.subr.mxu0 0.0
    %1054 = vmatpush2.msra.mxu0 0.0
    %1055 = vmatprep.subr.mxu0 0.0
    %1056 = vmatpush2.msra.mxu0 0.0
    %1057 = vmatprep.subr.mxu0 0.0
    %1058 = vmatpush2.msra.mxu0 0.0
    %1059 = vmatprep.subr.mxu0 0.0
    %1060 = vmatpush2.msra.mxu0 0.0
    %1061 = vmatprep.subr.mxu0 0.0
    %1062 = vmatpush2.msra.mxu0 0.0
    %1063 = vmatprep.subr.mxu0 0.0
    %1064 = vmatpush2.msra.mxu0 0.0
    %1065 = vmatprep.mubr.f32.mxu0 0.0
    %1066 = vmatmul.mubr.f32.gmra.mxu0 %v929
    %v1067 = vpop.f32.mrf.mxu0
    %v1068 = vadd.f32 0.0, %v1067
    %v1069 = vpop.f32.mrf.mxu0
    %v1070 = vadd.f32 0.0, %v1069
    %1071 = vdwg.mxu0
    %v1072 = vadd.f32 %v997, %v113
    %v1073 = vxor.u32 %v1072, 2147483648
    %v1074 = vmul.f32 %v1073, 1.442695
    %v1075 = vpow.pop %v1074
    %v1076 = vadd.f32 %v1075, 1.0
    %v1077 = vrcp.pop %v1076
    %v1078 = vmul.f32 1.0, %v1077
    %v1079 = vtanh.pop %v1072
    %v1080 = vmul.f32 %v1078, %v833
    %1082 = vrot.lane.b32.xlu0 %v1079, 64
    %v1083 = vpop.permute.xlu0 %1082
    %v1085 = vmul.f32 %v1078, %v1083
    %1087 = vrot.lane.b32.xlu0 %v1085, 32
    %v1088 = vpop.permute.xlu0 %1087
    %v1090 = vadd.f32 %v1080, %v1088
    %v1091 = vtanh.pop %v1090
    %1093 = vrot.lane.b32.xlu0 %v1091, 64
    %v1094 = vpop.permute.xlu0 %1093
    %v1096 = vmul.f32 %v1078, %v1094
    %v1097 = vadd.f32 %v999, %v187
    %v1098 = vxor.u32 %v1097, 2147483648
    %v1099 = vmul.f32 %v1098, 1.442695
    %v1100 = vpow.pop %v1099
    %v1101 = vadd.f32 %v1100, 1.0
    %v1102 = vrcp.pop %v1101
    %v1103 = vmul.f32 1.0, %v1102
    %v1104 = vtanh.pop %v1097
    %v1105 = vmul.f32 %v1103, %v858
    %1107 = vrot.lane.b32.xlu0 %v1104, 64
    %v1108 = vpop.permute.xlu0 %1107
    %v1110 = vmul.f32 %v1103, %v1108
    %1112 = vrot.lane.b32.xlu0 %v1110, 32
    %v1113 = vpop.permute.xlu0 %1112
    %v1115 = vadd.f32 %v1105, %v1113
    %v1116 = vtanh.pop %v1115
    %1118 = vrot.lane.b32.xlu0 %v1116, 64
    %v1119 = vpop.permute.xlu0 %1118
    %v1121 = vmul.f32 %v1103, %v1119
    %v1122 = vadd.f32 %v1068, %v195
    %v1123 = vxor.u32 %v1122, 2147483648
    %v1124 = vmul.f32 %v1123, 1.442695
    %v1125 = vpow.pop %v1124
    %v1126 = vadd.f32 %v1125, 1.0
    %v1127 = vrcp.pop %v1126
    %v1128 = vmul.f32 1.0, %v1127
    %v1129 = vtanh.pop %v1122
    %v1130 = vmul.f32 %v1128, %v883
    %1132 = vrot.lane.b32.xlu0 %v1129, 64
    %v1133 = vpop.permute.xlu0 %1132
    %v1135 = vmul.f32 %v1128, %v1133
    %1137 = vrot.lane.b32.xlu0 %v1135, 32
    %v1138 = vpop.permute.xlu0 %1137
    %v1140 = vadd.f32 %v1130, %v1138
    %v1141 = vtanh.pop %v1140
    %1143 = vrot.lane.b32.xlu0 %v1141, 64
    %v1144 = vpop.permute.xlu0 %1143
    %v1146 = vmul.f32 %v1128, %v1144
    %v1147 = vadd.f32 %v1070, %v203
    %v1148 = vxor.u32 %v1147, 2147483648
    %v1149 = vmul.f32 %v1148, 1.442695
    %v1150 = vpow.pop %v1149
    %v1151 = vadd.f32 %v1150, 1.0
    %v1152 = vrcp.pop %v1151
    %v1153 = vmul.f32 1.0, %v1152
    %v1154 = vtanh.pop %v1147
    %v1155 = vmul.f32 %v1153, %v908
    %1157 = vrot.lane.b32.xlu0 %v1154, 64
    %v1158 = vpop.permute.xlu0 %1157
    %v1160 = vmul.f32 %v1153, %v1158
    %1162 = vrot.lane.b32.xlu0 %v1160, 32
    %v1163 = vpop.permute.xlu0 %1162
    %v1165 = vadd.f32 %v1155, %v1163
    %v1166 = vtanh.pop %v1165
    %1168 = vrot.lane.b32.xlu0 %v1166, 64
    %v1169 = vpop.permute.xlu0 %1168
    %v1171 = vmul.f32 %v1153, %v1169
    %1173 = vrot.lane.b32.xlu0 %v1096, 32
    %v1174 = vpop.permute.xlu0 %1173
    %1177 = vrot.lane.b32.xlu0 %v1121, 64
    %v1178 = vpop.permute.xlu0 %1177
    %1181 = vrot.lane.b32.xlu0 %v1146, 96
    %v1182 = vpop.permute.xlu0 %1181
    %v1184 = vsel %vm304, %v1174, %v1178
    %v1185 = vsel %vm306, %v1184, %v1182
    %v1186 = vsel %vm308, %v1185, %v1171
    %1187 = vmatprep.subr.mxu0 %v178
    %1188 = vmatpush1.msra.mxu0 %v177
    %1189 = vmatprep.subr.mxu0 %v174
    %1190 = vmatpush1.msra.mxu0 %v173
    %1191 = vmatprep.subr.mxu0 %v170
    %1192 = vmatpush1.msra.mxu0 %v169
    %1193 = vmatprep.subr.mxu0 %v166
    %1194 = vmatpush1.msra.mxu0 %v165
    %1195 = vmatprep.subr.mxu0 %v162
    %1196 = vmatpush1.msra.mxu0 %v161
    %1197 = vmatprep.subr.mxu0 %v158
    %1198 = vmatpush1.msra.mxu0 %v157
    %1199 = vmatprep.subr.mxu0 %v154
    %1200 = vmatpush1.msra.mxu0 %v153
    %1201 = vmatprep.subr.mxu0 %v150
    %1202 = vmatpush1.msra.mxu0 %v149
    %1203 = vmatprep.subr.mxu0 %v146
    %1204 = vmatpush1.msra.mxu0 %v145
    %1205 = vmatprep.subr.mxu0 %v142
    %1206 = vmatpush1.msra.mxu0 %v141
    %1207 = vmatprep.subr.mxu0 %v138
    %1208 = vmatpush1.msra.mxu0 %v137
    %1209 = vmatprep.subr.mxu0 %v134
    %1210 = vmatpush1.msra.mxu0 %v133
    %1211 = vmatprep.subr.mxu0 %v130
    %1212 = vmatpush1.msra.mxu0 %v129
    %1213 = vmatprep.subr.mxu0 %v126
    %1214 = vmatpush1.msra.mxu0 %v125
    %1215 = vmatprep.subr.mxu0 %v122
    %1216 = vmatpush1.msra.mxu0 %v121
    %1217 = vmatprep.subr.mxu0 %v118
    %1218 = vmatpush1.msra.mxu0 %v117
    %1219 = vmatprep.subr.mxu0 0.0
    %1220 = vmatpush2.msra.mxu0 0.0
    %1221 = vmatprep.subr.mxu0 0.0
    %1222 = vmatpush2.msra.mxu0 0.0
    %1223 = vmatprep.subr.mxu0 0.0
    %1224 = vmatpush2.msra.mxu0 0.0
    %1225 = vmatprep.subr.mxu0 0.0
    %1226 = vmatpush2.msra.mxu0 0.0
    %1227 = vmatprep.subr.mxu0 0.0
    %1228 = vmatpush2.msra.mxu0 0.0
    %1229 = vmatprep.subr.mxu0 0.0
    %1230 = vmatpush2.msra.mxu0 0.0
    %1231 = vmatprep.subr.mxu0 0.0
    %1232 = vmatpush2.msra.mxu0 0.0
    %1233 = vmatprep.subr.mxu0 0.0
    %1234 = vmatpush2.msra.mxu0 0.0
    %1235 = vmatprep.subr.mxu0 0.0
    %1236 = vmatpush2.msra.mxu0 0.0
    %1237 = vmatprep.subr.mxu0 0.0
    %1238 = vmatpush2.msra.mxu0 0.0
    %1239 = vmatprep.subr.mxu0 0.0
    %1240 = vmatpush2.msra.mxu0 0.0
    %1241 = vmatprep.subr.mxu0 0.0
    %1242 = vmatpush2.msra.mxu0 0.0
    %1243 = vmatprep.subr.mxu0 0.0
    %1244 = vmatpush2.msra.mxu0 0.0
    %1245 = vmatprep.subr.mxu0 0.0
    %1246 = vmatpush2.msra.mxu0 0.0
    %1247 = vmatprep.subr.mxu0 0.0
    %1248 = vmatpush2.msra.mxu0 0.0
    %1249 = vmatprep.subr.mxu0 0.0
    %1250 = vmatpush2.msra.mxu0 0.0
    %1251 = vmatprep.mubr.f32.mxu0 0.0
    %1252 = vmatmul.mubr.f32.gmra.mxu0 %v1186
    %v1253 = vpop.f32.mrf.mxu0
    %v1254 = vadd.f32 0.0, %v1253
    %v1255 = vpop.f32.mrf.mxu0
    %v1256 = vadd.f32 0.0, %v1255
    %1257 = vdwg.mxu0
    %1258 = vmatprep.subr.mxu0 %v180
    %1259 = vmatpush1.msra.mxu0 %v179
    %1260 = vmatprep.subr.mxu0 %v176
    %1261 = vmatpush1.msra.mxu0 %v175
    %1262 = vmatprep.subr.mxu0 %v172
    %1263 = vmatpush1.msra.mxu0 %v171
    %1264 = vmatprep.subr.mxu0 %v168
    %1265 = vmatpush1.msra.mxu0 %v167
    %1266 = vmatprep.subr.mxu0 %v164
    %1267 = vmatpush1.msra.mxu0 %v163
    %1268 = vmatprep.subr.mxu0 %v160
    %1269 = vmatpush1.msra.mxu0 %v159
    %1270 = vmatprep.subr.mxu0 %v156
    %1271 = vmatpush1.msra.mxu0 %v155
    %1272 = vmatprep.subr.mxu0 %v152
    %1273 = vmatpush1.msra.mxu0 %v151
    %1274 = vmatprep.subr.mxu0 %v148
    %1275 = vmatpush1.msra.mxu0 %v147
    %1276 = vmatprep.subr.mxu0 %v144
    %1277 = vmatpush1.msra.mxu0 %v143
    %1278 = vmatprep.subr.mxu0 %v140
    %1279 = vmatpush1.msra.mxu0 %v139
    %1280 = vmatprep.subr.mxu0 %v136
    %1281 = vmatpush1.msra.mxu0 %v135
    %1282 = vmatprep.subr.mxu0 %v132
    %1283 = vmatpush1.msra.mxu0 %v131
    %1284 = vmatprep.subr.mxu0 %v128
    %1285 = vmatpush1.msra.mxu0 %v127
    %1286 = vmatprep.subr.mxu0 %v124
    %1287 = vmatpush1.msra.mxu0 %v123
    %1288 = vmatprep.subr.mxu0 %v120
    %1289 = vmatpush1.msra.mxu0 %v119
    %1290 = vmatprep.subr.mxu0 0.0
    %1291 = vmatpush2.msra.mxu0 0.0
    %1292 = vmatprep.subr.mxu0 0.0
    %1293 = vmatpush2.msra.mxu0 0.0
    %1294 = vmatprep.subr.mxu0 0.0
    %1295 = vmatpush2.msra.mxu0 0.0
    %1296 = vmatprep.subr.mxu0 0.0
    %1297 = vmatpush2.msra.mxu0 0.0
    %1298 = vmatprep.subr.mxu0 0.0
    %1299 = vmatpush2.msra.mxu0 0.0
    %1300 = vmatprep.subr.mxu0 0.0
    %1301 = vmatpush2.msra.mxu0 0.0
    %1302 = vmatprep.subr.mxu0 0.0
    %1303 = vmatpush2.msra.mxu0 0.0
    %1304 = vmatprep.subr.mxu0 0.0
    %1305 = vmatpush2.msra.mxu0 0.0
    %1306 = vmatprep.subr.mxu0 0.0
    %1307 = vmatpush2.msra.mxu0 0.0
    %1308 = vmatprep.subr.mxu0 0.0
    %1309 = vmatpush2.msra.mxu0 0.0
    %1310 = vmatprep.subr.mxu0 0.0
    %1311 = vmatpush2.msra.mxu0 0.0
    %1312 = vmatprep.subr.mxu0 0.0
    %1313 = vmatpush2.msra.mxu0 0.0
    %1314 = vmatprep.subr.mxu0 0.0
    %1315 = vmatpush2.msra.mxu0 0.0
    %1316 = vmatprep.subr.mxu0 0.0
    %1317 = vmatpush2.msra.mxu0 0.0
    %1318 = vmatprep.subr.mxu0 0.0
    %1319 = vmatpush2.msra.mxu0 0.0
    %1320 = vmatprep.subr.mxu0 0.0
    %1321 = vmatpush2.msra.mxu0 0.0
    %1322 = vmatprep.mubr.f32.mxu0 0.0
    %1323 = vmatmul.mubr.f32.gmra.mxu0 %v1186
    %v1324 = vpop.f32.mrf.mxu0
    %v1325 = vadd.f32 0.0, %v1324
    %v1326 = vpop.f32.mrf.mxu0
    %v1327 = vadd.f32 0.0, %v1326
    %1328 = vdwg.mxu0
    %v1329 = vadd.f32 %v1254, %v114
    %v1330 = vxor.u32 %v1329, 2147483648
    %v1331 = vmul.f32 %v1330, 1.442695
    %v1332 = vpow.pop %v1331
    %v1333 = vadd.f32 %v1332, 1.0
    %v1334 = vrcp.pop %v1333
    %v1335 = vmul.f32 1.0, %v1334
    %v1336 = vtanh.pop %v1329
    %v1337 = vmul.f32 %v1335, %v1090
    %1339 = vrot.lane.b32.xlu0 %v1336, 64
    %v1340 = vpop.permute.xlu0 %1339
    %v1342 = vmul.f32 %v1335, %v1340
    %1344 = vrot.lane.b32.xlu0 %v1342, 32
    %v1345 = vpop.permute.xlu0 %1344
    %v1347 = vadd.f32 %v1337, %v1345
    %v1348 = vtanh.pop %v1347
    %1350 = vrot.lane.b32.xlu0 %v1348, 64
    %v1351 = vpop.permute.xlu0 %1350
    %v1353 = vmul.f32 %v1335, %v1351
    %v1354 = vadd.f32 %v1256, %v187
    %v1355 = vxor.u32 %v1354, 2147483648
    %v1356 = vmul.f32 %v1355, 1.442695
    %v1357 = vpow.pop %v1356
    %v1358 = vadd.f32 %v1357, 1.0
    %v1359 = vrcp.pop %v1358
    %v1360 = vmul.f32 1.0, %v1359
    %v1361 = vtanh.pop %v1354
    %v1362 = vmul.f32 %v1360, %v1115
    %1364 = vrot.lane.b32.xlu0 %v1361, 64
    %v1365 = vpop.permute.xlu0 %1364
    %v1367 = vmul.f32 %v1360, %v1365
    %1369 = vrot.lane.b32.xlu0 %v1367, 32
    %v1370 = vpop.permute.xlu0 %1369
    %v1372 = vadd.f32 %v1362, %v1370
    %v1373 = vtanh.pop %v1372
    %1375 = vrot.lane.b32.xlu0 %v1373, 64
    %v1376 = vpop.permute.xlu0 %1375
    %v1378 = vmul.f32 %v1360, %v1376
    %v1379 = vadd.f32 %v1325, %v195
    %v1380 = vxor.u32 %v1379, 2147483648
    %v1381 = vmul.f32 %v1380, 1.442695
    %v1382 = vpow.pop %v1381
    %v1383 = vadd.f32 %v1382, 1.0
    %v1384 = vrcp.pop %v1383
    %v1385 = vmul.f32 1.0, %v1384
    %v1386 = vtanh.pop %v1379
    %v1387 = vmul.f32 %v1385, %v1140
    %1389 = vrot.lane.b32.xlu0 %v1386, 64
    %v1390 = vpop.permute.xlu0 %1389
    %v1392 = vmul.f32 %v1385, %v1390
    %1394 = vrot.lane.b32.xlu0 %v1392, 32
    %v1395 = vpop.permute.xlu0 %1394
    %v1397 = vadd.f32 %v1387, %v1395
    %v1398 = vtanh.pop %v1397
    %1400 = vrot.lane.b32.xlu0 %v1398, 64
    %v1401 = vpop.permute.xlu0 %1400
    %v1403 = vmul.f32 %v1385, %v1401
    %v1404 = vadd.f32 %v1327, %v203
    %v1405 = vxor.u32 %v1404, 2147483648
    %v1406 = vmul.f32 %v1405, 1.442695
    %v1407 = vpow.pop %v1406
    %v1408 = vadd.f32 %v1407, 1.0
    %v1409 = vrcp.pop %v1408
    %v1410 = vmul.f32 1.0, %v1409
    %v1411 = vtanh.pop %v1404
    %v1412 = vmul.f32 %v1410, %v1165
    %1414 = vrot.lane.b32.xlu0 %v1411, 64
    %v1415 = vpop.permute.xlu0 %1414
    %v1417 = vmul.f32 %v1410, %v1415
    %1419 = vrot.lane.b32.xlu0 %v1417, 32
    %v1420 = vpop.permute.xlu0 %1419
    %v1422 = vadd.f32 %v1412, %v1420
    %v1423 = vtanh.pop %v1422
    %1425 = vrot.lane.b32.xlu0 %v1423, 64
    %v1426 = vpop.permute.xlu0 %1425
    %v1428 = vmul.f32 %v1410, %v1426
    %1430 = vrot.lane.b32.xlu0 %v1353, 32
    %v1431 = vpop.permute.xlu0 %1430
    %1434 = vrot.lane.b32.xlu0 %v1378, 64
    %v1435 = vpop.permute.xlu0 %1434
    %1438 = vrot.lane.b32.xlu0 %v1403, 96
    %v1439 = vpop.permute.xlu0 %1438
    %v1441 = vsel %vm304, %v1431, %v1435
    %v1442 = vsel %vm306, %v1441, %v1439
    %v1443 = vsel %vm308, %v1442, %v1428
    %1444 = vmatprep.subr.mxu0 %v178
    %1445 = vmatpush1.msra.mxu0 %v177
    %1446 = vmatprep.subr.mxu0 %v174
    %1447 = vmatpush1.msra.mxu0 %v173
    %1448 = vmatprep.subr.mxu0 %v170
    %1449 = vmatpush1.msra.mxu0 %v169
    %1450 = vmatprep.subr.mxu0 %v166
    %1451 = vmatpush1.msra.mxu0 %v165
    %1452 = vmatprep.subr.mxu0 %v162
    %1453 = vmatpush1.msra.mxu0 %v161
    %1454 = vmatprep.subr.mxu0 %v158
    %1455 = vmatpush1.msra.mxu0 %v157
    %1456 = vmatprep.subr.mxu0 %v154
    %1457 = vmatpush1.msra.mxu0 %v153
    %1458 = vmatprep.subr.mxu0 %v150
    %1459 = vmatpush1.msra.mxu0 %v149
    %1460 = vmatprep.subr.mxu0 %v146
    %1461 = vmatpush1.msra.mxu0 %v145
    %1462 = vmatprep.subr.mxu0 %v142
    %1463 = vmatpush1.msra.mxu0 %v141
    %1464 = vmatprep.subr.mxu0 %v138
    %1465 = vmatpush1.msra.mxu0 %v137
    %1466 = vmatprep.subr.mxu0 %v134
    %1467 = vmatpush1.msra.mxu0 %v133
    %1468 = vmatprep.subr.mxu0 %v130
    %1469 = vmatpush1.msra.mxu0 %v129
    %1470 = vmatprep.subr.mxu0 %v126
    %1471 = vmatpush1.msra.mxu0 %v125
    %1472 = vmatprep.subr.mxu0 %v122
    %1473 = vmatpush1.msra.mxu0 %v121
    %1474 = vmatprep.subr.mxu0 %v118
    %1475 = vmatpush1.msra.mxu0 %v117
    %1476 = vmatprep.subr.mxu0 0.0
    %1477 = vmatpush2.msra.mxu0 0.0
    %1478 = vmatprep.subr.mxu0 0.0
    %1479 = vmatpush2.msra.mxu0 0.0
    %1480 = vmatprep.subr.mxu0 0.0
    %1481 = vmatpush2.msra.mxu0 0.0
    %1482 = vmatprep.subr.mxu0 0.0
    %1483 = vmatpush2.msra.mxu0 0.0
    %1484 = vmatprep.subr.mxu0 0.0
    %1485 = vmatpush2.msra.mxu0 0.0
    %1486 = vmatprep.subr.mxu0 0.0
    %1487 = vmatpush2.msra.mxu0 0.0
    %1488 = vmatprep.subr.mxu0 0.0
    %1489 = vmatpush2.msra.mxu0 0.0
    %1490 = vmatprep.subr.mxu0 0.0
    %1491 = vmatpush2.msra.mxu0 0.0
    %1492 = vmatprep.subr.mxu0 0.0
    %1493 = vmatpush2.msra.mxu0 0.0
    %1494 = vmatprep.subr.mxu0 0.0
    %1495 = vmatpush2.msra.mxu0 0.0
    %1496 = vmatprep.subr.mxu0 0.0
    %1497 = vmatpush2.msra.mxu0 0.0
    %1498 = vmatprep.subr.mxu0 0.0
    %1499 = vmatpush2.msra.mxu0 0.0
    %1500 = vmatprep.subr.mxu0 0.0
    %1501 = vmatpush2.msra.mxu0 0.0
    %1502 = vmatprep.subr.mxu0 0.0
    %1503 = vmatpush2.msra.mxu0 0.0
    %1504 = vmatprep.subr.mxu0 0.0
    %1505 = vmatpush2.msra.mxu0 0.0
    %1506 = vmatprep.subr.mxu0 0.0
    %1507 = vmatpush2.msra.mxu0 0.0
    %1508 = vmatprep.mubr.f32.mxu0 0.0
    %1509 = vmatmul.mubr.f32.gmra.mxu0 %v1443
    %v1510 = vpop.f32.mrf.mxu0
    %v1511 = vadd.f32 0.0, %v1510
    %v1512 = vpop.f32.mrf.mxu0
    %v1513 = vadd.f32 0.0, %v1512
    %1514 = vdwg.mxu0
    %1515 = vmatprep.subr.mxu0 %v180
    %1516 = vmatpush1.msra.mxu0 %v179
    %1517 = vmatprep.subr.mxu0 %v176
    %1518 = vmatpush1.msra.mxu0 %v175
    %1519 = vmatprep.subr.mxu0 %v172
    %1520 = vmatpush1.msra.mxu0 %v171
    %1521 = vmatprep.subr.mxu0 %v168
    %1522 = vmatpush1.msra.mxu0 %v167
    %1523 = vmatprep.subr.mxu0 %v164
    %1524 = vmatpush1.msra.mxu0 %v163
    %1525 = vmatprep.subr.mxu0 %v160
    %1526 = vmatpush1.msra.mxu0 %v159
    %1527 = vmatprep.subr.mxu0 %v156
    %1528 = vmatpush1.msra.mxu0 %v155
    %1529 = vmatprep.subr.mxu0 %v152
    %1530 = vmatpush1.msra.mxu0 %v151
    %1531 = vmatprep.subr.mxu0 %v148
    %1532 = vmatpush1.msra.mxu0 %v147
    %1533 = vmatprep.subr.mxu0 %v144
    %1534 = vmatpush1.msra.mxu0 %v143
    %1535 = vmatprep.subr.mxu0 %v140
    %1536 = vmatpush1.msra.mxu0 %v139
    %1537 = vmatprep.subr.mxu0 %v136
    %1538 = vmatpush1.msra.mxu0 %v135
    %1539 = vmatprep.subr.mxu0 %v132
    %1540 = vmatpush1.msra.mxu0 %v131
    %1541 = vmatprep.subr.mxu0 %v128
    %1542 = vmatpush1.msra.mxu0 %v127
    %1543 = vmatprep.subr.mxu0 %v124
    %1544 = vmatpush1.msra.mxu0 %v123
    %1545 = vmatprep.subr.mxu0 %v120
    %1546 = vmatpush1.msra.mxu0 %v119
    %1547 = vmatprep.subr.mxu0 0.0
    %1548 = vmatpush2.msra.mxu0 0.0
    %1549 = vmatprep.subr.mxu0 0.0
    %1550 = vmatpush2.msra.mxu0 0.0
    %1551 = vmatprep.subr.mxu0 0.0
    %1552 = vmatpush2.msra.mxu0 0.0
    %1553 = vmatprep.subr.mxu0 0.0
    %1554 = vmatpush2.msra.mxu0 0.0
    %1555 = vmatprep.subr.mxu0 0.0
    %1556 = vmatpush2.msra.mxu0 0.0
    %1557 = vmatprep.subr.mxu0 0.0
    %1558 = vmatpush2.msra.mxu0 0.0
    %1559 = vmatprep.subr.mxu0 0.0
    %1560 = vmatpush2.msra.mxu0 0.0
    %1561 = vmatprep.subr.mxu0 0.0
    %1562 = vmatpush2.msra.mxu0 0.0
    %1563 = vmatprep.subr.mxu0 0.0
    %1564 = vmatpush2.msra.mxu0 0.0
    %1565 = vmatprep.subr.mxu0 0.0
    %1566 = vmatpush2.msra.mxu0 0.0
    %1567 = vmatprep.subr.mxu0 0.0
    %1568 = vmatpush2.msra.mxu0 0.0
    %1569 = vmatprep.subr.mxu0 0.0
    %1570 = vmatpush2.msra.mxu0 0.0
    %1571 = vmatprep.subr.mxu0 0.0
    %1572 = vmatpush2.msra.mxu0 0.0
    %1573 = vmatprep.subr.mxu0 0.0
    %1574 = vmatpush2.msra.mxu0 0.0
    %1575 = vmatprep.subr.mxu0 0.0
    %1576 = vmatpush2.msra.mxu0 0.0
    %1577 = vmatprep.subr.mxu0 0.0
    %1578 = vmatpush2.msra.mxu0 0.0
    %1579 = vmatprep.mubr.f32.mxu0 0.0
    %1580 = vmatmul.mubr.f32.gmra.mxu0 %v1443
    %v1581 = vpop.f32.mrf.mxu0
    %v1582 = vadd.f32 0.0, %v1581
    %v1583 = vpop.f32.mrf.mxu0
    %v1584 = vadd.f32 0.0, %v1583
    %1585 = vdwg.mxu0
    %v1586 = vadd.f32 %v1511, %v115
    %v1587 = vxor.u32 %v1586, 2147483648
    %v1588 = vmul.f32 %v1587, 1.442695
    %v1589 = vpow.pop %v1588
    %v1590 = vadd.f32 %v1589, 1.0
    %v1591 = vrcp.pop %v1590
    %v1592 = vmul.f32 1.0, %v1591
    %v1593 = vtanh.pop %v1586
    %v1594 = vmul.f32 %v1592, %v1347
    %1596 = vrot.lane.b32.xlu0 %v1593, 64
    %v1597 = vpop.permute.xlu0 %1596
    %v1599 = vmul.f32 %v1592, %v1597
    %1601 = vrot.lane.b32.xlu0 %v1599, 32
    %v1602 = vpop.permute.xlu0 %1601
    %v1604 = vadd.f32 %v1594, %v1602
    %v1605 = vtanh.pop %v1604
    %1607 = vrot.lane.b32.xlu0 %v1605, 64
    %v1608 = vpop.permute.xlu0 %1607
    %v1610 = vmul.f32 %v1592, %v1608
    %v1611 = vadd.f32 %v1513, %v187
    %v1612 = vxor.u32 %v1611, 2147483648
    %v1613 = vmul.f32 %v1612, 1.442695
    %v1614 = vpow.pop %v1613
    %v1615 = vadd.f32 %v1614, 1.0
    %v1616 = vrcp.pop %v1615
    %v1617 = vmul.f32 1.0, %v1616
    %v1618 = vtanh.pop %v1611
    %v1619 = vmul.f32 %v1617, %v1372
    %1621 = vrot.lane.b32.xlu0 %v1618, 64
    %v1622 = vpop.permute.xlu0 %1621
    %v1624 = vmul.f32 %v1617, %v1622
    %1626 = vrot.lane.b32.xlu0 %v1624, 32
    %v1627 = vpop.permute.xlu0 %1626
    %v1629 = vadd.f32 %v1619, %v1627
    %v1630 = vtanh.pop %v1629
    %1632 = vrot.lane.b32.xlu0 %v1630, 64
    %v1633 = vpop.permute.xlu0 %1632
    %v1635 = vmul.f32 %v1617, %v1633
    %v1636 = vadd.f32 %v1582, %v195
    %v1637 = vxor.u32 %v1636, 2147483648
    %v1638 = vmul.f32 %v1637, 1.442695
    %v1639 = vpow.pop %v1638
    %v1640 = vadd.f32 %v1639, 1.0
    %v1641 = vrcp.pop %v1640
    %v1642 = vmul.f32 1.0, %v1641
    %v1643 = vtanh.pop %v1636
    %v1644 = vmul.f32 %v1642, %v1397
    %1646 = vrot.lane.b32.xlu0 %v1643, 64
    %v1647 = vpop.permute.xlu0 %1646
    %v1649 = vmul.f32 %v1642, %v1647
    %1651 = vrot.lane.b32.xlu0 %v1649, 32
    %v1652 = vpop.permute.xlu0 %1651
    %v1654 = vadd.f32 %v1644, %v1652
    %v1655 = vtanh.pop %v1654
    %1657 = vrot.lane.b32.xlu0 %v1655, 64
    %v1658 = vpop.permute.xlu0 %1657
    %v1660 = vmul.f32 %v1642, %v1658
    %v1661 = vadd.f32 %v1584, %v203
    %v1662 = vxor.u32 %v1661, 2147483648
    %v1663 = vmul.f32 %v1662, 1.442695
    %v1664 = vpow.pop %v1663
    %v1665 = vadd.f32 %v1664, 1.0
    %v1666 = vrcp.pop %v1665
    %v1667 = vmul.f32 1.0, %v1666
    %v1668 = vtanh.pop %v1661
    %v1669 = vmul.f32 %v1667, %v1422
    %1671 = vrot.lane.b32.xlu0 %v1668, 64
    %v1672 = vpop.permute.xlu0 %1671
    %v1674 = vmul.f32 %v1667, %v1672
    %1676 = vrot.lane.b32.xlu0 %v1674, 32
    %v1677 = vpop.permute.xlu0 %1676
    %v1679 = vadd.f32 %v1669, %v1677
    %v1680 = vtanh.pop %v1679
    %1682 = vrot.lane.b32.xlu0 %v1680, 64
    %v1683 = vpop.permute.xlu0 %1682
    %v1685 = vmul.f32 %v1667, %v1683
    %1687 = vrot.lane.b32.xlu0 %v1610, 32
    %v1688 = vpop.permute.xlu0 %1687
    %1691 = vrot.lane.b32.xlu0 %v1635, 64
    %v1692 = vpop.permute.xlu0 %1691
    %1695 = vrot.lane.b32.xlu0 %v1660, 96
    %v1696 = vpop.permute.xlu0 %1695
    %v1698 = vsel %vm304, %v1688, %v1692
    %v1699 = vsel %vm306, %v1698, %v1696
    %v1700 = vsel %vm308, %v1699, %v1685
    %1701 = vmatprep.subr.mxu0 %v178
    %1702 = vmatpush1.msra.mxu0 %v177
    %1703 = vmatprep.subr.mxu0 %v174
    %1704 = vmatpush1.msra.mxu0 %v173
    %1705 = vmatprep.subr.mxu0 %v170
    %1706 = vmatpush1.msra.mxu0 %v169
    %1707 = vmatprep.subr.mxu0 %v166
    %1708 = vmatpush1.msra.mxu0 %v165
    %1709 = vmatprep.subr.mxu0 %v162
    %1710 = vmatpush1.msra.mxu0 %v161
    %1711 = vmatprep.subr.mxu0 %v158
    %1712 = vmatpush1.msra.mxu0 %v157
    %1713 = vmatprep.subr.mxu0 %v154
    %1714 = vmatpush1.msra.mxu0 %v153
    %1715 = vmatprep.subr.mxu0 %v150
    %1716 = vmatpush1.msra.mxu0 %v149
    %1717 = vmatprep.subr.mxu0 %v146
    %1718 = vmatpush1.msra.mxu0 %v145
    %1719 = vmatprep.subr.mxu0 %v142
    %1720 = vmatpush1.msra.mxu0 %v141
    %1721 = vmatprep.subr.mxu0 %v138
    %1722 = vmatpush1.msra.mxu0 %v137
    %1723 = vmatprep.subr.mxu0 %v134
    %1724 = vmatpush1.msra.mxu0 %v133
    %1725 = vmatprep.subr.mxu0 %v130
    %1726 = vmatpush1.msra.mxu0 %v129
    %1727 = vmatprep.subr.mxu0 %v126
    %1728 = vmatpush1.msra.mxu0 %v125
    %1729 = vmatprep.subr.mxu0 %v122
    %1730 = vmatpush1.msra.mxu0 %v121
    %1731 = vmatprep.subr.mxu0 %v118
    %1732 = vmatpush1.msra.mxu0 %v117
    %1733 = vmatprep.subr.mxu0 0.0
    %1734 = vmatpush2.msra.mxu0 0.0
    %1735 = vmatprep.subr.mxu0 0.0
    %1736 = vmatpush2.msra.mxu0 0.0
    %1737 = vmatprep.subr.mxu0 0.0
    %1738 = vmatpush2.msra.mxu0 0.0
    %1739 = vmatprep.subr.mxu0 0.0
    %1740 = vmatpush2.msra.mxu0 0.0
    %1741 = vmatprep.subr.mxu0 0.0
    %1742 = vmatpush2.msra.mxu0 0.0
    %1743 = vmatprep.subr.mxu0 0.0
    %1744 = vmatpush2.msra.mxu0 0.0
    %1745 = vmatprep.subr.mxu0 0.0
    %1746 = vmatpush2.msra.mxu0 0.0
    %1747 = vmatprep.subr.mxu0 0.0
    %1748 = vmatpush2.msra.mxu0 0.0
    %1749 = vmatprep.subr.mxu0 0.0
    %1750 = vmatpush2.msra.mxu0 0.0
    %1751 = vmatprep.subr.mxu0 0.0
    %1752 = vmatpush2.msra.mxu0 0.0
    %1753 = vmatprep.subr.mxu0 0.0
    %1754 = vmatpush2.msra.mxu0 0.0
    %1755 = vmatprep.subr.mxu0 0.0
    %1756 = vmatpush2.msra.mxu0 0.0
    %1757 = vmatprep.subr.mxu0 0.0
    %1758 = vmatpush2.msra.mxu0 0.0
    %1759 = vmatprep.subr.mxu0 0.0
    %1760 = vmatpush2.msra.mxu0 0.0
    %1761 = vmatprep.subr.mxu0 0.0
    %1762 = vmatpush2.msra.mxu0 0.0
    %1763 = vmatprep.subr.mxu0 0.0
    %1764 = vmatpush2.msra.mxu0 0.0
    %1765 = vmatprep.mubr.f32.mxu0 0.0
    %1766 = vmatmul.mubr.f32.gmra.mxu0 %v1700
    %v1767 = vpop.f32.mrf.mxu0
    %v1768 = vadd.f32 0.0, %v1767
    %v1769 = vpop.f32.mrf.mxu0
    %v1770 = vadd.f32 0.0, %v1769
    %1771 = vdwg.mxu0
    %1772 = vmatprep.subr.mxu0 %v180
    %1773 = vmatpush1.msra.mxu0 %v179
    %1774 = vmatprep.subr.mxu0 %v176
    %1775 = vmatpush1.msra.mxu0 %v175
    %1776 = vmatprep.subr.mxu0 %v172
    %1777 = vmatpush1.msra.mxu0 %v171
    %1778 = vmatprep.subr.mxu0 %v168
    %1779 = vmatpush1.msra.mxu0 %v167
    %1780 = vmatprep.subr.mxu0 %v164
    %1781 = vmatpush1.msra.mxu0 %v163
    %1782 = vmatprep.subr.mxu0 %v160
    %1783 = vmatpush1.msra.mxu0 %v159
    %1784 = vmatprep.subr.mxu0 %v156
    %1785 = vmatpush1.msra.mxu0 %v155
    %1786 = vmatprep.subr.mxu0 %v152
    %1787 = vmatpush1.msra.mxu0 %v151
    %1788 = vmatprep.subr.mxu0 %v148
    %1789 = vmatpush1.msra.mxu0 %v147
    %1790 = vmatprep.subr.mxu0 %v144
    %1791 = vmatpush1.msra.mxu0 %v143
    %1792 = vmatprep.subr.mxu0 %v140
    %1793 = vmatpush1.msra.mxu0 %v139
    %1794 = vmatprep.subr.mxu0 %v136
    %1795 = vmatpush1.msra.mxu0 %v135
    %1796 = vmatprep.subr.mxu0 %v132
    %1797 = vmatpush1.msra.mxu0 %v131
    %1798 = vmatprep.subr.mxu0 %v128
    %1799 = vmatpush1.msra.mxu0 %v127
    %1800 = vmatprep.subr.mxu0 %v124
    %1801 = vmatpush1.msra.mxu0 %v123
    %1802 = vmatprep.subr.mxu0 %v120
    %1803 = vmatpush1.msra.mxu0 %v119
    %1804 = vmatprep.subr.mxu0 0.0
    %1805 = vmatpush2.msra.mxu0 0.0
    %1806 = vmatprep.subr.mxu0 0.0
    %1807 = vmatpush2.msra.mxu0 0.0
    %1808 = vmatprep.subr.mxu0 0.0
    %1809 = vmatpush2.msra.mxu0 0.0
    %1810 = vmatprep.subr.mxu0 0.0
    %1811 = vmatpush2.msra.mxu0 0.0
    %1812 = vmatprep.subr.mxu0 0.0
    %1813 = vmatpush2.msra.mxu0 0.0
    %1814 = vmatprep.subr.mxu0 0.0
    %1815 = vmatpush2.msra.mxu0 0.0
    %1816 = vmatprep.subr.mxu0 0.0
    %1817 = vmatpush2.msra.mxu0 0.0
    %1818 = vmatprep.subr.mxu0 0.0
    %1819 = vmatpush2.msra.mxu0 0.0
    %1820 = vmatprep.subr.mxu0 0.0
    %1821 = vmatpush2.msra.mxu0 0.0
    %1822 = vmatprep.subr.mxu0 0.0
    %1823 = vmatpush2.msra.mxu0 0.0
    %1824 = vmatprep.subr.mxu0 0.0
    %1825 = vmatpush2.msra.mxu0 0.0
    %1826 = vmatprep.subr.mxu0 0.0
    %1827 = vmatpush2.msra.mxu0 0.0
    %1828 = vmatprep.subr.mxu0 0.0
    %1829 = vmatpush2.msra.mxu0 0.0
    %1830 = vmatprep.subr.mxu0 0.0
    %1831 = vmatpush2.msra.mxu0 0.0
    %1832 = vmatprep.subr.mxu0 0.0
    %1833 = vmatpush2.msra.mxu0 0.0
    %1834 = vmatprep.subr.mxu0 0.0
    %1835 = vmatpush2.msra.mxu0 0.0
    %1836 = vmatprep.mubr.f32.mxu0 0.0
    %1837 = vmatmul.mubr.f32.gmra.mxu0 %v1700
    %v1838 = vpop.f32.mrf.mxu0
    %v1839 = vadd.f32 0.0, %v1838
    %v1840 = vpop.f32.mrf.mxu0
    %v1841 = vadd.f32 0.0, %v1840
    %1842 = vdwg.mxu0
    %v1843 = vadd.f32 %v1768, %v116
    %v1844 = vxor.u32 %v1843, 2147483648
    %v1845 = vmul.f32 %v1844, 1.442695
    %v1846 = vpow.pop %v1845
    %v1847 = vadd.f32 %v1846, 1.0
    %v1848 = vrcp.pop %v1847
    %v1849 = vmul.f32 1.0, %v1848
    %v1850 = vtanh.pop %v1843
    %v1851 = vmul.f32 %v1849, %v1604
    %1853 = vrot.lane.b32.xlu0 %v1850, 64
    %v1854 = vpop.permute.xlu0 %1853
    %v1856 = vmul.f32 %v1849, %v1854
    %1858 = vrot.lane.b32.xlu0 %v1856, 32
    %v1859 = vpop.permute.xlu0 %1858
    %v1861 = vadd.f32 %v1851, %v1859
    %v1862 = vtanh.pop %v1861
    %1864 = vrot.lane.b32.xlu0 %v1862, 64
    %v1865 = vpop.permute.xlu0 %1864
    %v1867 = vmul.f32 %v1849, %v1865
    %v1868 = vadd.f32 %v1770, %v187
    %v1869 = vxor.u32 %v1868, 2147483648
    %v1870 = vmul.f32 %v1869, 1.442695
    %v1871 = vpow.pop %v1870
    %v1872 = vadd.f32 %v1871, 1.0
    %v1873 = vrcp.pop %v1872
    %v1874 = vmul.f32 1.0, %v1873
    %v1875 = vtanh.pop %v1868
    %v1876 = vmul.f32 %v1874, %v1629
    %1878 = vrot.lane.b32.xlu0 %v1875, 64
    %v1879 = vpop.permute.xlu0 %1878
    %v1881 = vmul.f32 %v1874, %v1879
    %1883 = vrot.lane.b32.xlu0 %v1881, 32
    %v1884 = vpop.permute.xlu0 %1883
    %v1886 = vadd.f32 %v1876, %v1884
    %v1887 = vtanh.pop %v1886
    %1889 = vrot.lane.b32.xlu0 %v1887, 64
    %v1890 = vpop.permute.xlu0 %1889
    %v1892 = vmul.f32 %v1874, %v1890
    %v1893 = vadd.f32 %v1839, %v195
    %v1894 = vxor.u32 %v1893, 2147483648
    %v1895 = vmul.f32 %v1894, 1.442695
    %v1896 = vpow.pop %v1895
    %v1897 = vadd.f32 %v1896, 1.0
    %v1898 = vrcp.pop %v1897
    %v1899 = vmul.f32 1.0, %v1898
    %v1900 = vtanh.pop %v1893
    %v1901 = vmul.f32 %v1899, %v1654
    %1903 = vrot.lane.b32.xlu0 %v1900, 64
    %v1904 = vpop.permute.xlu0 %1903
    %v1906 = vmul.f32 %v1899, %v1904
    %1908 = vrot.lane.b32.xlu0 %v1906, 32
    %v1909 = vpop.permute.xlu0 %1908
    %v1911 = vadd.f32 %v1901, %v1909
    %v1912 = vtanh.pop %v1911
    %1914 = vrot.lane.b32.xlu0 %v1912, 64
    %v1915 = vpop.permute.xlu0 %1914
    %v1917 = vmul.f32 %v1899, %v1915
    %v1918 = vadd.f32 %v1841, %v203
    %v1919 = vxor.u32 %v1918, 2147483648
    %v1920 = vmul.f32 %v1919, 1.442695
    %v1921 = vpow.pop %v1920
    %v1922 = vadd.f32 %v1921, 1.0
    %v1923 = vrcp.pop %v1922
    %v1924 = vmul.f32 1.0, %v1923
    %v1925 = vtanh.pop %v1918
    %v1926 = vmul.f32 %v1924, %v1679
    %1928 = vrot.lane.b32.xlu0 %v1925, 64
    %v1929 = vpop.permute.xlu0 %1928
    %v1931 = vmul.f32 %v1924, %v1929
    %1933 = vrot.lane.b32.xlu0 %v1931, 32
    %v1934 = vpop.permute.xlu0 %1933
    %v1936 = vadd.f32 %v1926, %v1934
    %v1937 = vtanh.pop %v1936
    %1939 = vrot.lane.b32.xlu0 %v1937, 64
    %v1940 = vpop.permute.xlu0 %1939
    %v1942 = vmul.f32 %v1924, %v1940
    %1944 = vrot.lane.b32.xlu0 %v1867, 32
    %v1945 = vpop.permute.xlu0 %1944
    %1948 = vrot.lane.b32.xlu0 %v1892, 64
    %v1949 = vpop.permute.xlu0 %1948
    %1952 = vrot.lane.b32.xlu0 %v1917, 96
    %v1953 = vpop.permute.xlu0 %1952
    %v1955 = vsel %vm304, %v1945, %v1949
    %v1956 = vsel %vm306, %v1955, %v1953
    %v1957 = vsel %vm308, %v1956, %v1942
    %1958 = vmatprep.subr.mxu0 %v178
    %1959 = vmatpush1.msra.mxu0 %v177
    %1960 = vmatprep.subr.mxu0 %v174
    %1961 = vmatpush1.msra.mxu0 %v173
    %1962 = vmatprep.subr.mxu0 %v170
    %1963 = vmatpush1.msra.mxu0 %v169
    %1964 = vmatprep.subr.mxu0 %v166
    %1965 = vmatpush1.msra.mxu0 %v165
    %1966 = vmatprep.subr.mxu0 %v162
    %1967 = vmatpush1.msra.mxu0 %v161
    %1968 = vmatprep.subr.mxu0 %v158
    %1969 = vmatpush1.msra.mxu0 %v157
    %1970 = vmatprep.subr.mxu0 %v154
    %1971 = vmatpush1.msra.mxu0 %v153
    %1972 = vmatprep.subr.mxu0 %v150
    %1973 = vmatpush1.msra.mxu0 %v149
    %1974 = vmatprep.subr.mxu0 %v146
    %1975 = vmatpush1.msra.mxu0 %v145
    %1976 = vmatprep.subr.mxu0 %v142
    %1977 = vmatpush1.msra.mxu0 %v141
    %1978 = vmatprep.subr.mxu0 %v138
    %1979 = vmatpush1.msra.mxu0 %v137
    %1980 = vmatprep.subr.mxu0 %v134
    %1981 = vmatpush1.msra.mxu0 %v133
    %1982 = vmatprep.subr.mxu0 %v130
    %1983 = vmatpush1.msra.mxu0 %v129
    %1984 = vmatprep.subr.mxu0 %v126
    %1985 = vmatpush1.msra.mxu0 %v125
    %1986 = vmatprep.subr.mxu0 %v122
    %1987 = vmatpush1.msra.mxu0 %v121
    %1988 = vmatprep.subr.mxu0 %v118
    %1989 = vmatpush1.msra.mxu0 %v117
    %1990 = vmatprep.subr.mxu0 0.0
    %1991 = vmatpush2.msra.mxu0 0.0
    %1992 = vmatprep.subr.mxu0 0.0
    %1993 = vmatpush2.msra.mxu0 0.0
    %1994 = vmatprep.subr.mxu0 0.0
    %1995 = vmatpush2.msra.mxu0 0.0
    %1996 = vmatprep.subr.mxu0 0.0
    %1997 = vmatpush2.msra.mxu0 0.0
    %1998 = vmatprep.subr.mxu0 0.0
    %1999 = vmatpush2.msra.mxu0 0.0
    %2000 = vmatprep.subr.mxu0 0.0
    %2001 = vmatpush2.msra.mxu0 0.0
    %2002 = vmatprep.subr.mxu0 0.0
    %2003 = vmatpush2.msra.mxu0 0.0
    %2004 = vmatprep.subr.mxu0 0.0
    %2005 = vmatpush2.msra.mxu0 0.0
    %2006 = vmatprep.subr.mxu0 0.0
    %2007 = vmatpush2.msra.mxu0 0.0
    %2008 = vmatprep.subr.mxu0 0.0
    %2009 = vmatpush2.msra.mxu0 0.0
    %2010 = vmatprep.subr.mxu0 0.0
    %2011 = vmatpush2.msra.mxu0 0.0
    %2012 = vmatprep.subr.mxu0 0.0
    %2013 = vmatpush2.msra.mxu0 0.0
    %2014 = vmatprep.subr.mxu0 0.0
    %2015 = vmatpush2.msra.mxu0 0.0
    %2016 = vmatprep.subr.mxu0 0.0
    %2017 = vmatpush2.msra.mxu0 0.0
    %2018 = vmatprep.subr.mxu0 0.0
    %2019 = vmatpush2.msra.mxu0 0.0
    %2020 = vmatprep.subr.mxu0 0.0
    %2021 = vmatpush2.msra.mxu0 0.0
    %2022 = vmatprep.mubr.f32.mxu0 0.0
    %2023 = vmatmul.mubr.f32.gmra.mxu0 %v1957
    %v2024 = vpop.f32.mrf.mxu0
    %v2025 = vpop.f32.mrf.mxu0
    %v2026 = vadd.f32 0.0, %v2025
    %2027 = vdwg.mxu0
    %2028 = vmatprep.subr.mxu0 %v180
    %2029 = vmatpush1.msra.mxu0 %v179
    %2030 = vmatprep.subr.mxu0 %v176
    %2031 = vmatpush1.msra.mxu0 %v175
    %2032 = vmatprep.subr.mxu0 %v172
    %2033 = vmatpush1.msra.mxu0 %v171
    %2034 = vmatprep.subr.mxu0 %v168
    %2035 = vmatpush1.msra.mxu0 %v167
    %2036 = vmatprep.subr.mxu0 %v164
    %2037 = vmatpush1.msra.mxu0 %v163
    %2038 = vmatprep.subr.mxu0 %v160
    %2039 = vmatpush1.msra.mxu0 %v159
    %2040 = vmatprep.subr.mxu0 %v156
    %2041 = vmatpush1.msra.mxu0 %v155
    %2042 = vmatprep.subr.mxu0 %v152
    %2043 = vmatpush1.msra.mxu0 %v151
    %2044 = vmatprep.subr.mxu0 %v148
    %2045 = vmatpush1.msra.mxu0 %v147
    %2046 = vmatprep.subr.mxu0 %v144
    %2047 = vmatpush1.msra.mxu0 %v143
    %2048 = vmatprep.subr.mxu0 %v140
    %2049 = vmatpush1.msra.mxu0 %v139
    %2050 = vmatprep.subr.mxu0 %v136
    %2051 = vmatpush1.msra.mxu0 %v135
    %2052 = vmatprep.subr.mxu0 %v132
    %2053 = vmatpush1.msra.mxu0 %v131
    %2054 = vmatprep.subr.mxu0 %v128
    %2055 = vmatpush1.msra.mxu0 %v127
    %2056 = vmatprep.subr.mxu0 %v124
    %2057 = vmatpush1.msra.mxu0 %v123
    %2058 = vmatprep.subr.mxu0 %v120
    %2059 = vmatpush1.msra.mxu0 %v119
    %2060 = vmatprep.subr.mxu0 0.0
    %2061 = vmatpush2.msra.mxu0 0.0
    %2062 = vmatprep.subr.mxu0 0.0
    %2063 = vmatpush2.msra.mxu0 0.0
    %2064 = vmatprep.subr.mxu0 0.0
    %2065 = vmatpush2.msra.mxu0 0.0
    %2066 = vmatprep.subr.mxu0 0.0
    %2067 = vmatpush2.msra.mxu0 0.0
    %2068 = vmatprep.subr.mxu0 0.0
    %2069 = vmatpush2.msra.mxu0 0.0
    %2070 = vmatprep.subr.mxu0 0.0
    %2071 = vmatpush2.msra.mxu0 0.0
    %2072 = vmatprep.subr.mxu0 0.0
    %2073 = vmatpush2.msra.mxu0 0.0
    %2074 = vmatprep.subr.mxu0 0.0
    %2075 = vmatpush2.msra.mxu0 0.0
    %2076 = vmatprep.subr.mxu0 0.0
    %2077 = vmatpush2.msra.mxu0 0.0
    %2078 = vmatprep.subr.mxu0 0.0
    %2079 = vmatpush2.msra.mxu0 0.0
    %2080 = vmatprep.subr.mxu0 0.0
    %2081 = vmatpush2.msra.mxu0 0.0
    %2082 = vmatprep.subr.mxu0 0.0
    %2083 = vmatpush2.msra.mxu0 0.0
    %2084 = vmatprep.subr.mxu0 0.0
    %2085 = vmatpush2.msra.mxu0 0.0
    %2086 = vmatprep.subr.mxu0 0.0
    %2087 = vmatpush2.msra.mxu0 0.0
    %2088 = vmatprep.subr.mxu0 0.0
    %2089 = vmatpush2.msra.mxu0 0.0
    %2090 = vmatprep.subr.mxu0 0.0
    %2091 = vmatpush2.msra.mxu0 0.0
    %2092 = vmatprep.mubr.f32.mxu0 0.0
    %2093 = vmatmul.mubr.f32.gmra.mxu0 %v1957
    %v2094 = vpop.f32.mrf.mxu0
    %v2095 = vadd.f32 0.0, %v2094
    %v2096 = vpop.f32.mrf.mxu0
    %v2097 = vadd.f32 0.0, %v2096
    %2098 = vdwg.mxu0
    %v2099 = vadd.f32 %v2026, %v187
    %v2100 = vxor.u32 %v2099, 2147483648
    %v2101 = vmul.f32 %v2100, 1.442695
    %v2102 = vpow.pop %v2101
    %v2103 = vadd.f32 %v2102, 1.0
    %v2104 = vrcp.pop %v2103
    %v2105 = vmul.f32 1.0, %v2104
    %v2106 = vtanh.pop %v2099
    %v2107 = vmul.f32 %v2105, %v1886
    %2109 = vrot.lane.b32.xlu0 %v2106, 64
    %v2110 = vpop.permute.xlu0 %2109
    %v2112 = vmul.f32 %v2105, %v2110
    %2114 = vrot.lane.b32.xlu0 %v2112, 32
    %v2115 = vpop.permute.xlu0 %2114
    %v2117 = vadd.f32 %v2107, %v2115
    %v2118 = vtanh.pop %v2117
    %2120 = vrot.lane.b32.xlu0 %v2118, 64
    %v2121 = vpop.permute.xlu0 %2120
    %v2123 = vmul.f32 %v2105, %v2121
    %v2124 = vadd.f32 %v2095, %v195
    %v2125 = vxor.u32 %v2124, 2147483648
    %v2126 = vmul.f32 %v2125, 1.442695
    %v2127 = vpow.pop %v2126
    %v2128 = vadd.f32 %v2127, 1.0
    %v2129 = vrcp.pop %v2128
    %v2130 = vmul.f32 1.0, %v2129
    %v2131 = vtanh.pop %v2124
    %v2132 = vmul.f32 %v2130, %v1911
    %2134 = vrot.lane.b32.xlu0 %v2131, 64
    %v2135 = vpop.permute.xlu0 %2134
    %v2137 = vmul.f32 %v2130, %v2135
    %2139 = vrot.lane.b32.xlu0 %v2137, 32
    %v2140 = vpop.permute.xlu0 %2139
    %v2142 = vadd.f32 %v2132, %v2140
    %v2143 = vtanh.pop %v2142
    %2145 = vrot.lane.b32.xlu0 %v2143, 64
    %v2146 = vpop.permute.xlu0 %2145
    %v2148 = vmul.f32 %v2130, %v2146
    %v2149 = vadd.f32 %v2097, %v203
    %v2150 = vxor.u32 %v2149, 2147483648
    %v2151 = vmul.f32 %v2150, 1.442695
    %v2152 = vpow.pop %v2151
    %v2153 = vadd.f32 %v2152, 1.0
    %v2154 = vrcp.pop %v2153
    %v2155 = vmul.f32 1.0, %v2154
    %v2156 = vtanh.pop %v2149
    %v2157 = vmul.f32 %v2155, %v1936
    %2159 = vrot.lane.b32.xlu0 %v2156, 64
    %v2160 = vpop.permute.xlu0 %2159
    %v2162 = vmul.f32 %v2155, %v2160
    %2164 = vrot.lane.b32.xlu0 %v2162, 32
    %v2165 = vpop.permute.xlu0 %2164
    %v2167 = vadd.f32 %v2157, %v2165
    %v2168 = vtanh.pop %v2167
    %2170 = vrot.lane.b32.xlu0 %v2168, 64
    %v2171 = vpop.permute.xlu0 %2170
    %v2173 = vmul.f32 %v2155, %v2171
    %2175 = vrot.lane.b32.xlu0 %v2123, 64
    %v2176 = vpop.permute.xlu0 %2175
    %2179 = vrot.lane.b32.xlu0 %v2148, 96
    %v2180 = vpop.permute.xlu0 %2179
    %v2182 = vsel %vm304, %v1945, %v2176
    %v2183 = vsel %vm306, %v2182, %v2180
    %v2184 = vsel %vm308, %v2183, %v2173
    %2185 = vmatprep.subr.mxu0 %v180
    %2186 = vmatpush1.msra.mxu0 %v179
    %2187 = vmatprep.subr.mxu0 %v176
    %2188 = vmatpush1.msra.mxu0 %v175
    %2189 = vmatprep.subr.mxu0 %v172
    %2190 = vmatpush1.msra.mxu0 %v171
    %2191 = vmatprep.subr.mxu0 %v168
    %2192 = vmatpush1.msra.mxu0 %v167
    %2193 = vmatprep.subr.mxu0 %v164
    %2194 = vmatpush1.msra.mxu0 %v163
    %2195 = vmatprep.subr.mxu0 %v160
    %2196 = vmatpush1.msra.mxu0 %v159
    %2197 = vmatprep.subr.mxu0 %v156
    %2198 = vmatpush1.msra.mxu0 %v155
    %2199 = vmatprep.subr.mxu0 %v152
    %2200 = vmatpush1.msra.mxu0 %v151
    %2201 = vmatprep.subr.mxu0 %v148
    %2202 = vmatpush1.msra.mxu0 %v147
    %2203 = vmatprep.subr.mxu0 %v144
    %2204 = vmatpush1.msra.mxu0 %v143
    %2205 = vmatprep.subr.mxu0 %v140
    %2206 = vmatpush1.msra.mxu0 %v139
    %2207 = vmatprep.subr.mxu0 %v136
    %2208 = vmatpush1.msra.mxu0 %v135
    %2209 = vmatprep.subr.mxu0 %v132
    %2210 = vmatpush1.msra.mxu0 %v131
    %2211 = vmatprep.subr.mxu0 %v128
    %2212 = vmatpush1.msra.mxu0 %v127
    %2213 = vmatprep.subr.mxu0 %v124
    %2214 = vmatpush1.msra.mxu0 %v123
    %2215 = vmatprep.subr.mxu0 %v120
    %2216 = vmatpush1.msra.mxu0 %v119
    %2217 = vmatprep.subr.mxu0 0.0
    %2218 = vmatpush2.msra.mxu0 0.0
    %2219 = vmatprep.subr.mxu0 0.0
    %2220 = vmatpush2.msra.mxu0 0.0
    %2221 = vmatprep.subr.mxu0 0.0
    %2222 = vmatpush2.msra.mxu0 0.0
    %2223 = vmatprep.subr.mxu0 0.0
    %2224 = vmatpush2.msra.mxu0 0.0
    %2225 = vmatprep.subr.mxu0 0.0
    %2226 = vmatpush2.msra.mxu0 0.0
    %2227 = vmatprep.subr.mxu0 0.0
    %2228 = vmatpush2.msra.mxu0 0.0
    %2229 = vmatprep.subr.mxu0 0.0
    %2230 = vmatpush2.msra.mxu0 0.0
    %2231 = vmatprep.subr.mxu0 0.0
    %2232 = vmatpush2.msra.mxu0 0.0
    %2233 = vmatprep.subr.mxu0 0.0
    %2234 = vmatpush2.msra.mxu0 0.0
    %2235 = vmatprep.subr.mxu0 0.0
    %2236 = vmatpush2.msra.mxu0 0.0
    %2237 = vmatprep.subr.mxu0 0.0
    %2238 = vmatpush2.msra.mxu0 0.0
    %2239 = vmatprep.subr.mxu0 0.0
    %2240 = vmatpush2.msra.mxu0 0.0
    %2241 = vmatprep.subr.mxu0 0.0
    %2242 = vmatpush2.msra.mxu0 0.0
    %2243 = vmatprep.subr.mxu0 0.0
    %2244 = vmatpush2.msra.mxu0 0.0
    %2245 = vmatprep.subr.mxu0 0.0
    %2246 = vmatpush2.msra.mxu0 0.0
    %2247 = vmatprep.subr.mxu0 0.0
    %2248 = vmatpush2.msra.mxu0 0.0
    %2249 = vmatprep.mubr.f32.mxu0 0.0
    %2250 = vmatmul.mubr.f32.gmra.mxu0 %v2184
    %v2251 = vpop.f32.mrf.mxu0
    %v2252 = vadd.f32 0.0, %v2251
    %v2253 = vpop.f32.mrf.mxu0
    %v2254 = vadd.f32 0.0, %v2253
    %2255 = vdwg.mxu0
    %v2256 = vadd.f32 %v2252, %v195
    %v2257 = vxor.u32 %v2256, 2147483648
    %v2258 = vmul.f32 %v2257, 1.442695
    %v2259 = vpow.pop %v2258
    %v2260 = vadd.f32 %v2259, 1.0
    %v2261 = vrcp.pop %v2260
    %v2262 = vmul.f32 1.0, %v2261
    %v2263 = vtanh.pop %v2256
    %v2264 = vmul.f32 %v2262, %v2142
    %2266 = vrot.lane.b32.xlu0 %v2263, 64
    %v2267 = vpop.permute.xlu0 %2266
    %v2269 = vmul.f32 %v2262, %v2267
    %2271 = vrot.lane.b32.xlu0 %v2269, 32
    %v2272 = vpop.permute.xlu0 %2271
    %v2274 = vadd.f32 %v2264, %v2272
    %v2275 = vtanh.pop %v2274
    %2277 = vrot.lane.b32.xlu0 %v2275, 64
    %v2278 = vpop.permute.xlu0 %2277
    %v2280 = vmul.f32 %v2262, %v2278
    %v2281 = vadd.f32 %v2254, %v203
    %v2282 = vxor.u32 %v2281, 2147483648
    %v2283 = vmul.f32 %v2282, 1.442695
    %v2284 = vpow.pop %v2283
    %v2285 = vadd.f32 %v2284, 1.0
    %v2286 = vrcp.pop %v2285
    %v2287 = vmul.f32 1.0, %v2286
    %v2288 = vtanh.pop %v2281
    %v2289 = vmul.f32 %v2287, %v2167
    %2291 = vrot.lane.b32.xlu0 %v2288, 64
    %v2292 = vpop.permute.xlu0 %2291
    %v2294 = vmul.f32 %v2287, %v2292
    %2296 = vrot.lane.b32.xlu0 %v2294, 32
    %v2297 = vpop.permute.xlu0 %2296
    %v2299 = vadd.f32 %v2289, %v2297
    %v2300 = vtanh.pop %v2299
    %2302 = vrot.lane.b32.xlu0 %v2300, 64
    %v2303 = vpop.permute.xlu0 %2302
    %v2305 = vmul.f32 %v2287, %v2303
    %2307 = vrot.lane.b32.xlu0 %v2280, 96
    %v2308 = vpop.permute.xlu0 %2307
    %v2310 = vsel %vm306, %v2182, %v2308
    %v2311 = vsel %vm308, %v2310, %v2305
    %2312 = vmatprep.subr.mxu0 %v180
    %2313 = vmatpush1.msra.mxu0 %v179
    %2314 = vmatprep.subr.mxu0 %v176
    %2315 = vmatpush1.msra.mxu0 %v175
    %2316 = vmatprep.subr.mxu0 %v172
    %2317 = vmatpush1.msra.mxu0 %v171
    %2318 = vmatprep.subr.mxu0 %v168
    %2319 = vmatpush1.msra.mxu0 %v167
    %2320 = vmatprep.subr.mxu0 %v164
    %2321 = vmatpush1.msra.mxu0 %v163
    %2322 = vmatprep.subr.mxu0 %v160
    %2323 = vmatpush1.msra.mxu0 %v159
    %2324 = vmatprep.subr.mxu0 %v156
    %2325 = vmatpush1.msra.mxu0 %v155
    %2326 = vmatprep.subr.mxu0 %v152
    %2327 = vmatpush1.msra.mxu0 %v151
    %2328 = vmatprep.subr.mxu0 %v148
    %2329 = vmatpush1.msra.mxu0 %v147
    %2330 = vmatprep.subr.mxu0 %v144
    %2331 = vmatpush1.msra.mxu0 %v143
    %2332 = vmatprep.subr.mxu0 %v140
    %2333 = vmatpush1.msra.mxu0 %v139
    %2334 = vmatprep.subr.mxu0 %v136
    %2335 = vmatpush1.msra.mxu0 %v135
    %2336 = vmatprep.subr.mxu0 %v132
    %2337 = vmatpush1.msra.mxu0 %v131
    %2338 = vmatprep.subr.mxu0 %v128
    %2339 = vmatpush1.msra.mxu0 %v127
    %2340 = vmatprep.subr.mxu0 %v124
    %2341 = vmatpush1.msra.mxu0 %v123
    %2342 = vmatprep.subr.mxu0 %v120
    %2343 = vmatpush1.msra.mxu0 %v119
    %2344 = vmatprep.subr.mxu0 0.0
    %2345 = vmatpush2.msra.mxu0 0.0
    %2346 = vmatprep.subr.mxu0 0.0
    %2347 = vmatpush2.msra.mxu0 0.0
    %2348 = vmatprep.subr.mxu0 0.0
    %2349 = vmatpush2.msra.mxu0 0.0
    %2350 = vmatprep.subr.mxu0 0.0
    %2351 = vmatpush2.msra.mxu0 0.0
    %2352 = vmatprep.subr.mxu0 0.0
    %2353 = vmatpush2.msra.mxu0 0.0
    %2354 = vmatprep.subr.mxu0 0.0
    %2355 = vmatpush2.msra.mxu0 0.0
    %2356 = vmatprep.subr.mxu0 0.0
    %2357 = vmatpush2.msra.mxu0 0.0
    %2358 = vmatprep.subr.mxu0 0.0
    %2359 = vmatpush2.msra.mxu0 0.0
    %2360 = vmatprep.subr.mxu0 0.0
    %2361 = vmatpush2.msra.mxu0 0.0
    %2362 = vmatprep.subr.mxu0 0.0
    %2363 = vmatpush2.msra.mxu0 0.0
    %2364 = vmatprep.subr.mxu0 0.0
    %2365 = vmatpush2.msra.mxu0 0.0
    %2366 = vmatprep.subr.mxu0 0.0
    %2367 = vmatpush2.msra.mxu0 0.0
    %2368 = vmatprep.subr.mxu0 0.0
    %2369 = vmatpush2.msra.mxu0 0.0
    %2370 = vmatprep.subr.mxu0 0.0
    %2371 = vmatpush2.msra.mxu0 0.0
    %2372 = vmatprep.subr.mxu0 0.0
    %2373 = vmatpush2.msra.mxu0 0.0
    %2374 = vmatprep.subr.mxu0 0.0
    %2375 = vmatpush2.msra.mxu0 0.0
    %2376 = vmatprep.mubr.f32.mxu0 0.0
    %2377 = vmatmul.mubr.f32.gmra.mxu0 %v2311
    %v2378 = vpop.f32.mrf.mxu0
    %v2379 = vpop.f32.mrf.mxu0
    %v2380 = vadd.f32 0.0, %v2379
    %2381 = vdwg.mxu0
    %v2382 = vadd.f32 %v2380, %v203
    %v2383 = vxor.u32 %v2382, 2147483648
    %v2384 = vmul.f32 %v2383, 1.442695
    %v2385 = vpow.pop %v2384
    %v2386 = vadd.f32 %v2385, 1.0
    %v2387 = vrcp.pop %v2386
    %v2388 = vmul.f32 1.0, %v2387
    %v2389 = vtanh.pop %v2382
    %v2390 = vmul.f32 %v2388, %v2299
    %2392 = vrot.lane.b32.xlu0 %v2389, 64
    %v2393 = vpop.permute.xlu0 %2392
    %v2395 = vmul.f32 %v2388, %v2393
    %2397 = vrot.lane.b32.xlu0 %v2395, 32
    %v2398 = vpop.permute.xlu0 %2397
    %v2400 = vadd.f32 %v2390, %v2398
    %v2401 = vtanh.pop %v2400
    %2403 = vrot.lane.b32.xlu0 %v2401, 64
    %v2404 = vpop.permute.xlu0 %2403
    %v2406 = vmul.f32 %v2388, %v2404
    %v2407 = vld [vmem:[%s4] sm:$0x1]
    %v2409 = vlaneseq
    %v2410 = vshrl.u32 %v2409, 7
    %v2411 = vsub.s32 0, %v2410
    %v2412 = vrot.slane %v2407, %v2411
    %2413 = vrot.lane.b32.xlu0 %v2412, 96
    %v2414 = vpop.permute.xlu0 %2413
    %v2416 = vmul.f32 %v2406, %v2414
    %2418 = vrot.lane.b32.xlu0 %v2416, 32
    %v2419 = vpop.permute.xlu0 %2418
    %vm2421 = vcmask 254976
    %v2422 = vsel %vm2421, %v2419, 0.0
    %2423 = vadd.xlane.f32.xlu0 %v2422
    %v2424 = vpop.xlane.xlu0 %2423
    %v2425 = vld [vmem:[#allocation2] sm:$0x1]
    %v2427 = vlaneseq
    %v2428 = vshrl.u32 %v2427, 7
    %v2429 = vsub.s32 0, %v2428
    %v2430 = vrot.slane %v2425, %v2429
    %v2432 = vadd.f32 %v2424, %v2430
    %vm2433 = vcmask 1024
    %2434 = vst.msk [vmem:[%s6] sm:$0x3] %vm2433, %v2432
    // Predicated region
    $region30: #{tpu_custom_call.1} parent=1 // pred_check
      _
    $region31: #{tpu_custom_call.1} parent=1 // pred_check_branch
      %2436 = sbr.rel (0) target = $region33
    $region32: #{tpu_custom_call.1} parent=1 // pred_region
      _
    $region33: #{tpu_custom_call.1} parent=1 // pred_fallthru
      _
    // Predicated region
    $region34: #{tpu_custom_call.1} parent=1 // pred_check
      _
    $region35: #{tpu_custom_call.1} parent=1 // pred_check_branch
      %2438 = sbr.rel (0) target = $region37
    $region36: #{tpu_custom_call.1} parent=1 // pred_region
      _
    $region37: #{tpu_custom_call.1} parent=1 // pred_fallthru
      _
    %2439 = vsyncpa [#allocation4], 1

</llo_original>
